<compile_context>
chip_gen: v5e
topology: v5e:2x2
jax: 0.10.0
libtpu: 0.0.40
codegen_flags: <defaults>
</compile_context>

<pallas_src>
import functools

import numpy as np
import jax
import jax.numpy as jnp
from jax.experimental import pallas as pl
from jax.experimental.pallas import tpu as pltpu

LN_EPS = 1e-5
_SQRT_HALF = 0.7071067811865476
_GAUSS_A = (2.0 * 3.14159) ** 0.5  # Uni-Mol GaussianLayer uses pi = 3.14159


# ------------------------------------------------------------------ helpers --
def _erf(x, approx=False):
    # Abramowitz & Stegun 7.1.26 rational approximation (|abs err| < 1.5e-7).
    # approx=True (kernel-only) moves the divide onto the EUP slot.
    p = 0.3275911
    a1, a2, a3, a4, a5 = 0.254829592, -0.284496736, 1.421413741, -1.453152027, 1.061405429
    ax = jnp.abs(x)
    denom = 1.0 + p * ax
    t = pl.reciprocal(denom, approx=True) if approx else 1.0 / denom
    poly = ((((a5 * t + a4) * t + a3) * t + a2) * t + a1) * t
    y = 1.0 - poly * jnp.exp(-ax * ax)
    return jnp.where(x < 0, -y, y)


def _gelu(x, approx=False):
    # exact (erf-based) GELU, matching torch.nn.functional.gelu default
    return 0.5 * x * (1.0 + _erf(x * _SQRT_HALF, approx=approx))


def _layernorm(x, g, b, eps=LN_EPS):
    mu = jnp.mean(x, axis=-1, keepdims=True)
    xc = x - mu
    var = jnp.mean(xc * xc, axis=-1, keepdims=True)
    return xc * jax.lax.rsqrt(var + eps) * g + b


# ------------------------------------------------- LayerNorm (+mask) kernel --
def _ln_mask_kernel(x_ref, g_ref, b_ref, m_ref, o_ref):
    x = x_ref[0]                                   # (T, D)
    y = _layernorm(x, g_ref[...], b_ref[...])      # (1,D) broadcasts over rows
    o_ref[0] = y * m_ref[0]                        # (T,1) mask broadcast


def layernorm_mask(x, gamma, beta, mask):
    B, T, D = x.shape
    return pl.pallas_call(
        _ln_mask_kernel,
        out_shape=jax.ShapeDtypeStruct((B, T, D), jnp.float32),
        grid_spec=pltpu.PrefetchScalarGridSpec(
            num_scalar_prefetch=0,
            grid=(B,),
            in_specs=[
                pl.BlockSpec((1, T, D), lambda b: (b, 0, 0)),
                pl.BlockSpec((1, D), lambda b: (0, 0)),
                pl.BlockSpec((1, D), lambda b: (0, 0)),
                pl.BlockSpec((1, T, 1), lambda b: (b, 0, 0)),
            ],
            out_specs=pl.BlockSpec((1, T, D), lambda b: (b, 0, 0)),
        ),
        compiler_params=pltpu.CompilerParams(dimension_semantics=("parallel",)),
    )(x, gamma.reshape(1, D), beta.reshape(1, D), mask)


# ------------------------------------------ GaussianLayer + NonLinearHead ---
def _gbf_kernel(d_ref, mul_ref, eb_ref, pad_ref, mean_ref, std_ref,
                w1_ref, b1_ref, w2t_ref, b2_ref, o_ref):
    d = d_ref[0]                                   # (tn, 1)
    xv = mul_ref[0] * d + eb_ref[0]                # (tn, 1)
    mean = mean_ref[...]                           # (1, K)
    std = jnp.abs(std_ref[...]) + 1e-5             # (1, K)
    inv_std = 1.0 / std
    z = (xv - mean) * inv_std                      # (tn, K)
    feat = jnp.exp(-0.5 * z * z) * (inv_std / _GAUSS_A)
    h = jnp.dot(feat.astype(jnp.bfloat16), w1_ref[...].astype(jnp.bfloat16),
                preferred_element_type=jnp.float32) + b1_ref[...]
    h = _gelu(h, approx=True)
    # out^T = W2^T @ h^T -> (H, tn): contract the minor (K) dims of both operands (trans_b).
    out_t = jax.lax.dot_general(
        w2t_ref[...].astype(jnp.bfloat16), h.astype(jnp.bfloat16),
        (((1,), (1,)), ((), ())), preferred_element_type=jnp.float32) + b2_ref[...]
    pad = pad_ref[0]                               # (1, tn); 1.0 at padded keys
    # fused fill_attn_mask: -inf at padded keys, lane-dense (H, tn) store
    o_ref[0] = jnp.where(pad > 0.5, -jnp.inf, out_t)


def gbf_attn_bias(dist, mul_e, bias_e, pad_mask, means, stds, w1, b1, w2, b2):
    """Gaussian basis + NonLinearHead; returns (B, H, T, T) with -inf at padded keys."""
    B, T, _ = dist.shape
    N = T * T
    K = means.shape[0]
    H = w2.shape[1]

    # pair-tile over the flattened T*T dim: full N for small problems, else a 128-aligned divisor
    tn = N
    for cand in (4096, 2048, 1024, 512, 256, 128):
        if N > cand and N % cand == 0:
            tn = cand
            break

    d2 = dist.reshape(B, N, 1)
    m2 = mul_e.reshape(B, N, 1)
    e2 = bias_e.reshape(B, N, 1)
    padf = jnp.broadcast_to(pad_mask[:, None, :], (B, T, T)).astype(jnp.float32).reshape(B, 1, N)
    w2t = w2.T                                     # (H, K)
    b2c = b2.reshape(H, 1)

    out = pl.pallas_call(
        _gbf_kernel,
        out_shape=jax.ShapeDtypeStruct((B, H, N), jnp.float32),
        grid_spec=pltpu.PrefetchScalarGridSpec(
            num_scalar_prefetch=0,
            grid=(B, N // tn),
            in_specs=[
                pl.BlockSpec((1, tn, 1), lambda b, n: (b, n, 0)),
                pl.BlockSpec((1, tn, 1), lambda b, n: (b, n, 0)),
                pl.BlockSpec((1, tn, 1), lambda b, n: (b, n, 0)),
                pl.BlockSpec((1, 1, tn), lambda b, n: (b, 0, n)),
                pl.BlockSpec((1, K), lambda b, n: (0, 0)),
                pl.BlockSpec((1, K), lambda b, n: (0, 0)),
                pl.BlockSpec((K, K), lambda b, n: (0, 0)),
                pl.BlockSpec((1, K), lambda b, n: (0, 0)),
                pl.BlockSpec((H, K), lambda b, n: (0, 0)),
                pl.BlockSpec((H, 1), lambda b, n: (0, 0)),
            ],
            out_specs=pl.BlockSpec((1, H, tn), lambda b, n: (b, 0, n)),
        ),
        compiler_params=pltpu.CompilerParams(
            dimension_semantics=("parallel", "parallel")),
    )(d2, m2, e2, padf, means.reshape(1, K), stds.reshape(1, K),
      w1, b1.reshape(1, K), w2t, b2c)
    # free reshape (no transpose): (B, H, N) -> (B, H, T, T)
    return out.reshape(B, H, T, T)


# ------------------------------------------------- Transformer layer kernel --
def _layer_kernel(x_ref, bias_ref,
                  ln1g_ref, ln1b_ref,
                  wq_ref, bq_ref, wk_ref, bk_ref, wv_ref, bv_ref,
                  wo_ref, bo_ref,
                  ln2g_ref, ln2b_ref,
                  wf1_ref, bf1_ref, wf2_ref, bf2_ref,
                  xo_ref, biaso_ref,
                  xn_s, acc_s,
                  *, head_dim, h_blk):
    ht = pl.program_id(1)
    n_ht = pl.num_programs(1)
    scaling = float(head_dim) ** -0.5

    @pl.when(ht == 0)
    def _():
        x = x_ref[0]                                            # (T, D)
        xn_s[...] = _layernorm(x, ln1g_ref[...], ln1b_ref[...])
        acc_s[...] = x + bo_ref[...]                            # fold attn-out bias into residual

    T, D = xn_s.shape
    xn_b = jnp.broadcast_to(xn_s[...].astype(jnp.bfloat16)[None, :, :], (h_blk, T, D))

    wq = wq_ref[...].astype(jnp.bfloat16)                       # (h_blk, D, hd)
    wk = wk_ref[...].astype(jnp.bfloat16)
    wv = wv_ref[...].astype(jnp.bfloat16)
    q = jnp.einsum("htd,hde->hte", xn_b, wq,
                   preferred_element_type=jnp.float32) + bq_ref[...]
    k = jnp.einsum("htd,hde->hte", xn_b, wk,
                   preferred_element_type=jnp.float32) + bk_ref[...]
    v = jnp.einsum("htd,hde->hte", xn_b, wv,
                   preferred_element_type=jnp.float32) + bv_ref[...]

    # batched-head logits (bf16 MXU, f32 accumulate) + additive pair bias (f32, keeps -inf exact)
    logits = jnp.einsum("hqe,hke->hqk",
                        (q * scaling).astype(jnp.bfloat16), k.astype(jnp.bfloat16),
                        preferred_element_type=jnp.float32) + bias_ref[0]
    biaso_ref[0] = logits                                       # becomes next layer's attn bias

    # softmax with all-masked-row guard (fully padded sequences) on the EUP reciprocal
    mx = jnp.maximum(jnp.max(logits, axis=-1, keepdims=True), -1e30)
    p = jnp.exp(logits - mx)
    denom = jnp.sum(p, axis=-1, keepdims=True)
    attn = p * pl.reciprocal(jnp.maximum(denom, 1e-20), approx=True)

    ctx = jnp.einsum("hqk,hke->hqe", attn.astype(jnp.bfloat16), v.astype(jnp.bfloat16),
                     preferred_element_type=jnp.float32)
    # fold the output projection into the head-tile accumulation: acc += sum_h ctx_h @ Wo_h
    contrib = jnp.einsum("hqe,hed->hqd", ctx.astype(jnp.bfloat16),
                         wo_ref[...].astype(jnp.bfloat16),
                         preferred_element_type=jnp.float32)
    acc_s[...] = acc_s[...] + jnp.sum(contrib, axis=0)
    xo_ref[0] = acc_s[...]

    @pl.when(ht == n_ht - 1)
    def _():
        xa = acc_s[...]                                         # x after the attention block
        xn2 = _layernorm(xa, ln2g_ref[...], ln2b_ref[...])
        hdn = _gelu(jnp.dot(xn2.astype(jnp.bfloat16), wf1_ref[...].astype(jnp.bfloat16),
                            preferred_element_type=jnp.float32) + bf1_ref[...],
                    approx=True)
        out = xa + jnp.dot(hdn.astype(jnp.bfloat16), wf2_ref[...].astype(jnp.bfloat16),
                           preferred_element_type=jnp.float32) + bf2_ref[...]
        xo_ref[0] = out


def encoder_layer(x, attn_bias, lw, num_heads, h_blk):
    B, T, D = x.shape
    H = num_heads
    hd = D // H
    F = lw["w_f1"].shape[1]
    h_blk = min(h_blk, H)
    assert H % h_blk == 0
    n_ht = H // h_blk

    # per-head weight rearrangement (tiny XLA ops on weight tensors)
    w_qkv, b_qkv = lw["w_qkv"], lw["b_qkv"]
    wq3 = w_qkv[:, 0 * D:1 * D].reshape(D, H, hd).transpose(1, 0, 2)   # (H, D, hd)
    wk3 = w_qkv[:, 1 * D:2 * D].reshape(D, H, hd).transpose(1, 0, 2)
    wv3 = w_qkv[:, 2 * D:3 * D].reshape(D, H, hd).transpose(1, 0, 2)
    bq3 = b_qkv[0 * D:1 * D].reshape(H, 1, hd)
    bk3 = b_qkv[1 * D:2 * D].reshape(H, 1, hd)
    bv3 = b_qkv[2 * D:3 * D].reshape(H, 1, hd)
    wo3 = lw["w_o"].reshape(H, hd, D)                                  # (H, hd, D)

    kern = functools.partial(_layer_kernel, head_dim=hd, h_blk=h_blk)
    const2 = lambda shape: pl.BlockSpec(shape, lambda b, h: (0, 0))
    head3 = lambda shape: pl.BlockSpec(shape, lambda b, h: (h, 0, 0))

    # NOTE: when scaling to real UniMol shapes (T=512, H=64), pick h_blk so that
    # 2x(bias-in + bias-out tile) + resident FFN weights fits the per-generation VMEM
    # (raise pltpu.CompilerParams(vmem_limit_bytes=...) on v5e/v6e; halve h_blk on v7x).
    x_out, bias_out = pl.pallas_call(
        kern,
        out_shape=(jax.ShapeDtypeStruct((B, T, D), jnp.float32),
                   jax.ShapeDtypeStruct((B, H, T, T), jnp.float32)),
        grid_spec=pltpu.PrefetchScalarGridSpec(
            num_scalar_prefetch=0,
            grid=(B, n_ht),
            in_specs=[
                pl.BlockSpec((1, T, D), lambda b, h: (b, 0, 0)),
                pl.BlockSpec((1, h_blk, T, T), lambda b, h: (b, h, 0, 0)),
                const2((1, D)), const2((1, D)),
                head3((h_blk, D, hd)), head3((h_blk, 1, hd)),
                head3((h_blk, D, hd)), head3((h_blk, 1, hd)),
                head3((h_blk, D, hd)), head3((h_blk, 1, hd)),
                head3((h_blk, hd, D)), const2((1, D)),
                const2((1, D)), const2((1, D)),
                const2((D, F)), const2((1, F)),
                const2((F, D)), const2((1, D)),
            ],
            out_specs=(pl.BlockSpec((1, T, D), lambda b, h: (b, 0, 0)),
                       pl.BlockSpec((1, h_blk, T, T), lambda b, h: (b, h, 0, 0))),
            scratch_shapes=[pltpu.VMEM((T, D), jnp.float32),   # xn (LN of x), computed once per b
                            pltpu.VMEM((T, D), jnp.float32)],  # attention-output accumulator
        ),
        compiler_params=pltpu.CompilerParams(
            dimension_semantics=("parallel", "arbitrary")),
    )(x, attn_bias,
      lw["ln1_g"].reshape(1, D), lw["ln1_b"].reshape(1, D),
      wq3, bq3, wk3, bk3, wv3, bv3,
      wo3, lw["b_o"].reshape(1, D),
      lw["ln2_g"].reshape(1, D), lw["ln2_b"].reshape(1, D),
      lw["w_f1"], lw["b_f1"].reshape(1, F),
      lw["w_f2"], lw["b_f2"].reshape(1, D))
    return x_out, bias_out


# ----------------------------------------------------------- model forward --
def unimol_encoder_forward(params, src_tokens, src_distance, src_coord, src_edge_type,
                           *, padding_idx, num_heads, h_blk=2):
    del src_coord  # unused by the default (features_only-style) forward path
    B, T = src_tokens.shape

    padding_mask = (src_tokens == padding_idx)                         # (B, T) bool
    x = params["embed_tokens"][src_tokens]                             # (B, T, D) gather (glue)

    # ---- get_dist_features: gbf -> gbf_proj (+ fused key-padding -inf fill) ----
    mul_e = params["gbf_mul"][src_edge_type]                           # (B, T, T) gather (glue)
    bias_e = params["gbf_bias"][src_edge_type]                         # (B, T, T)
    attn_mask = gbf_attn_bias(
        src_distance.astype(jnp.float32), mul_e, bias_e, padding_mask,
        params["gbf_means"], params["gbf_stds"],
        params["gbf_proj_w1"], params["gbf_proj_b1"],
        params["gbf_proj_w2"], params["gbf_proj_b2"])                  # (B, H, T, T), -inf at pads

    # ---- TransformerEncoderWithPair ----
    not_pad = (1.0 - padding_mask.astype(jnp.float32))[:, :, None]     # (B, T, 1)
    x = layernorm_mask(x, params["emb_ln_g"], params["emb_ln_b"], not_pad)

    for lw in params["layers"]:
        x, attn_mask = encoder_layer(x, attn_mask, lw, num_heads, h_blk)

    ones = jnp.ones((x.shape[0], x.shape[1], 1), jnp.float32)
    encoder_rep = layernorm_mask(x, params["final_ln_g"], params["final_ln_b"], ones)

    pair = jnp.transpose(attn_mask, (0, 2, 3, 1))                      # (B, T, T, H) (output layout)
    encoder_pair_rep = jnp.where(pair == -jnp.inf, 0.0, pair)          # pair[pair == -inf] = 0
    return encoder_rep, encoder_pair_rep, padding_mask


# --------------------------------------------------------- pure-JAX reference
def ref_forward(params, src_tokens, src_distance, src_edge_type, *, padding_idx, num_heads):
    B, T = src_tokens.shape
    D = params["embed_tokens"].shape[1]
    H = num_heads
    hd = D // H
    padding_mask = src_tokens == padding_idx
    x = params["embed_tokens"][src_tokens]

    mul_e = params["gbf_mul"][src_edge_type]
    bias_e = params["gbf_bias"][src_edge_type]
    xv = mul_e * src_distance + bias_e
    mean = params["gbf_means"]
    std = jnp.abs(params["gbf_stds"]) + 1e-5
    z = (xv[..., None] - mean) / std
    feat = jnp.exp(-0.5 * z * z) / (_GAUSS_A * std)
    h = _gelu(feat @ params["gbf_proj_w1"] + params["gbf_proj_b1"])
    gbf_out = h @ params["gbf_proj_w2"] + params["gbf_proj_b2"]        # (B, T, T, H)
    gbias = jnp.transpose(gbf_out, (0, 3, 1, 2))

    def ln(v, g, b):
        mu = v.mean(-1, keepdims=True)
        xc = v - mu
        return xc * jax.lax.rsqrt((xc * xc).mean(-1, keepdims=True) + LN_EPS) * g + b

    x = ln(x, params["emb_ln_g"], params["emb_ln_b"])
    x = x * (1.0 - padding_mask[..., None].astype(jnp.float32))
    attn_mask = jnp.where(padding_mask[:, None, None, :], -jnp.inf, gbias)

    for lw in params["layers"]:
        res = x
        xn = ln(x, lw["ln1_g"], lw["ln1_b"])
        qkv = xn @ lw["w_qkv"] + lw["b_qkv"]
        q, k, v = jnp.split(qkv, 3, axis=-1)
        q = q.reshape(B, T, H, hd).transpose(0, 2, 1, 3) * hd ** -0.5
        k = k.reshape(B, T, H, hd).transpose(0, 2, 1, 3)
        v = v.reshape(B, T, H, hd).transpose(0, 2, 1, 3)
        logits = jnp.einsum("bhqd,bhkd->bhqk", q, k) + attn_mask
        attn_mask = logits
        attn = jax.nn.softmax(logits, axis=-1)
        o = jnp.einsum("bhqk,bhkd->bhqd", attn, v).transpose(0, 2, 1, 3).reshape(B, T, D)
        x = res + (o @ lw["w_o"] + lw["b_o"])
        res = x
        xn = ln(x, lw["ln2_g"], lw["ln2_b"])
        x = res + (_gelu(xn @ lw["w_f1"] + lw["b_f1"]) @ lw["w_f2"] + lw["b_f2"])

    enc = ln(x, params["final_ln_g"], params["final_ln_b"])
    pair = jnp.transpose(attn_mask, (0, 2, 3, 1))
    pair = jnp.where(pair == -jnp.inf, 0.0, pair)
    return enc, pair, padding_mask


# ------------------------------------------------------------------- params --
def init_params(key, vocab_size, D, H, F, n_layers, K, padding_idx):
    keys = jax.random.split(key, 12 + n_layers)

    def nrm(k, shape, scale):
        return (scale * jax.random.normal(k, shape)).astype(jnp.float32)

    params = {}
    emb = nrm(keys[0], (vocab_size, D), 1.0)
    params["embed_tokens"] = emb.at[padding_idx].set(0.0)        # nn.Embedding padding_idx row
    params["emb_ln_g"] = jnp.ones((D,), jnp.float32)
    params["emb_ln_b"] = jnp.zeros((D,), jnp.float32)
    params["final_ln_g"] = jnp.ones((D,), jnp.float32)
    params["final_ln_b"] = jnp.zeros((D,), jnp.float32)

    n_edge = vocab_size * vocab_size
    params["gbf_means"] = jax.random.uniform(keys[1], (K,), jnp.float32, 0.0, 3.0)
    params["gbf_stds"] = jax.random.uniform(keys[2], (K,), jnp.float32, 0.0, 3.0)
    params["gbf_mul"] = 1.0 + nrm(keys[3], (n_edge,), 0.1)
    params["gbf_bias"] = nrm(keys[4], (n_edge,), 0.1)
    params["gbf_proj_w1"] = nrm(keys[5], (K, K), 0.05)
    params["gbf_proj_b1"] = nrm(keys[6], (K,), 0.02)
    params["gbf_proj_w2"] = nrm(keys[7], (K, H), 0.05)
    params["gbf_proj_b2"] = nrm(keys[8], (H,), 0.02)

    layers = []
    for i in range(n_layers):
        lk = jax.random.split(keys[12 + i], 8)
        layers.append({
            "ln1_g": jnp.ones((D,), jnp.float32), "ln1_b": jnp.zeros((D,), jnp.float32),
            "w_qkv": nrm(lk[0], (D, 3 * D), 0.05), "b_qkv": nrm(lk[1], (3 * D,), 0.02),
            "w_o": nrm(lk[2], (D, D), 0.05), "b_o": nrm(lk[3], (D,), 0.02),
            "ln2_g": jnp.ones((D,), jnp.float32), "ln2_b": jnp.zeros((D,), jnp.float32),
            "w_f1": nrm(lk[4], (D, F), 0.05), "b_f1": nrm(lk[5], (F,), 0.02),
            "w_f2": nrm(lk[6], (F, D), 0.05), "b_f2": nrm(lk[7], (D,), 0.02),
        })
    params["layers"] = layers
    return params


# --------------------------------------------------------------------- main --
if __name__ == "__main__":
    # Small, module-consistent shapes
    B, T = 2, 8
    D, H, F = 32, 4, 64          # encoder_embed_dim, attention_heads, ffn_embed_dim
    N_LAYERS = 2                 # encoder_layers (scaled down)
    K = 128                      # fixed in UniMolEncoder.__init__
    VOCAB = 10
    PAD = 0
    H_BLK = 2                    # heads per grid step (exercises the head-tile accumulation)

    root = jax.random.PRNGKey(0)
    kp, kt, kc = jax.random.split(root, 3)
    params = init_params(kp, VOCAB, D, H, F, N_LAYERS, K, PAD)

    src_tokens = jax.random.randint(kt, (B, T), 1, VOCAB).astype(jnp.int32)
    src_tokens = src_tokens.at[1, 6:].set(PAD)                      # some padding in batch 1
    src_coord = jax.random.normal(kc, (B, T, 3), jnp.float32) * 3.0
    diff = src_coord[:, :, None, :] - src_coord[:, None, :, :]
    src_distance = jnp.sqrt(jnp.sum(diff * diff, axis=-1) + 1e-12)  # (B, T, T)
    src_edge_type = (src_tokens[:, :, None] * VOCAB + src_tokens[:, None, :]).astype(jnp.int32)

    fwd = jax.jit(functools.partial(unimol_encoder_forward,
                                    padding_idx=PAD, num_heads=H, h_blk=H_BLK))
    encoder_rep, encoder_pair_rep, padding_mask = fwd(
        params, src_tokens, src_distance, src_coord, src_edge_type)
    jax.block_until_ready((encoder_rep, encoder_pair_rep, padding_mask))

    assert encoder_rep.shape == (B, T, D)
    assert encoder_pair_rep.shape == (B, T, T, H)
    assert padding_mask.shape == (B, T)

    # correctness check against a pure-JAX (f32) reference; kernels use bf16 MXU inputs
    r_rep, r_pair, r_pad = ref_forward(params, src_tokens, src_distance, src_edge_type,
                                       padding_idx=PAD, num_heads=H)
    np.testing.assert_allclose(np.asarray(encoder_rep), np.asarray(r_rep), rtol=2e-2, atol=2e-2)
    np.testing.assert_allclose(np.asarray(encoder_pair_rep), np.asarray(r_pair), rtol=2e-2, atol=2e-2)
    np.testing.assert_array_equal(np.asarray(padding_mask), np.asarray(r_pad))

    print("KERNEL_OK")
</pallas_src>

<mosaic_0001>
module attributes {stable_mosaic.version = 11 : i64} {
  func.func @_gbf_kernel(%arg0: i32, %arg1: i32, %arg2: memref<1x64x1xf32, #tpu.memory_space<vmem>>, %arg3: memref<1x64x1xf32, #tpu.memory_space<vmem>>, %arg4: memref<1x64x1xf32, #tpu.memory_space<vmem>>, %arg5: memref<1x1x64xf32, #tpu.memory_space<vmem>>, %arg6: memref<1x128xf32, #tpu.memory_space<vmem>>, %arg7: memref<1x128xf32, #tpu.memory_space<vmem>>, %arg8: memref<128x128xf32, #tpu.memory_space<vmem>>, %arg9: memref<1x128xf32, #tpu.memory_space<vmem>>, %arg10: memref<4x128xf32, #tpu.memory_space<vmem>>, %arg11: memref<4x1xf32, #tpu.memory_space<vmem>>, %arg12: memref<1x4x64xf32, #tpu.memory_space<vmem>>) attributes {dimension_semantics = [#tpu.dimension_semantics<parallel>, #tpu.dimension_semantics<parallel>], iteration_bounds = array<i64: 2, 1>, scalar_prefetch = 0 : i64, scratch_operands = 0 : i64, tpu.core_type = #tpu.core_type<tc>, window_params = [{transform_indices = @transform_0, window_bounds = array<i64: 1, 64, 1>}, {transform_indices = @transform_1, window_bounds = array<i64: 1, 64, 1>}, {transform_indices = @transform_2, window_bounds = array<i64: 1, 64, 1>}, {transform_indices = @transform_3, window_bounds = array<i64: 1, 1, 64>}, {pipeline_mode = #tpu.pipeline_mode<synchronous>, transform_indices = @transform_4, window_bounds = array<i64: 1, 128>}, {pipeline_mode = #tpu.pipeline_mode<synchronous>, transform_indices = @transform_5, window_bounds = array<i64: 1, 128>}, {pipeline_mode = #tpu.pipeline_mode<synchronous>, transform_indices = @transform_6, window_bounds = array<i64: 128, 128>}, {pipeline_mode = #tpu.pipeline_mode<synchronous>, transform_indices = @transform_7, window_bounds = array<i64: 1, 128>}, {pipeline_mode = #tpu.pipeline_mode<synchronous>, transform_indices = @transform_8, window_bounds = array<i64: 4, 128>}, {pipeline_mode = #tpu.pipeline_mode<synchronous>, transform_indices = @transform_9, window_bounds = array<i64: 4, 1>}, {transform_indices = @transform_10, window_bounds = array<i64: 1, 4, 64>}]} {
    %c0 = arith.constant 0 : index
    %c0_0 = arith.constant 0 : index
    %c0_1 = arith.constant 0 : index
    %0 = vector.load %arg2[%c0, %c0_0, %c0_1] : memref<1x64x1xf32, #tpu.memory_space<vmem>>, vector<1x64x1xf32>
    %1 = vector.shape_cast %0 : vector<1x64x1xf32> to vector<64x1xf32>
    %c0_2 = arith.constant 0 : index
    %c0_3 = arith.constant 0 : index
    %c0_4 = arith.constant 0 : index
    %2 = vector.load %arg3[%c0_2, %c0_3, %c0_4] : memref<1x64x1xf32, #tpu.memory_space<vmem>>, vector<1x64x1xf32>
    %3 = vector.shape_cast %2 : vector<1x64x1xf32> to vector<64x1xf32>
    %4 = arith.mulf %3, %1 : vector<64x1xf32>
    %c0_5 = arith.constant 0 : index
    %c0_6 = arith.constant 0 : index
    %c0_7 = arith.constant 0 : index
    %5 = vector.load %arg4[%c0_5, %c0_6, %c0_7] : memref<1x64x1xf32, #tpu.memory_space<vmem>>, vector<1x64x1xf32>
    %6 = vector.shape_cast %5 : vector<1x64x1xf32> to vector<64x1xf32>
    %7 = arith.addf %4, %6 : vector<64x1xf32>
    %c0_8 = arith.constant 0 : index
    %c0_9 = arith.constant 0 : index
    %8 = vector.load %arg6[%c0_8, %c0_9] : memref<1x128xf32, #tpu.memory_space<vmem>>, vector<1x128xf32>
    %c0_10 = arith.constant 0 : index
    %c0_11 = arith.constant 0 : index
    %9 = vector.load %arg7[%c0_10, %c0_11] : memref<1x128xf32, #tpu.memory_space<vmem>>, vector<1x128xf32>
    %10 = math.absf %9 : vector<1x128xf32>
    %cst = arith.constant 9.99999974E-6 : f32
    %11 = vector.broadcast %cst : f32 to vector<1x128xf32>
    %12 = arith.addf %10, %11 : vector<1x128xf32>
    %cst_12 = arith.constant 1.000000e+00 : f32
    %13 = vector.broadcast %cst_12 : f32 to vector<1x128xf32>
    %14 = arith.divf %13, %12 : vector<1x128xf32>
    %15 = vector.broadcast %7 : vector<64x1xf32> to vector<64x128xf32>
    %16 = vector.broadcast %8 : vector<1x128xf32> to vector<64x128xf32>
    %17 = arith.subf %15, %16 : vector<64x128xf32>
    %18 = vector.broadcast %14 : vector<1x128xf32> to vector<64x128xf32>
    %19 = arith.mulf %17, %18 : vector<64x128xf32>
    %cst_13 = arith.constant -5.000000e-01 : f32
    %20 = vector.broadcast %cst_13 : f32 to vector<64x128xf32>
    %21 = arith.mulf %20, %19 : vector<64x128xf32>
    %22 = arith.mulf %21, %19 : vector<64x128xf32>
    %23 = math.exp %22 : vector<64x128xf32>
    %cst_14 = arith.constant 2.50662732 : f32
    %24 = vector.broadcast %cst_14 : f32 to vector<1x128xf32>
    %25 = arith.divf %14, %24 : vector<1x128xf32>
    %26 = vector.broadcast %25 : vector<1x128xf32> to vector<64x128xf32>
    %27 = arith.mulf %23, %26 : vector<64x128xf32>
    %28 = arith.truncf %27 : vector<64x128xf32> to vector<64x128xbf16>
    %c0_15 = arith.constant 0 : index
    %c0_16 = arith.constant 0 : index
    %29 = vector.load %arg8[%c0_15, %c0_16] : memref<128x128xf32, #tpu.memory_space<vmem>>, vector<128x128xf32>
    %30 = arith.truncf %29 : vector<128x128xf32> to vector<128x128xbf16>
    %cst_17 = arith.constant dense<0.000000e+00> : vector<64x128xf32>
    %31 = tpu.matmul %28, %30, %cst_17 {dimension_numbers = #tpu.dot_dimension_numbers<[1], [0], [0], [1], [0, 0, 1, 1], [], []>} : vector<64x128xbf16>, vector<128x128xbf16>, vector<64x128xf32> -> vector<64x128xf32>
    %c0_18 = arith.constant 0 : index
    %c0_19 = arith.constant 0 : index
    %32 = vector.load %arg9[%c0_18, %c0_19] : memref<1x128xf32, #tpu.memory_space<vmem>>, vector<1x128xf32>
    %33 = vector.broadcast %32 : vector<1x128xf32> to vector<64x128xf32>
    %34 = arith.addf %31, %33 : vector<64x128xf32>
    %cst_20 = arith.constant 5.000000e-01 : f32
    %35 = vector.broadcast %cst_20 : f32 to vector<64x128xf32>
    %36 = arith.mulf %35, %34 : vector<64x128xf32>
    %cst_21 = arith.constant 0.707106769 : f32
    %37 = vector.broadcast %cst_21 : f32 to vector<64x128xf32>
    %38 = arith.mulf %34, %37 : vector<64x128xf32>
    %39 = math.absf %38 : vector<64x128xf32>
    %cst_22 = arith.constant 0.327591091 : f32
    %40 = vector.broadcast %cst_22 : f32 to vector<64x128xf32>
    %41 = arith.mulf %40, %39 : vector<64x128xf32>
    %cst_23 = arith.constant 1.000000e+00 : f32
    %42 = vector.broadcast %cst_23 : f32 to vector<64x128xf32>
    %43 = arith.addf %42, %41 : vector<64x128xf32>
    %44 = tpu.reciprocal %43 {approx = true} : vector<64x128xf32> -> vector<64x128xf32>
    %cst_24 = arith.constant 1.06140542 : f32
    %45 = vector.broadcast %cst_24 : f32 to vector<64x128xf32>
    %46 = arith.mulf %45, %44 : vector<64x128xf32>
    %cst_25 = arith.constant -1.45315206 : f32
    %47 = vector.broadcast %cst_25 : f32 to vector<64x128xf32>
    %48 = arith.addf %46, %47 : vector<64x128xf32>
    %49 = arith.mulf %48, %44 : vector<64x128xf32>
    %cst_26 = arith.constant 1.42141378 : f32
    %50 = vector.broadcast %cst_26 : f32 to vector<64x128xf32>
    %51 = arith.addf %49, %50 : vector<64x128xf32>
    %52 = arith.mulf %51, %44 : vector<64x128xf32>
    %cst_27 = arith.constant -0.284496725 : f32
    %53 = vector.broadcast %cst_27 : f32 to vector<64x128xf32>
    %54 = arith.addf %52, %53 : vector<64x128xf32>
    %55 = arith.mulf %54, %44 : vector<64x128xf32>
    %cst_28 = arith.constant 0.254829586 : f32
    %56 = vector.broadcast %cst_28 : f32 to vector<64x128xf32>
    %57 = arith.addf %55, %56 : vector<64x128xf32>
    %58 = arith.mulf %57, %44 : vector<64x128xf32>
    %cst_29 = arith.constant 0.000000e+00 : f32
    %59 = vector.broadcast %cst_29 : f32 to vector<64x128xf32>
    %60 = arith.subf %59, %39 : vector<64x128xf32>
    %61 = arith.mulf %60, %39 : vector<64x128xf32>
    %62 = math.exp %61 : vector<64x128xf32>
    %63 = arith.mulf %58, %62 : vector<64x128xf32>
    %cst_30 = arith.constant 1.000000e+00 : f32
    %64 = vector.broadcast %cst_30 : f32 to vector<64x128xf32>
    %65 = arith.subf %64, %63 : vector<64x128xf32>
    %cst_31 = arith.constant 0.000000e+00 : f32
    %66 = vector.broadcast %cst_31 : f32 to vector<64x128xf32>
    %67 = arith.cmpf olt, %38, %66 : vector<64x128xf32>
    %cst_32 = arith.constant 0.000000e+00 : f32
    %68 = vector.broadcast %cst_32 : f32 to vector<64x128xf32>
    %69 = arith.subf %68, %65 : vector<64x128xf32>
    %70 = arith.select %67, %69, %65 : vector<64x128xi1>, vector<64x128xf32>
    %cst_33 = arith.constant 1.000000e+00 : f32
    %71 = vector.broadcast %cst_33 : f32 to vector<64x128xf32>
    %72 = arith.addf %71, %70 : vector<64x128xf32>
    %73 = arith.mulf %36, %72 : vector<64x128xf32>
    %c0_34 = arith.constant 0 : index
    %c0_35 = arith.constant 0 : index
    %74 = vector.load %arg10[%c0_34, %c0_35] : memref<4x128xf32, #tpu.memory_space<vmem>>, vector<4x128xf32>
    %75 = arith.truncf %74 : vector<4x128xf32> to vector<4x128xbf16>
    %76 = arith.truncf %73 : vector<64x128xf32> to vector<64x128xbf16>
    %cst_36 = arith.constant dense<0.000000e+00> : vector<4x64xf32>
    %77 = tpu.matmul %75, %76, %cst_36 {dimension_numbers = #tpu.dot_dimension_numbers<[1], [1], [0], [0], [0, 0, 1, 0], [], []>} : vector<4x128xbf16>, vector<64x128xbf16>, vector<4x64xf32> -> vector<4x64xf32>
    %c0_37 = arith.constant 0 : index
    %c0_38 = arith.constant 0 : index
    %78 = vector.load %arg11[%c0_37, %c0_38] : memref<4x1xf32, #tpu.memory_space<vmem>>, vector<4x1xf32>
    %79 = vector.broadcast %78 : vector<4x1xf32> to vector<4x64xf32>
    %80 = arith.addf %77, %79 : vector<4x64xf32>
    %c0_39 = arith.constant 0 : index
    %c0_40 = arith.constant 0 : index
    %c0_41 = arith.constant 0 : index
    %81 = vector.load %arg5[%c0_39, %c0_40, %c0_41] : memref<1x1x64xf32, #tpu.memory_space<vmem>>, vector<1x1x64xf32>
    %82 = vector.shape_cast %81 : vector<1x1x64xf32> to vector<1x64xf32>
    %cst_42 = arith.constant 5.000000e-01 : f32
    %83 = vector.broadcast %cst_42 : f32 to vector<1x64xf32>
    %84 = arith.cmpf ogt, %82, %83 : vector<1x64xf32>
    %cst_43 = arith.constant 0xFF800000 : f32
    %85 = vector.shape_cast %84 : vector<1x64xi1> to vector<1x64xi1>
    %86 = vector.broadcast %85 : vector<1x64xi1> to vector<4x64xi1>
    %87 = vector.broadcast %cst_43 : f32 to vector<4x64xf32>
    %88 = arith.select %86, %87, %80 : vector<4x64xi1>, vector<4x64xf32>
    %c0_44 = arith.constant 0 : index
    %c0_45 = arith.constant 0 : index
    %c0_46 = arith.constant 0 : index
    %89 = vector.load %arg12[%c0_44, %c0_45, %c0_46] : memref<1x4x64xf32, #tpu.memory_space<vmem>>, vector<1x4x64xf32>
    %90 = vector.shape_cast %89 : vector<1x4x64xf32> to vector<4x64xf32>
    %91 = vector.shape_cast %88 : vector<4x64xf32> to vector<1x4x64xf32>
    tpu.vector_store %arg12[%c0_44, %c0_45, %c0_46], %91 {strides = array<i32>} : memref<1x4x64xf32, #tpu.memory_space<vmem>>, vector<1x4x64xf32>,
    return
  }
  func.func @transform_0(%arg0: i32, %arg1: i32) -> (i32, i32, i32) {
    %c0_i32 = arith.constant 0 : i32
    %c0_i32_0 = arith.constant 0 : i32
    return %arg0, %arg1, %c0_i32 : i32, i32, i32
  }
  func.func @transform_1(%arg0: i32, %arg1: i32) -> (i32, i32, i32) {
    %c0_i32 = arith.constant 0 : i32
    %c0_i32_0 = arith.constant 0 : i32
    return %arg0, %arg1, %c0_i32 : i32, i32, i32
  }
  func.func @transform_2(%arg0: i32, %arg1: i32) -> (i32, i32, i32) {
    %c0_i32 = arith.constant 0 : i32
    %c0_i32_0 = arith.constant 0 : i32
    return %arg0, %arg1, %c0_i32 : i32, i32, i32
  }
  func.func @transform_3(%arg0: i32, %arg1: i32) -> (i32, i32, i32) {
    %c0_i32 = arith.constant 0 : i32
    %c0_i32_0 = arith.constant 0 : i32
    return %arg0, %c0_i32, %arg1 : i32, i32, i32
  }
  func.func @transform_4(%arg0: i32, %arg1: i32) -> (i32, i32) {
    %c0_i32 = arith.constant 0 : i32
    %c0_i32_0 = arith.constant 0 : i32
    %c0_i32_1 = arith.constant 0 : i32
    return %c0_i32, %c0_i32_0 : i32, i32
  }
  func.func @transform_5(%arg0: i32, %arg1: i32) -> (i32, i32) {
    %c0_i32 = arith.constant 0 : i32
    %c0_i32_0 = arith.constant 0 : i32
    %c0_i32_1 = arith.constant 0 : i32
    return %c0_i32, %c0_i32_0 : i32, i32
  }
  func.func @transform_6(%arg0: i32, %arg1: i32) -> (i32, i32) {
    %c0_i32 = arith.constant 0 : i32
    %c0_i32_0 = arith.constant 0 : i32
    %c0_i32_1 = arith.constant 0 : i32
    return %c0_i32, %c0_i32_0 : i32, i32
  }
  func.func @transform_7(%arg0: i32, %arg1: i32) -> (i32, i32) {
    %c0_i32 = arith.constant 0 : i32
    %c0_i32_0 = arith.constant 0 : i32
    %c0_i32_1 = arith.constant 0 : i32
    return %c0_i32, %c0_i32_0 : i32, i32
  }
  func.func @transform_8(%arg0: i32, %arg1: i32) -> (i32, i32) {
    %c0_i32 = arith.constant 0 : i32
    %c0_i32_0 = arith.constant 0 : i32
    %c0_i32_1 = arith.constant 0 : i32
    return %c0_i32, %c0_i32_0 : i32, i32
  }
  func.func @transform_9(%arg0: i32, %arg1: i32) -> (i32, i32) {
    %c0_i32 = arith.constant 0 : i32
    %c0_i32_0 = arith.constant 0 : i32
    %c0_i32_1 = arith.constant 0 : i32
    return %c0_i32, %c0_i32_0 : i32, i32
  }
  func.func @transform_10(%arg0: i32, %arg1: i32) -> (i32, i32, i32) {
    %c0_i32 = arith.constant 0 : i32
    %c0_i32_0 = arith.constant 0 : i32
    return %arg0, %c0_i32, %arg1 : i32, i32, i32
  }
}

module attributes {stable_mosaic.version = 11 : i64} {
  func.func @_ln_mask_kernel(%arg0: i32, %arg1: memref<1x8x32xf32, #tpu.memory_space<vmem>>, %arg2: memref<1x32xf32, #tpu.memory_space<vmem>>, %arg3: memref<1x32xf32, #tpu.memory_space<vmem>>, %arg4: memref<1x8x1xf32, #tpu.memory_space<vmem>>, %arg5: memref<1x8x32xf32, #tpu.memory_space<vmem>>) attributes {dimension_semantics = [#tpu.dimension_semantics<parallel>], iteration_bounds = array<i64: 2>, scalar_prefetch = 0 : i64, scratch_operands = 0 : i64, tpu.core_type = #tpu.core_type<tc>, window_params = [{transform_indices = @transform_0, window_bounds = array<i64: 1, 8, 32>}, {pipeline_mode = #tpu.pipeline_mode<synchronous>, transform_indices = @transform_1, window_bounds = array<i64: 1, 32>}, {pipeline_mode = #tpu.pipeline_mode<synchronous>, transform_indices = @transform_2, window_bounds = array<i64: 1, 32>}, {transform_indices = @transform_3, window_bounds = array<i64: 1, 8, 1>}, {transform_indices = @transform_4, window_bounds = array<i64: 1, 8, 32>}]} {
    %c0 = arith.constant 0 : index
    %c0_0 = arith.constant 0 : index
    %c0_1 = arith.constant 0 : index
    %0 = vector.load %arg1[%c0, %c0_0, %c0_1] : memref<1x8x32xf32, #tpu.memory_space<vmem>>, vector<1x8x32xf32>
    %1 = vector.shape_cast %0 : vector<1x8x32xf32> to vector<8x32xf32>
    %c0_2 = arith.constant 0 : index
    %c0_3 = arith.constant 0 : index
    %2 = vector.load %arg2[%c0_2, %c0_3] : memref<1x32xf32, #tpu.memory_space<vmem>>, vector<1x32xf32>
    %c0_4 = arith.constant 0 : index
    %c0_5 = arith.constant 0 : index
    %3 = vector.load %arg3[%c0_4, %c0_5] : memref<1x32xf32, #tpu.memory_space<vmem>>, vector<1x32xf32>
    %cst = arith.constant dense<0.000000e+00> : vector<8xf32>
    %4 = vector.multi_reduction <add>, %1, %cst [1] : vector<8x32xf32> to vector<8xf32>
    %5 = vector.shape_cast %4 : vector<8xf32> to vector<8x1xf32>
    %cst_6 = arith.constant 3.200000e+01 : f32
    %6 = vector.broadcast %cst_6 : f32 to vector<8x1xf32>
    %7 = arith.divf %5, %6 : vector<8x1xf32>
    %8 = vector.broadcast %7 : vector<8x1xf32> to vector<8x32xf32>
    %9 = arith.subf %1, %8 : vector<8x32xf32>
    %10 = arith.mulf %9, %9 : vector<8x32xf32>
    %cst_7 = arith.constant dense<0.000000e+00> : vector<8xf32>
    %11 = vector.multi_reduction <add>, %10, %cst_7 [1] : vector<8x32xf32> to vector<8xf32>
    %12 = vector.shape_cast %11 : vector<8xf32> to vector<8x1xf32>
    %cst_8 = arith.constant 3.200000e+01 : f32
    %13 = vector.broadcast %cst_8 : f32 to vector<8x1xf32>
    %14 = arith.divf %12, %13 : vector<8x1xf32>
    %cst_9 = arith.constant 9.99999974E-6 : f32
    %15 = vector.broadcast %cst_9 : f32 to vector<8x1xf32>
    %16 = arith.addf %14, %15 : vector<8x1xf32>
    %17 = math.rsqrt %16 : vector<8x1xf32>
    %18 = vector.broadcast %17 : vector<8x1xf32> to vector<8x32xf32>
    %19 = arith.mulf %9, %18 : vector<8x32xf32>
    %20 = vector.broadcast %2 : vector<1x32xf32> to vector<8x32xf32>
    %21 = arith.mulf %19, %20 : vector<8x32xf32>
    %22 = vector.broadcast %3 : vector<1x32xf32> to vector<8x32xf32>
    %23 = arith.addf %21, %22 : vector<8x32xf32>
    %c0_10 = arith.constant 0 : index
    %c0_11 = arith.constant 0 : index
    %c0_12 = arith.constant 0 : index
    %24 = vector.load %arg4[%c0_10, %c0_11, %c0_12] : memref<1x8x1xf32, #tpu.memory_space<vmem>>, vector<1x8x1xf32>
    %25 = vector.shape_cast %24 : vector<1x8x1xf32> to vector<8x1xf32>
    %26 = vector.broadcast %25 : vector<8x1xf32> to vector<8x32xf32>
    %27 = arith.mulf %23, %26 : vector<8x32xf32>
    %c0_13 = arith.constant 0 : index
    %c0_14 = arith.constant 0 : index
    %c0_15 = arith.constant 0 : index
    %28 = vector.load %arg5[%c0_13, %c0_14, %c0_15] : memref<1x8x32xf32, #tpu.memory_space<vmem>>, vector<1x8x32xf32>
    %29 = vector.shape_cast %28 : vector<1x8x32xf32> to vector<8x32xf32>
    %30 = vector.shape_cast %27 : vector<8x32xf32> to vector<1x8x32xf32>
    tpu.vector_store %arg5[%c0_13, %c0_14, %c0_15], %30 {strides = array<i32>} : memref<1x8x32xf32, #tpu.memory_space<vmem>>, vector<1x8x32xf32>,
    return
  }
  func.func @transform_0(%arg0: i32) -> (i32, i32, i32) {
    %c0_i32 = arith.constant 0 : i32
    %c0_i32_0 = arith.constant 0 : i32
    %c0_i32_1 = arith.constant 0 : i32
    return %arg0, %c0_i32, %c0_i32_0 : i32, i32, i32
  }
  func.func @transform_1(%arg0: i32) -> (i32, i32) {
    %c0_i32 = arith.constant 0 : i32
    %c0_i32_0 = arith.constant 0 : i32
    %c0_i32_1 = arith.constant 0 : i32
    return %c0_i32, %c0_i32_0 : i32, i32
  }
  func.func @transform_2(%arg0: i32) -> (i32, i32) {
    %c0_i32 = arith.constant 0 : i32
    %c0_i32_0 = arith.constant 0 : i32
    %c0_i32_1 = arith.constant 0 : i32
    return %c0_i32, %c0_i32_0 : i32, i32
  }
  func.func @transform_3(%arg0: i32) -> (i32, i32, i32) {
    %c0_i32 = arith.constant 0 : i32
    %c0_i32_0 = arith.constant 0 : i32
    %c0_i32_1 = arith.constant 0 : i32
    return %arg0, %c0_i32, %c0_i32_0 : i32, i32, i32
  }
  func.func @transform_4(%arg0: i32) -> (i32, i32, i32) {
    %c0_i32 = arith.constant 0 : i32
    %c0_i32_0 = arith.constant 0 : i32
    %c0_i32_1 = arith.constant 0 : i32
    return %arg0, %c0_i32, %c0_i32_0 : i32, i32, i32
  }
}

module attributes {stable_mosaic.version = 11 : i64} {
  func.func @_ln_mask_kernel(%arg0: i32, %arg1: memref<1x8x32xf32, #tpu.memory_space<vmem>>, %arg2: memref<1x32xf32, #tpu.memory_space<vmem>>, %arg3: memref<1x32xf32, #tpu.memory_space<vmem>>, %arg4: memref<1x8x1xf32, #tpu.memory_space<vmem>>, %arg5: memref<1x8x32xf32, #tpu.memory_space<vmem>>) attributes {dimension_semantics = [#tpu.dimension_semantics<parallel>], iteration_bounds = array<i64: 2>, scalar_prefetch = 0 : i64, scratch_operands = 0 : i64, tpu.core_type = #tpu.core_type<tc>, window_params = [{transform_indices = @transform_0, window_bounds = array<i64: 1, 8, 32>}, {pipeline_mode = #tpu.pipeline_mode<synchronous>, transform_indices = @transform_1, window_bounds = array<i64: 1, 32>}, {pipeline_mode = #tpu.pipeline_mode<synchronous>, transform_indices = @transform_2, window_bounds = array<i64: 1, 32>}, {transform_indices = @transform_3, window_bounds = array<i64: 1, 8, 1>}, {transform_indices = @transform_4, window_bounds = array<i64: 1, 8, 32>}]} {
    %c0 = arith.constant 0 : index
    %c0_0 = arith.constant 0 : index
    %c0_1 = arith.constant 0 : index
    %0 = vector.load %arg1[%c0, %c0_0, %c0_1] : memref<1x8x32xf32, #tpu.memory_space<vmem>>, vector<1x8x32xf32>
    %1 = vector.shape_cast %0 : vector<1x8x32xf32> to vector<8x32xf32>
    %c0_2 = arith.constant 0 : index
    %c0_3 = arith.constant 0 : index
    %2 = vector.load %arg2[%c0_2, %c0_3] : memref<1x32xf32, #tpu.memory_space<vmem>>, vector<1x32xf32>
    %c0_4 = arith.constant 0 : index
    %c0_5 = arith.constant 0 : index
    %3 = vector.load %arg3[%c0_4, %c0_5] : memref<1x32xf32, #tpu.memory_space<vmem>>, vector<1x32xf32>
    %cst = arith.constant dense<0.000000e+00> : vector<8xf32>
    %4 = vector.multi_reduction <add>, %1, %cst [1] : vector<8x32xf32> to vector<8xf32>
    %5 = vector.shape_cast %4 : vector<8xf32> to vector<8x1xf32>
    %cst_6 = arith.constant 3.200000e+01 : f32
    %6 = vector.broadcast %cst_6 : f32 to vector<8x1xf32>
    %7 = arith.divf %5, %6 : vector<8x1xf32>
    %8 = vector.broadcast %7 : vector<8x1xf32> to vector<8x32xf32>
    %9 = arith.subf %1, %8 : vector<8x32xf32>
    %10 = arith.mulf %9, %9 : vector<8x32xf32>
    %cst_7 = arith.constant dense<0.000000e+00> : vector<8xf32>
    %11 = vector.multi_reduction <add>, %10, %cst_7 [1] : vector<8x32xf32> to vector<8xf32>
    %12 = vector.shape_cast %11 : vector<8xf32> to vector<8x1xf32>
    %cst_8 = arith.constant 3.200000e+01 : f32
    %13 = vector.broadcast %cst_8 : f32 to vector<8x1xf32>
    %14 = arith.divf %12, %13 : vector<8x1xf32>
    %cst_9 = arith.constant 9.99999974E-6 : f32
    %15 = vector.broadcast %cst_9 : f32 to vector<8x1xf32>
    %16 = arith.addf %14, %15 : vector<8x1xf32>
    %17 = math.rsqrt %16 : vector<8x1xf32>
    %18 = vector.broadcast %17 : vector<8x1xf32> to vector<8x32xf32>
    %19 = arith.mulf %9, %18 : vector<8x32xf32>
    %20 = vector.broadcast %2 : vector<1x32xf32> to vector<8x32xf32>
    %21 = arith.mulf %19, %20 : vector<8x32xf32>
    %22 = vector.broadcast %3 : vector<1x32xf32> to vector<8x32xf32>
    %23 = arith.addf %21, %22 : vector<8x32xf32>
    %c0_10 = arith.constant 0 : index
    %c0_11 = arith.constant 0 : index
    %c0_12 = arith.constant 0 : index
    %24 = vector.load %arg4[%c0_10, %c0_11, %c0_12] : memref<1x8x1xf32, #tpu.memory_space<vmem>>, vector<1x8x1xf32>
    %25 = vector.shape_cast %24 : vector<1x8x1xf32> to vector<8x1xf32>
    %26 = vector.broadcast %25 : vector<8x1xf32> to vector<8x32xf32>
    %27 = arith.mulf %23, %26 : vector<8x32xf32>
    %c0_13 = arith.constant 0 : index
    %c0_14 = arith.constant 0 : index
    %c0_15 = arith.constant 0 : index
    %28 = vector.load %arg5[%c0_13, %c0_14, %c0_15] : memref<1x8x32xf32, #tpu.memory_space<vmem>>, vector<1x8x32xf32>
    %29 = vector.shape_cast %28 : vector<1x8x32xf32> to vector<8x32xf32>
    %30 = vector.shape_cast %27 : vector<8x32xf32> to vector<1x8x32xf32>
    tpu.vector_store %arg5[%c0_13, %c0_14, %c0_15], %30 {strides = array<i32>} : memref<1x8x32xf32, #tpu.memory_space<vmem>>, vector<1x8x32xf32>,
    return
  }
  func.func @transform_0(%arg0: i32) -> (i32, i32, i32) {
    %c0_i32 = arith.constant 0 : i32
    %c0_i32_0 = arith.constant 0 : i32
    %c0_i32_1 = arith.constant 0 : i32
    return %arg0, %c0_i32, %c0_i32_0 : i32, i32, i32
  }
  func.func @transform_1(%arg0: i32) -> (i32, i32) {
    %c0_i32 = arith.constant 0 : i32
    %c0_i32_0 = arith.constant 0 : i32
    %c0_i32_1 = arith.constant 0 : i32
    return %c0_i32, %c0_i32_0 : i32, i32
  }
  func.func @transform_2(%arg0: i32) -> (i32, i32) {
    %c0_i32 = arith.constant 0 : i32
    %c0_i32_0 = arith.constant 0 : i32
    %c0_i32_1 = arith.constant 0 : i32
    return %c0_i32, %c0_i32_0 : i32, i32
  }
  func.func @transform_3(%arg0: i32) -> (i32, i32, i32) {
    %c0_i32 = arith.constant 0 : i32
    %c0_i32_0 = arith.constant 0 : i32
    %c0_i32_1 = arith.constant 0 : i32
    return %arg0, %c0_i32, %c0_i32_0 : i32, i32, i32
  }
  func.func @transform_4(%arg0: i32) -> (i32, i32, i32) {
    %c0_i32 = arith.constant 0 : i32
    %c0_i32_0 = arith.constant 0 : i32
    %c0_i32_1 = arith.constant 0 : i32
    return %arg0, %c0_i32, %c0_i32_0 : i32, i32, i32
  }
}

module attributes {stable_mosaic.version = 11 : i64} {
  func.func @_layer_kernel(%arg0: i32, %arg1: i32, %arg2: memref<1x8x32xf32, #tpu.memory_space<vmem>>, %arg3: memref<1x2x8x8xf32, #tpu.memory_space<vmem>>, %arg4: memref<1x32xf32, #tpu.memory_space<vmem>>, %arg5: memref<1x32xf32, #tpu.memory_space<vmem>>, %arg6: memref<2x32x8xf32, #tpu.memory_space<vmem>>, %arg7: memref<2x1x8xf32, #tpu.memory_space<vmem>>, %arg8: memref<2x32x8xf32, #tpu.memory_space<vmem>>, %arg9: memref<2x1x8xf32, #tpu.memory_space<vmem>>, %arg10: memref<2x32x8xf32, #tpu.memory_space<vmem>>, %arg11: memref<2x1x8xf32, #tpu.memory_space<vmem>>, %arg12: memref<2x8x32xf32, #tpu.memory_space<vmem>>, %arg13: memref<1x32xf32, #tpu.memory_space<vmem>>, %arg14: memref<1x32xf32, #tpu.memory_space<vmem>>, %arg15: memref<1x32xf32, #tpu.memory_space<vmem>>, %arg16: memref<32x64xf32, #tpu.memory_space<vmem>>, %arg17: memref<1x64xf32, #tpu.memory_space<vmem>>, %arg18: memref<64x32xf32, #tpu.memory_space<vmem>>, %arg19: memref<1x32xf32, #tpu.memory_space<vmem>>, %arg20: memref<1x8x32xf32, #tpu.memory_space<vmem>>, %arg21: memref<1x2x8x8xf32, #tpu.memory_space<vmem>>, %arg22: memref<8x32xf32, #tpu.memory_space<vmem>>, %arg23: memref<8x32xf32, #tpu.memory_space<vmem>>) attributes {dimension_semantics = [#tpu.dimension_semantics<parallel>, #tpu.dimension_semantics<arbitrary>], iteration_bounds = array<i64: 2, 2>, scalar_prefetch = 0 : i64, scratch_operands = 2 : i64, tpu.core_type = #tpu.core_type<tc>, window_params = [{transform_indices = @transform_0, window_bounds = array<i64: 1, 8, 32>}, {transform_indices = @transform_1, window_bounds = array<i64: 1, 2, 8, 8>}, {pipeline_mode = #tpu.pipeline_mode<synchronous>, transform_indices = @transform_2, window_bounds = array<i64: 1, 32>}, {pipeline_mode = #tpu.pipeline_mode<synchronous>, transform_indices = @transform_3, window_bounds = array<i64: 1, 32>}, {transform_indices = @transform_4, window_bounds = array<i64: 2, 32, 8>}, {transform_indices = @transform_5, window_bounds = array<i64: 2, 1, 8>}, {transform_indices = @transform_6, window_bounds = array<i64: 2, 32, 8>}, {transform_indices = @transform_7, window_bounds = array<i64: 2, 1, 8>}, {transform_indices = @transform_8, window_bounds = array<i64: 2, 32, 8>}, {transform_indices = @transform_9, window_bounds = array<i64: 2, 1, 8>}, {transform_indices = @transform_10, window_bounds = array<i64: 2, 8, 32>}, {pipeline_mode = #tpu.pipeline_mode<synchronous>, transform_indices = @transform_11, window_bounds = array<i64: 1, 32>}, {pipeline_mode = #tpu.pipeline_mode<synchronous>, transform_indices = @transform_12, window_bounds = array<i64: 1, 32>}, {pipeline_mode = #tpu.pipeline_mode<synchronous>, transform_indices = @transform_13, window_bounds = array<i64: 1, 32>}, {pipeline_mode = #tpu.pipeline_mode<synchronous>, transform_indices = @transform_14, window_bounds = array<i64: 32, 64>}, {pipeline_mode = #tpu.pipeline_mode<synchronous>, transform_indices = @transform_15, window_bounds = array<i64: 1, 64>}, {pipeline_mode = #tpu.pipeline_mode<synchronous>, transform_indices = @transform_16, window_bounds = array<i64: 64, 32>}, {pipeline_mode = #tpu.pipeline_mode<synchronous>, transform_indices = @transform_17, window_bounds = array<i64: 1, 32>}, {transform_indices = @transform_18, window_bounds = array<i64: 1, 8, 32>}, {transform_indices = @transform_19, window_bounds = array<i64: 1, 2, 8, 8>}]} {
    %c0_i32 = arith.constant 0 : i32
    %0 = arith.cmpi eq, %arg1, %c0_i32 : i32
    %1 = arith.extui %0 : i1 to i32
    %c0_i32_0 = arith.constant 0 : i32
    %2 = arith.cmpi ne, %1, %c0_i32_0 : i32
    scf.if %2 {
      %c0_52 = arith.constant 0 : index
      %c0_53 = arith.constant 0 : index
      %c0_54 = arith.constant 0 : index
      %69 = vector.load %arg2[%c0_52, %c0_53, %c0_54] : memref<1x8x32xf32, #tpu.memory_space<vmem>>, vector<1x8x32xf32>
      %70 = vector.shape_cast %69 : vector<1x8x32xf32> to vector<8x32xf32>
      %c0_55 = arith.constant 0 : index
      %c0_56 = arith.constant 0 : index
      %71 = vector.load %arg4[%c0_55, %c0_56] : memref<1x32xf32, #tpu.memory_space<vmem>>, vector<1x32xf32>
      %c0_57 = arith.constant 0 : index
      %c0_58 = arith.constant 0 : index
      %72 = vector.load %arg5[%c0_57, %c0_58] : memref<1x32xf32, #tpu.memory_space<vmem>>, vector<1x32xf32>
      %cst_59 = arith.constant dense<0.000000e+00> : vector<8xf32>
      %73 = vector.multi_reduction <add>, %70, %cst_59 [1] : vector<8x32xf32> to vector<8xf32>
      %74 = vector.shape_cast %73 : vector<8xf32> to vector<8x1xf32>
      %cst_60 = arith.constant 3.200000e+01 : f32
      %75 = vector.broadcast %cst_60 : f32 to vector<8x1xf32>
      %76 = arith.divf %74, %75 : vector<8x1xf32>
      %77 = vector.broadcast %76 : vector<8x1xf32> to vector<8x32xf32>
      %78 = arith.subf %70, %77 : vector<8x32xf32>
      %79 = arith.mulf %78, %78 : vector<8x32xf32>
      %cst_61 = arith.constant dense<0.000000e+00> : vector<8xf32>
      %80 = vector.multi_reduction <add>, %79, %cst_61 [1] : vector<8x32xf32> to vector<8xf32>
      %81 = vector.shape_cast %80 : vector<8xf32> to vector<8x1xf32>
      %cst_62 = arith.constant 3.200000e+01 : f32
      %82 = vector.broadcast %cst_62 : f32 to vector<8x1xf32>
      %83 = arith.divf %81, %82 : vector<8x1xf32>
      %cst_63 = arith.constant 9.99999974E-6 : f32
      %84 = vector.broadcast %cst_63 : f32 to vector<8x1xf32>
      %85 = arith.addf %83, %84 : vector<8x1xf32>
      %86 = math.rsqrt %85 : vector<8x1xf32>
      %87 = vector.broadcast %86 : vector<8x1xf32> to vector<8x32xf32>
      %88 = arith.mulf %78, %87 : vector<8x32xf32>
      %89 = vector.broadcast %71 : vector<1x32xf32> to vector<8x32xf32>
      %90 = arith.mulf %88, %89 : vector<8x32xf32>
      %91 = vector.broadcast %72 : vector<1x32xf32> to vector<8x32xf32>
      %92 = arith.addf %90, %91 : vector<8x32xf32>
      %c0_64 = arith.constant 0 : index
      %c0_65 = arith.constant 0 : index
      %93 = vector.load %arg22[%c0_64, %c0_65] : memref<8x32xf32, #tpu.memory_space<vmem>>, vector<8x32xf32>
      tpu.vector_store %arg22[%c0_64, %c0_65], %92 {strides = array<i32>} : memref<8x32xf32, #tpu.memory_space<vmem>>, vector<8x32xf32>,
      %c0_66 = arith.constant 0 : index
      %c0_67 = arith.constant 0 : index
      %94 = vector.load %arg13[%c0_66, %c0_67] : memref<1x32xf32, #tpu.memory_space<vmem>>, vector<1x32xf32>
      %95 = vector.broadcast %94 : vector<1x32xf32> to vector<8x32xf32>
      %96 = arith.addf %70, %95 : vector<8x32xf32>
      %c0_68 = arith.constant 0 : index
      %c0_69 = arith.constant 0 : index
      %97 = vector.load %arg23[%c0_68, %c0_69] : memref<8x32xf32, #tpu.memory_space<vmem>>, vector<8x32xf32>
      tpu.vector_store %arg23[%c0_68, %c0_69], %96 {strides = array<i32>} : memref<8x32xf32, #tpu.memory_space<vmem>>, vector<8x32xf32>,
    } else {
    }
    %c0 = arith.constant 0 : index
    %c0_1 = arith.constant 0 : index
    %3 = vector.load %arg22[%c0, %c0_1] : memref<8x32xf32, #tpu.memory_space<vmem>>, vector<8x32xf32>
    %4 = arith.truncf %3 : vector<8x32xf32> to vector<8x32xbf16>
    %5 = vector.shape_cast %4 : vector<8x32xbf16> to vector<1x8x32xbf16>
    %6 = vector.shape_cast %5 : vector<1x8x32xbf16> to vector<1x8x32xbf16>
    %7 = vector.broadcast %6 : vector<1x8x32xbf16> to vector<2x8x32xbf16>
    %c0_2 = arith.constant 0 : index
    %c0_3 = arith.constant 0 : index
    %c0_4 = arith.constant 0 : index
    %8 = vector.load %arg6[%c0_2, %c0_3, %c0_4] : memref<2x32x8xf32, #tpu.memory_space<vmem>>, vector<2x32x8xf32>
    %9 = arith.truncf %8 : vector<2x32x8xf32> to vector<2x32x8xbf16>
    %c0_5 = arith.constant 0 : index
    %c0_6 = arith.constant 0 : index
    %c0_7 = arith.constant 0 : index
    %10 = vector.load %arg8[%c0_5, %c0_6, %c0_7] : memref<2x32x8xf32, #tpu.memory_space<vmem>>, vector<2x32x8xf32>
    %11 = arith.truncf %10 : vector<2x32x8xf32> to vector<2x32x8xbf16>
    %c0_8 = arith.constant 0 : index
    %c0_9 = arith.constant 0 : index
    %c0_10 = arith.constant 0 : index
    %12 = vector.load %arg10[%c0_8, %c0_9, %c0_10] : memref<2x32x8xf32, #tpu.memory_space<vmem>>, vector<2x32x8xf32>
    %13 = arith.truncf %12 : vector<2x32x8xf32> to vector<2x32x8xbf16>
    "tpu.trace_start"() <{level = 10 : i32, message = "htd,hde->hte"}> : () -> ()
    %cst = arith.constant dense<0.000000e+00> : vector<2x8x8xf32>
    %14 = tpu.matmul %7, %9, %cst {dimension_numbers = #tpu.dot_dimension_numbers<[2], [1], [1], [2], [0, 0, 0, 1, 1, 2], [0], [0]>} : vector<2x8x32xbf16>, vector<2x32x8xbf16>, vector<2x8x8xf32> -> vector<2x8x8xf32>
    "tpu.trace_stop"() : () -> ()
    %c0_11 = arith.constant 0 : index
    %c0_12 = arith.constant 0 : index
    %c0_13 = arith.constant 0 : index
    %15 = vector.load %arg7[%c0_11, %c0_12, %c0_13] : memref<2x1x8xf32, #tpu.memory_space<vmem>>, vector<2x1x8xf32>
    %16 = vector.broadcast %15 : vector<2x1x8xf32> to vector<2x8x8xf32>
    %17 = arith.addf %14, %16 : vector<2x8x8xf32>
    "tpu.trace_start"() <{level = 10 : i32, message = "htd,hde->hte"}> : () -> ()
    %cst_14 = arith.constant dense<0.000000e+00> : vector<2x8x8xf32>
    %18 = tpu.matmul %7, %11, %cst_14 {dimension_numbers = #tpu.dot_dimension_numbers<[2], [1], [1], [2], [0, 0, 0, 1, 1, 2], [0], [0]>} : vector<2x8x32xbf16>, vector<2x32x8xbf16>, vector<2x8x8xf32> -> vector<2x8x8xf32>
    "tpu.trace_stop"() : () -> ()
    %c0_15 = arith.constant 0 : index
    %c0_16 = arith.constant 0 : index
    %c0_17 = arith.constant 0 : index
    %19 = vector.load %arg9[%c0_15, %c0_16, %c0_17] : memref<2x1x8xf32, #tpu.memory_space<vmem>>, vector<2x1x8xf32>
    %20 = vector.broadcast %19 : vector<2x1x8xf32> to vector<2x8x8xf32>
    %21 = arith.addf %18, %20 : vector<2x8x8xf32>
    "tpu.trace_start"() <{level = 10 : i32, message = "htd,hde->hte"}> : () -> ()
    %cst_18 = arith.constant dense<0.000000e+00> : vector<2x8x8xf32>
    %22 = tpu.matmul %7, %13, %cst_18 {dimension_numbers = #tpu.dot_dimension_numbers<[2], [1], [1], [2], [0, 0, 0, 1, 1, 2], [0], [0]>} : vector<2x8x32xbf16>, vector<2x32x8xbf16>, vector<2x8x8xf32> -> vector<2x8x8xf32>
    "tpu.trace_stop"() : () -> ()
    %c0_19 = arith.constant 0 : index
    %c0_20 = arith.constant 0 : index
    %c0_21 = arith.constant 0 : index
    %23 = vector.load %arg11[%c0_19, %c0_20, %c0_21] : memref<2x1x8xf32, #tpu.memory_space<vmem>>, vector<2x1x8xf32>
    %24 = vector.broadcast %23 : vector<2x1x8xf32> to vector<2x8x8xf32>
    %25 = arith.addf %22, %24 : vector<2x8x8xf32>
    %cst_22 = arith.constant 0.353553385 : f32
    %26 = vector.broadcast %cst_22 : f32 to vector<2x8x8xf32>
    %27 = arith.mulf %17, %26 : vector<2x8x8xf32>
    %28 = arith.truncf %27 : vector<2x8x8xf32> to vector<2x8x8xbf16>
    %29 = arith.truncf %21 : vector<2x8x8xf32> to vector<2x8x8xbf16>
    "tpu.trace_start"() <{level = 10 : i32, message = "hqe,hke->hqk"}> : () -> ()
    %cst_23 = arith.constant dense<0.000000e+00> : vector<2x8x8xf32>
    %30 = tpu.matmul %28, %29, %cst_23 {dimension_numbers = #tpu.dot_dimension_numbers<[2], [2], [1], [1], [0, 0, 0, 1, 1, 1], [0], [0]>} : vector<2x8x8xbf16>, vector<2x8x8xbf16>, vector<2x8x8xf32> -> vector<2x8x8xf32>
    "tpu.trace_stop"() : () -> ()
    %c0_24 = arith.constant 0 : index
    %c0_25 = arith.constant 0 : index
    %c0_26 = arith.constant 0 : index
    %c0_27 = arith.constant 0 : index
    %31 = vector.load %arg3[%c0_24, %c0_25, %c0_26, %c0_27] : memref<1x2x8x8xf32, #tpu.memory_space<vmem>>, vector<1x2x8x8xf32>
    %32 = vector.shape_cast %31 : vector<1x2x8x8xf32> to vector<2x8x8xf32>
    %33 = arith.addf %30, %32 : vector<2x8x8xf32>
    %c0_28 = arith.constant 0 : index
    %c0_29 = arith.constant 0 : index
    %c0_30 = arith.constant 0 : index
    %c0_31 = arith.constant 0 : index
    %34 = vector.load %arg21[%c0_28, %c0_29, %c0_30, %c0_31] : memref<1x2x8x8xf32, #tpu.memory_space<vmem>>, vector<1x2x8x8xf32>
    %35 = vector.shape_cast %34 : vector<1x2x8x8xf32> to vector<2x8x8xf32>
    %36 = vector.shape_cast %33 : vector<2x8x8xf32> to vector<1x2x8x8xf32>
    tpu.vector_store %arg21[%c0_28, %c0_29, %c0_30, %c0_31], %36 {strides = array<i32>} : memref<1x2x8x8xf32, #tpu.memory_space<vmem>>, vector<1x2x8x8xf32>,
    %cst_32 = arith.constant dense<0xFF800000> : vector<2x8xf32>
    %37 = vector.multi_reduction <maximumf>, %33, %cst_32 [2] : vector<2x8x8xf32> to vector<2x8xf32>
    %38 = vector.shape_cast %37 : vector<2x8xf32> to vector<2x8x1xf32>
    %cst_33 = arith.constant -1.000000e+30 : f32
    %39 = vector.broadcast %cst_33 : f32 to vector<2x8x1xf32>
    %40 = arith.maximumf %38, %39 : vector<2x8x1xf32>
    %41 = vector.broadcast %40 : vector<2x8x1xf32> to vector<2x8x8xf32>
    %42 = arith.subf %33, %41 : vector<2x8x8xf32>
    %43 = math.exp %42 : vector<2x8x8xf32>
    %cst_34 = arith.constant dense<0.000000e+00> : vector<2x8xf32>
    %44 = vector.multi_reduction <add>, %43, %cst_34 [2] : vector<2x8x8xf32> to vector<2x8xf32>
    %45 = vector.shape_cast %44 : vector<2x8xf32> to vector<2x8x1xf32>
    %cst_35 = arith.constant 9.99999968E-21 : f32
    %46 = vector.broadcast %cst_35 : f32 to vector<2x8x1xf32>
    %47 = arith.maximumf %45, %46 : vector<2x8x1xf32>
    %48 = tpu.reciprocal %47 {approx = true} : vector<2x8x1xf32> -> vector<2x8x1xf32>
    %49 = vector.broadcast %48 : vector<2x8x1xf32> to vector<2x8x8xf32>
    %50 = arith.mulf %43, %49 : vector<2x8x8xf32>
    %51 = arith.truncf %50 : vector<2x8x8xf32> to vector<2x8x8xbf16>
    %52 = arith.truncf %25 : vector<2x8x8xf32> to vector<2x8x8xbf16>
    "tpu.trace_start"() <{level = 10 : i32, message = "hqk,hke->hqe"}> : () -> ()
    %cst_36 = arith.constant dense<0.000000e+00> : vector<2x8x8xf32>
    %53 = tpu.matmul %51, %52, %cst_36 {dimension_numbers = #tpu.dot_dimension_numbers<[2], [1], [1], [2], [0, 0, 0, 1, 1, 2], [0], [0]>} : vector<2x8x8xbf16>, vector<2x8x8xbf16>, vector<2x8x8xf32> -> vector<2x8x8xf32>
    "tpu.trace_stop"() : () -> ()
    %54 = arith.truncf %53 : vector<2x8x8xf32> to vector<2x8x8xbf16>
    %c0_37 = arith.constant 0 : index
    %c0_38 = arith.constant 0 : index
    %c0_39 = arith.constant 0 : index
    %55 = vector.load %arg12[%c0_37, %c0_38, %c0_39] : memref<2x8x32xf32, #tpu.memory_space<vmem>>, vector<2x8x32xf32>
    %56 = arith.truncf %55 : vector<2x8x32xf32> to vector<2x8x32xbf16>
    "tpu.trace_start"() <{level = 10 : i32, message = "hqe,hed->hqd"}> : () -> ()
    %cst_40 = arith.constant dense<0.000000e+00> : vector<2x8x32xf32>
    %57 = tpu.matmul %54, %56, %cst_40 {dimension_numbers = #tpu.dot_dimension_numbers<[2], [1], [1], [2], [0, 0, 0, 1, 1, 2], [0], [0]>} : vector<2x8x8xbf16>, vector<2x8x32xbf16>, vector<2x8x32xf32> -> vector<2x8x32xf32>
    "tpu.trace_stop"() : () -> ()
    %c0_41 = arith.constant 0 : index
    %c0_42 = arith.constant 0 : index
    %58 = vector.load %arg23[%c0_41, %c0_42] : memref<8x32xf32, #tpu.memory_space<vmem>>, vector<8x32xf32>
    %cst_43 = arith.constant dense<0.000000e+00> : vector<8x32xf32>
    %59 = vector.multi_reduction <add>, %57, %cst_43 [0] : vector<2x8x32xf32> to vector<8x32xf32>
    %60 = arith.addf %58, %59 : vector<8x32xf32>
    %c0_44 = arith.constant 0 : index
    %c0_45 = arith.constant 0 : index
    %61 = vector.load %arg23[%c0_44, %c0_45] : memref<8x32xf32, #tpu.memory_space<vmem>>, vector<8x32xf32>
    tpu.vector_store %arg23[%c0_44, %c0_45], %60 {strides = array<i32>} : memref<8x32xf32, #tpu.memory_space<vmem>>, vector<8x32xf32>,
    %c0_46 = arith.constant 0 : index
    %c0_47 = arith.constant 0 : index
    %62 = vector.load %arg23[%c0_46, %c0_47] : memref<8x32xf32, #tpu.memory_space<vmem>>, vector<8x32xf32>
    %c0_48 = arith.constant 0 : index
    %c0_49 = arith.constant 0 : index
    %c0_50 = arith.constant 0 : index
    %63 = vector.load %arg20[%c0_48, %c0_49, %c0_50] : memref<1x8x32xf32, #tpu.memory_space<vmem>>, vector<1x8x32xf32>
    %64 = vector.shape_cast %63 : vector<1x8x32xf32> to vector<8x32xf32>
    %65 = vector.shape_cast %62 : vector<8x32xf32> to vector<1x8x32xf32>
    tpu.vector_store %arg20[%c0_48, %c0_49, %c0_50], %65 {strides = array<i32>} : memref<1x8x32xf32, #tpu.memory_space<vmem>>, vector<1x8x32xf32>,
    %c1_i32 = arith.constant 1 : i32
    %66 = arith.cmpi eq, %arg1, %c1_i32 : i32
    %67 = arith.extui %66 : i1 to i32
    %c0_i32_51 = arith.constant 0 : i32
    %68 = arith.cmpi ne, %67, %c0_i32_51 : i32
    scf.if %68 {
      %c0_52 = arith.constant 0 : index
      %c0_53 = arith.constant 0 : index
      %69 = vector.load %arg23[%c0_52, %c0_53] : memref<8x32xf32, #tpu.memory_space<vmem>>, vector<8x32xf32>
      %c0_54 = arith.constant 0 : index
      %c0_55 = arith.constant 0 : index
      %70 = vector.load %arg14[%c0_54, %c0_55] : memref<1x32xf32, #tpu.memory_space<vmem>>, vector<1x32xf32>
      %c0_56 = arith.constant 0 : index
      %c0_57 = arith.constant 0 : index
      %71 = vector.load %arg15[%c0_56, %c0_57] : memref<1x32xf32, #tpu.memory_space<vmem>>, vector<1x32xf32>
      %cst_58 = arith.constant dense<0.000000e+00> : vector<8xf32>
      %72 = vector.multi_reduction <add>, %69, %cst_58 [1] : vector<8x32xf32> to vector<8xf32>
      %73 = vector.shape_cast %72 : vector<8xf32> to vector<8x1xf32>
      %cst_59 = arith.constant 3.200000e+01 : f32
      %74 = vector.broadcast %cst_59 : f32 to vector<8x1xf32>
      %75 = arith.divf %73, %74 : vector<8x1xf32>
      %76 = vector.broadcast %75 : vector<8x1xf32> to vector<8x32xf32>
      %77 = arith.subf %69, %76 : vector<8x32xf32>
      %78 = arith.mulf %77, %77 : vector<8x32xf32>
      %cst_60 = arith.constant dense<0.000000e+00> : vector<8xf32>
      %79 = vector.multi_reduction <add>, %78, %cst_60 [1] : vector<8x32xf32> to vector<8xf32>
      %80 = vector.shape_cast %79 : vector<8xf32> to vector<8x1xf32>
      %cst_61 = arith.constant 3.200000e+01 : f32
      %81 = vector.broadcast %cst_61 : f32 to vector<8x1xf32>
      %82 = arith.divf %80, %81 : vector<8x1xf32>
      %cst_62 = arith.constant 9.99999974E-6 : f32
      %83 = vector.broadcast %cst_62 : f32 to vector<8x1xf32>
      %84 = arith.addf %82, %83 : vector<8x1xf32>
      %85 = math.rsqrt %84 : vector<8x1xf32>
      %86 = vector.broadcast %85 : vector<8x1xf32> to vector<8x32xf32>
      %87 = arith.mulf %77, %86 : vector<8x32xf32>
      %88 = vector.broadcast %70 : vector<1x32xf32> to vector<8x32xf32>
      %89 = arith.mulf %87, %88 : vector<8x32xf32>
      %90 = vector.broadcast %71 : vector<1x32xf32> to vector<8x32xf32>
      %91 = arith.addf %89, %90 : vector<8x32xf32>
      %92 = arith.truncf %91 : vector<8x32xf32> to vector<8x32xbf16>
      %c0_63 = arith.constant 0 : index
      %c0_64 = arith.constant 0 : index
      %93 = vector.load %arg16[%c0_63, %c0_64] : memref<32x64xf32, #tpu.memory_space<vmem>>, vector<32x64xf32>
      %94 = arith.truncf %93 : vector<32x64xf32> to vector<32x64xbf16>
      %cst_65 = arith.constant dense<0.000000e+00> : vector<8x64xf32>
      %95 = tpu.matmul %92, %94, %cst_65 {dimension_numbers = #tpu.dot_dimension_numbers<[1], [0], [0], [1], [0, 0, 1, 1], [], []>} : vector<8x32xbf16>, vector<32x64xbf16>, vector<8x64xf32> -> vector<8x64xf32>
      %c0_66 = arith.constant 0 : index
      %c0_67 = arith.constant 0 : index
      %96 = vector.load %arg17[%c0_66, %c0_67] : memref<1x64xf32, #tpu.memory_space<vmem>>, vector<1x64xf32>
      %97 = vector.broadcast %96 : vector<1x64xf32> to vector<8x64xf32>
      %98 = arith.addf %95, %97 : vector<8x64xf32>
      %cst_68 = arith.constant 5.000000e-01 : f32
      %99 = vector.broadcast %cst_68 : f32 to vector<8x64xf32>
      %100 = arith.mulf %99, %98 : vector<8x64xf32>
      %cst_69 = arith.constant 0.707106769 : f32
      %101 = vector.broadcast %cst_69 : f32 to vector<8x64xf32>
      %102 = arith.mulf %98, %101 : vector<8x64xf32>
      %103 = math.absf %102 : vector<8x64xf32>
      %cst_70 = arith.constant 0.327591091 : f32
      %104 = vector.broadcast %cst_70 : f32 to vector<8x64xf32>
      %105 = arith.mulf %104, %103 : vector<8x64xf32>
      %cst_71 = arith.constant 1.000000e+00 : f32
      %106 = vector.broadcast %cst_71 : f32 to vector<8x64xf32>
      %107 = arith.addf %106, %105 : vector<8x64xf32>
      %108 = tpu.reciprocal %107 {approx = true} : vector<8x64xf32> -> vector<8x64xf32>
      %cst_72 = arith.constant 1.06140542 : f32
      %109 = vector.broadcast %cst_72 : f32 to vector<8x64xf32>
      %110 = arith.mulf %109, %108 : vector<8x64xf32>
      %cst_73 = arith.constant -1.45315206 : f32
      %111 = vector.broadcast %cst_73 : f32 to vector<8x64xf32>
      %112 = arith.addf %110, %111 : vector<8x64xf32>
      %113 = arith.mulf %112, %108 : vector<8x64xf32>
      %cst_74 = arith.constant 1.42141378 : f32
      %114 = vector.broadcast %cst_74 : f32 to vector<8x64xf32>
      %115 = arith.addf %113, %114 : vector<8x64xf32>
      %116 = arith.mulf %115, %108 : vector<8x64xf32>
      %cst_75 = arith.constant -0.284496725 : f32
      %117 = vector.broadcast %cst_75 : f32 to vector<8x64xf32>
      %118 = arith.addf %116, %117 : vector<8x64xf32>
      %119 = arith.mulf %118, %108 : vector<8x64xf32>
      %cst_76 = arith.constant 0.254829586 : f32
      %120 = vector.broadcast %cst_76 : f32 to vector<8x64xf32>
      %121 = arith.addf %119, %120 : vector<8x64xf32>
      %122 = arith.mulf %121, %108 : vector<8x64xf32>
      %cst_77 = arith.constant 0.000000e+00 : f32
      %123 = vector.broadcast %cst_77 : f32 to vector<8x64xf32>
      %124 = arith.subf %123, %103 : vector<8x64xf32>
      %125 = arith.mulf %124, %103 : vector<8x64xf32>
      %126 = math.exp %125 : vector<8x64xf32>
      %127 = arith.mulf %122, %126 : vector<8x64xf32>
      %cst_78 = arith.constant 1.000000e+00 : f32
      %128 = vector.broadcast %cst_78 : f32 to vector<8x64xf32>
      %129 = arith.subf %128, %127 : vector<8x64xf32>
      %cst_79 = arith.constant 0.000000e+00 : f32
      %130 = vector.broadcast %cst_79 : f32 to vector<8x64xf32>
      %131 = arith.cmpf olt, %102, %130 : vector<8x64xf32>
      %cst_80 = arith.constant 0.000000e+00 : f32
      %132 = vector.broadcast %cst_80 : f32 to vector<8x64xf32>
      %133 = arith.subf %132, %129 : vector<8x64xf32>
      %134 = arith.select %131, %133, %129 : vector<8x64xi1>, vector<8x64xf32>
      %cst_81 = arith.constant 1.000000e+00 : f32
      %135 = vector.broadcast %cst_81 : f32 to vector<8x64xf32>
      %136 = arith.addf %135, %134 : vector<8x64xf32>
      %137 = arith.mulf %100, %136 : vector<8x64xf32>
      %138 = arith.truncf %137 : vector<8x64xf32> to vector<8x64xbf16>
      %c0_82 = arith.constant 0 : index
      %c0_83 = arith.constant 0 : index
      %139 = vector.load %arg18[%c0_82, %c0_83] : memref<64x32xf32, #tpu.memory_space<vmem>>, vector<64x32xf32>
      %140 = arith.truncf %139 : vector<64x32xf32> to vector<64x32xbf16>
      %cst_84 = arith.constant dense<0.000000e+00> : vector<8x32xf32>
      %141 = tpu.matmul %138, %140, %cst_84 {dimension_numbers = #tpu.dot_dimension_numbers<[1], [0], [0], [1], [0, 0, 1, 1], [], []>} : vector<8x64xbf16>, vector<64x32xbf16>, vector<8x32xf32> -> vector<8x32xf32>
      %142 = arith.addf %69, %141 : vector<8x32xf32>
      %c0_85 = arith.constant 0 : index
      %c0_86 = arith.constant 0 : index
      %143 = vector.load %arg19[%c0_85, %c0_86] : memref<1x32xf32, #tpu.memory_space<vmem>>, vector<1x32xf32>
      %144 = vector.broadcast %143 : vector<1x32xf32> to vector<8x32xf32>
      %145 = arith.addf %142, %144 : vector<8x32xf32>
      %c0_87 = arith.constant 0 : index
      %c0_88 = arith.constant 0 : index
      %c0_89 = arith.constant 0 : index
      %146 = vector.load %arg20[%c0_87, %c0_88, %c0_89] : memref<1x8x32xf32, #tpu.memory_space<vmem>>, vector<1x8x32xf32>
      %147 = vector.shape_cast %146 : vector<1x8x32xf32> to vector<8x32xf32>
      %148 = vector.shape_cast %145 : vector<8x32xf32> to vector<1x8x32xf32>
      tpu.vector_store %arg20[%c0_87, %c0_88, %c0_89], %148 {strides = array<i32>} : memref<1x8x32xf32, #tpu.memory_space<vmem>>, vector<1x8x32xf32>,
    } else {
    }
    return
  }
  func.func @transform_0(%arg0: i32, %arg1: i32) -> (i32, i32, i32) {
    %c0_i32 = arith.constant 0 : i32
    %c0_i32_0 = arith.constant 0 : i32
    %c0_i32_1 = arith.constant 0 : i32
    return %arg0, %c0_i32, %c0_i32_0 : i32, i32, i32
  }
  func.func @transform_1(%arg0: i32, %arg1: i32) -> (i32, i32, i32, i32) {
    %c0_i32 = arith.constant 0 : i32
    %c0_i32_0 = arith.constant 0 : i32
    %c0_i32_1 = arith.constant 0 : i32
    return %arg0, %arg1, %c0_i32, %c0_i32_0 : i32, i32, i32, i32
  }
  func.func @transform_2(%arg0: i32, %arg1: i32) -> (i32, i32) {
    %c0_i32 = arith.constant 0 : i32
    %c0_i32_0 = arith.constant 0 : i32
    %c0_i32_1 = arith.constant 0 : i32
    return %c0_i32, %c0_i32_0 : i32, i32
  }
  func.func @transform_3(%arg0: i32, %arg1: i32) -> (i32, i32) {
    %c0_i32 = arith.constant 0 : i32
    %c0_i32_0 = arith.constant 0 : i32
    %c0_i32_1 = arith.constant 0 : i32
    return %c0_i32, %c0_i32_0 : i32, i32
  }
  func.func @transform_4(%arg0: i32, %arg1: i32) -> (i32, i32, i32) {
    %c0_i32 = arith.constant 0 : i32
    %c0_i32_0 = arith.constant 0 : i32
    %c0_i32_1 = arith.constant 0 : i32
    return %arg1, %c0_i32, %c0_i32_0 : i32, i32, i32
  }
  func.func @transform_5(%arg0: i32, %arg1: i32) -> (i32, i32, i32) {
    %c0_i32 = arith.constant 0 : i32
    %c0_i32_0 = arith.constant 0 : i32
    %c0_i32_1 = arith.constant 0 : i32
    return %arg1, %c0_i32, %c0_i32_0 : i32, i32, i32
  }
  func.func @transform_6(%arg0: i32, %arg1: i32) -> (i32, i32, i32) {
    %c0_i32 = arith.constant 0 : i32
    %c0_i32_0 = arith.constant 0 : i32
    %c0_i32_1 = arith.constant 0 : i32
    return %arg1, %c0_i32, %c0_i32_0 : i32, i32, i32
  }
  func.func @transform_7(%arg0: i32, %arg1: i32) -> (i32, i32, i32) {
    %c0_i32 = arith.constant 0 : i32
    %c0_i32_0 = arith.constant 0 : i32
    %c0_i32_1 = arith.constant 0 : i32
    return %arg1, %c0_i32, %c0_i32_0 : i32, i32, i32
  }
  func.func @transform_8(%arg0: i32, %arg1: i32) -> (i32, i32, i32) {
    %c0_i32 = arith.constant 0 : i32
    %c0_i32_0 = arith.constant 0 : i32
    %c0_i32_1 = arith.constant 0 : i32
    return %arg1, %c0_i32, %c0_i32_0 : i32, i32, i32
  }
  func.func @transform_9(%arg0: i32, %arg1: i32) -> (i32, i32, i32) {
    %c0_i32 = arith.constant 0 : i32
    %c0_i32_0 = arith.constant 0 : i32
    %c0_i32_1 = arith.constant 0 : i32
    return %arg1, %c0_i32, %c0_i32_0 : i32, i32, i32
  }
  func.func @transform_10(%arg0: i32, %arg1: i32) -> (i32, i32, i32) {
    %c0_i32 = arith.constant 0 : i32
    %c0_i32_0 = arith.constant 0 : i32
    %c0_i32_1 = arith.constant 0 : i32
    return %arg1, %c0_i32, %c0_i32_0 : i32, i32, i32
  }
  func.func @transform_11(%arg0: i32, %arg1: i32) -> (i32, i32) {
    %c0_i32 = arith.constant 0 : i32
    %c0_i32_0 = arith.constant 0 : i32
    %c0_i32_1 = arith.constant 0 : i32
    return %c0_i32, %c0_i32_0 : i32, i32
  }
  func.func @transform_12(%arg0: i32, %arg1: i32) -> (i32, i32) {
    %c0_i32 = arith.constant 0 : i32
    %c0_i32_0 = arith.constant 0 : i32
    %c0_i32_1 = arith.constant 0 : i32
    return %c0_i32, %c0_i32_0 : i32, i32
  }
  func.func @transform_13(%arg0: i32, %arg1: i32) -> (i32, i32) {
    %c0_i32 = arith.constant 0 : i32
    %c0_i32_0 = arith.constant 0 : i32
    %c0_i32_1 = arith.constant 0 : i32
    return %c0_i32, %c0_i32_0 : i32, i32
  }
  func.func @transform_14(%arg0: i32, %arg1: i32) -> (i32, i32) {
    %c0_i32 = arith.constant 0 : i32
    %c0_i32_0 = arith.constant 0 : i32
    %c0_i32_1 = arith.constant 0 : i32
    return %c0_i32, %c0_i32_0 : i32, i32
  }
  func.func @transform_15(%arg0: i32, %arg1: i32) -> (i32, i32) {
    %c0_i32 = arith.constant 0 : i32
    %c0_i32_0 = arith.constant 0 : i32
    %c0_i32_1 = arith.constant 0 : i32
    return %c0_i32, %c0_i32_0 : i32, i32
  }
  func.func @transform_16(%arg0: i32, %arg1: i32) -> (i32, i32) {
    %c0_i32 = arith.constant 0 : i32
    %c0_i32_0 = arith.constant 0 : i32
    %c0_i32_1 = arith.constant 0 : i32
    return %c0_i32, %c0_i32_0 : i32, i32
  }
  func.func @transform_17(%arg0: i32, %arg1: i32) -> (i32, i32) {
    %c0_i32 = arith.constant 0 : i32
    %c0_i32_0 = arith.constant 0 : i32
    %c0_i32_1 = arith.constant 0 : i32
    return %c0_i32, %c0_i32_0 : i32, i32
  }
  func.func @transform_18(%arg0: i32, %arg1: i32) -> (i32, i32, i32) {
    %c0_i32 = arith.constant 0 : i32
    %c0_i32_0 = arith.constant 0 : i32
    %c0_i32_1 = arith.constant 0 : i32
    return %arg0, %c0_i32, %c0_i32_0 : i32, i32, i32
  }
  func.func @transform_19(%arg0: i32, %arg1: i32) -> (i32, i32, i32, i32) {
    %c0_i32 = arith.constant 0 : i32
    %c0_i32_0 = arith.constant 0 : i32
    %c0_i32_1 = arith.constant 0 : i32
    return %arg0, %arg1, %c0_i32, %c0_i32_0 : i32, i32, i32, i32
  }
}

</mosaic_0001>

<llo_original>
// kernel: unimol_encoder_forward.6
$region0: #{unimol_encoder_forward.6}
  #allocation0 [shape = 'u32[]', space=smem, size = 0x4, offset = 0x4, fixed_abs, tag = 'smem constant byte address 0x4 - core index']
  #allocation1 [shape = 'u32[72,128]{1,0:T(1,128)}', space=vmem, size = 0x9000, scoped, tag = 'internal scratch']
  %s0 = inlined_call_operand.vmem [shape: f32[2,8,32], index: 0, kind: input, shape index: {}]
  %s1 = inlined_call_operand.vmem [shape: f32[1,32], index: 1, kind: input, shape index: {}]
  %s2 = inlined_call_operand.vmem [shape: f32[1,32], index: 2, kind: input, shape index: {}]
  %s3 = inlined_call_operand.vmem [shape: f32[2,8,1], index: 3, kind: input, shape index: {}]
  %s4 = inlined_call_operand.vmem [shape: f32[2,8,32], index: 4, kind: output, shape index: {}]
  %s5 = sld [smem:[#allocation0]]
  $region49: #{unimol_encoder_forward.6} parent=0
    _
  %s7 = ssub.s32 1, %s5
  %s8 = scalar_select 0, %s7, %s5
  loop: start=0, step=1, limit=4
  $region2: #{unimol_encoder_forward.6} parent=0 // loop_pre_header
    _
  $region3: #{unimol_encoder_forward.6} parent=0 // loop_header
    %s10 = sphi 0, %s14
    %p11 = scmp.ge.s32.totalorder %s10, 4
    %s20 = sphi 0, %s22
    %s23 = sphi 0, %s20
    %s24 = sphi 0, %s23
    %s40 = sphi 0, %s24
    %s44 = sphi 0, %s44
    %s46 = sphi 0, %s44
    %s47 = sphi 0, %s46
    %s61 = sphi 0, %s47
    %s65 = sphi 0, %s65
    %s67 = sphi 0, %s65
    %s68 = sphi 0, %s67
    %s82 = sphi 0, %s68
    %s88 = sphi 0, %s90
    %s91 = sphi 0, %s88
    %s92 = sphi 0, %s91
    %s108 = sphi 0, %s92
    %s114 = sphi 0, %s116
    %s117 = sphi 0, %s114
    %s118 = sphi 0, %s117
    %s134 = sphi 0, %s118
  $region4: #{unimol_encoder_forward.6} parent=0 // loop_header_branch
    %13 = sbr.rel (%p11) target = $region8
  $region5: #{unimol_encoder_forward.6} parent=0 // loop_body
    %s15 = ssub.s32 %s10, 1
    %s16 = ssub.s32 %s10, 2
    %s17 = sadd.s32 %s10, 1
    %s18 = ssub.s32 %s10, %s17
    %p19 = scmp.eq.s32.totalorder %s18, 0
    %s21 = sadd.s32 %s20, 1
    %s22 = scalar_select %p19, %s20, %s21
    %p25 = pneg %p19
    %p26 = scmp.eq.s32.totalorder %s10, 1
    %p27 = por %p25, %p26
    %p28 = scmp.ne.s32.totalorder %s20, %s23
    %p29 = scmp.eq.s32.totalorder %s10, 0
    %p30 = por %p28, %p29
    %p31 = scmp.ne.s32.totalorder %s20, %s23
    %p32 = scmp.eq.s32.totalorder %s15, 1
    %p33 = por %p31, %p32
    %p34 = scmp.ne.s32.totalorder %s23, %s24
    %p35 = scmp.eq.s32.totalorder %s15, 0
    %p36 = por %p34, %p35
    %p37 = scmp.ne.s32.totalorder %s23, %s24
    %p38 = scmp.eq.s32.totalorder %s16, 1
    %p39 = por %p37, %p38
    %p41 = scmp.ne.s32.totalorder %s24, %s40
    %p42 = scmp.eq.s32.totalorder %s16, 0
    %p43 = por %p41, %p42
    %s45 = sadd.s32 %s44, 1
    %p48 = scmp.eq.s32.totalorder %s10, 1
    %p49 = scmp.ne.s32.totalorder %s44, %s46
    %p50 = scmp.eq.s32.totalorder %s10, 0
    %p51 = por %p49, %p50
    %p52 = scmp.ne.s32.totalorder %s44, %s46
    %p53 = scmp.eq.s32.totalorder %s15, 1
    %p54 = por %p52, %p53
    %p55 = scmp.ne.s32.totalorder %s46, %s47
    %p56 = scmp.eq.s32.totalorder %s15, 0
    %p57 = por %p55, %p56
    %p58 = scmp.ne.s32.totalorder %s46, %s47
    %p59 = scmp.eq.s32.totalorder %s16, 1
    %p60 = por %p58, %p59
    %p62 = scmp.ne.s32.totalorder %s47, %s61
    %p63 = scmp.eq.s32.totalorder %s16, 0
    %p64 = por %p62, %p63
    %s66 = sadd.s32 %s65, 1
    %p69 = scmp.eq.s32.totalorder %s10, 1
    %p70 = scmp.ne.s32.totalorder %s65, %s67
    %p71 = scmp.eq.s32.totalorder %s10, 0
    %p72 = por %p70, %p71
    %p73 = scmp.ne.s32.totalorder %s65, %s67
    %p74 = scmp.eq.s32.totalorder %s15, 1
    %p75 = por %p73, %p74
    %p76 = scmp.ne.s32.totalorder %s67, %s68
    %p77 = scmp.eq.s32.totalorder %s15, 0
    %p78 = por %p76, %p77
    %p79 = scmp.ne.s32.totalorder %s67, %s68
    %p80 = scmp.eq.s32.totalorder %s16, 1
    %p81 = por %p79, %p80
    %p83 = scmp.ne.s32.totalorder %s68, %s82
    %p84 = scmp.eq.s32.totalorder %s16, 0
    %p85 = por %p83, %p84
    %s86 = ssub.s32 %s10, %s17
    %p87 = scmp.eq.s32.totalorder %s86, 0
    %s89 = sadd.s32 %s88, 1
    %s90 = scalar_select %p87, %s88, %s89
    %p93 = pneg %p87
    %p94 = scmp.eq.s32.totalorder %s10, 1
    %p95 = por %p93, %p94
    %p96 = scmp.ne.s32.totalorder %s88, %s91
    %p97 = scmp.eq.s32.totalorder %s10, 0
    %p98 = por %p96, %p97
    %p99 = scmp.ne.s32.totalorder %s88, %s91
    %p100 = scmp.eq.s32.totalorder %s15, 1
    %p101 = por %p99, %p100
    %p102 = scmp.ne.s32.totalorder %s91, %s92
    %p103 = scmp.eq.s32.totalorder %s15, 0
    %p104 = por %p102, %p103
    %p105 = scmp.ne.s32.totalorder %s91, %s92
    %p106 = scmp.eq.s32.totalorder %s16, 1
    %p107 = por %p105, %p106
    %p109 = scmp.ne.s32.totalorder %s92, %s108
    %p110 = scmp.eq.s32.totalorder %s16, 0
    %p111 = por %p109, %p110
    %s112 = ssub.s32 %s10, %s17
    %p113 = scmp.eq.s32.totalorder %s112, 0
    %s115 = sadd.s32 %s114, 1
    %s116 = scalar_select %p113, %s114, %s115
    %p119 = pneg %p113
    %p120 = scmp.eq.s32.totalorder %s10, 1
    %p121 = por %p119, %p120
    %p122 = scmp.ne.s32.totalorder %s114, %s117
    %p123 = scmp.eq.s32.totalorder %s10, 0
    %p124 = por %p122, %p123
    %p125 = scmp.ne.s32.totalorder %s114, %s117
    %p126 = scmp.eq.s32.totalorder %s15, 1
    %p127 = por %p125, %p126
    %p128 = scmp.ne.s32.totalorder %s117, %s118
    %p129 = scmp.eq.s32.totalorder %s15, 0
    %p130 = por %p128, %p129
    %p131 = scmp.ne.s32.totalorder %s117, %s118
    %p132 = scmp.eq.s32.totalorder %s16, 1
    %p133 = por %p131, %p132
    %p135 = scmp.ne.s32.totalorder %s118, %s134
    %p136 = scmp.eq.s32.totalorder %s16, 0
    %p137 = por %p135, %p136
    %p138 = scmp.le.s32.totalorder 1, %s10
    %p139 = scmp.lt.s32.totalorder %s10, 3
    %p140 = pnand %p138, %p139
    %p141 = pneg %p140
    // Predicated region
    $region9: #{unimol_encoder_forward.6} parent=5 // pred_check
      _
    $region10: #{unimol_encoder_forward.6} parent=5 // pred_check_branch
      %143 = sbr.rel (%p140) target = $region12
    $region11: #{unimol_encoder_forward.6} parent=5 // pred_region
      %s144 = ssub.s32 %s10, 1
      // Predicated region
      $region13: #{unimol_encoder_forward.6} parent=11 // pred_check
        %p145 = pneg %p57
      $region14: #{unimol_encoder_forward.6} parent=11 // pred_check_branch
        %147 = sbr.rel (%p145) target = $region16
      $region15: #{unimol_encoder_forward.6} parent=11 // pred_region
        _
      $region16: #{unimol_encoder_forward.6} parent=11 // pred_fallthru
        _
      // Predicated region
      $region17: #{unimol_encoder_forward.6} parent=11 // pred_check
        %p148 = pneg %p78
      $region18: #{unimol_encoder_forward.6} parent=11 // pred_check_branch
        %150 = sbr.rel (%p148) target = $region20
      $region19: #{unimol_encoder_forward.6} parent=11 // pred_region
        _
      $region20: #{unimol_encoder_forward.6} parent=11 // pred_fallthru
        _
    $region12: #{unimol_encoder_forward.6} parent=5 // pred_fallthru
      _
    %p151 = scmp.lt.s32.totalorder %s10, 2
    // Predicated region
    $region21: #{unimol_encoder_forward.6} parent=5 // pred_check
      %p152 = pneg %p151
    $region22: #{unimol_encoder_forward.6} parent=5 // pred_check_branch
      %154 = sbr.rel (%p152) target = $region24
    $region23: #{unimol_encoder_forward.6} parent=5 // pred_region
      // Predicated region
      $region25: #{unimol_encoder_forward.6} parent=23 // pred_check
        %p155 = pneg %p30
      $region26: #{unimol_encoder_forward.6} parent=23 // pred_check_branch
        %157 = sbr.rel (%p155) target = $region28
      $region27: #{unimol_encoder_forward.6} parent=23 // pred_region
        %p158 = scmp.lt.s32.totalorder %s10, 1
        %s159 = scalar_select %p158, %s10, 1
        %s160 = smul.addr %s159, 8
        %s161 = scalar_lea.vmem %s0, %s160
      $region28: #{unimol_encoder_forward.6} parent=23 // pred_fallthru
        _
      // Predicated region
      $region29: #{unimol_encoder_forward.6} parent=23 // pred_check
        %p162 = pneg %p98
      $region30: #{unimol_encoder_forward.6} parent=23 // pred_check_branch
        %164 = sbr.rel (%p162) target = $region32
      $region31: #{unimol_encoder_forward.6} parent=23 // pred_region
        %p165 = scmp.lt.s32.totalorder %s10, 1
        %s166 = scalar_select %p165, %s10, 1
        %s167 = smul.addr %s166, 8
        %s168 = scalar_lea.vmem %s3, %s167
      $region32: #{unimol_encoder_forward.6} parent=23 // pred_fallthru
        _
    $region24: #{unimol_encoder_forward.6} parent=5 // pred_fallthru
      _
    %p169 = scmp.le.s32.totalorder 1, %s10
    %p170 = scmp.lt.s32.totalorder %s10, 3
    %p171 = pnand %p169, %p170
    %p172 = pneg %p171
    // Predicated region
    $region33: #{unimol_encoder_forward.6} parent=5 // pred_check
      _
    $region34: #{unimol_encoder_forward.6} parent=5 // pred_check_branch
      %174 = sbr.rel (%p171) target = $region36
    $region35: #{unimol_encoder_forward.6} parent=5 // pred_region
      %s175 = ssub.s32 %s10, 1
      %p176 = scmp.lt.s32.totalorder %s15, 1
      %s177 = scalar_select %p176, %s15, 1
      %s178 = smul.addr %s177, 8
      %s179 = scalar_lea.vmem %s0, %s178
      %p180 = pneg %p36
      %p181 = pneg %p33
      %p182 = pneg %p57
      %p183 = pneg %p54
      %p184 = pneg %p78
      %p185 = pneg %p75
      %p186 = scmp.lt.s32.totalorder %s15, 1
      %s187 = scalar_select %p186, %s15, 1
      %s188 = smul.addr %s187, 8
      %s189 = scalar_lea.vmem %s3, %s188
      %p190 = pneg %p104
      %p191 = pneg %p101
      %p192 = pneg %p130
      %p193 = pneg %p127
      %p194 = scmp.lt.s32.totalorder %s15, 1
      %s195 = scalar_select %p194, %s15, 1
      %s196 = smul.addr %s195, 8
      %s197 = scalar_lea.vmem %s4, %s196
      %p198 = scmp.lt.s32.totalorder %s15, 1
      %s199 = scalar_select %p198, %s15, 1
      %s200 = smul.addr %s199, 8
      %s201 = scalar_lea.vmem %s0, %s200
      %p202 = scmp.lt.s32.totalorder %s15, 1
      %s203 = scalar_select %p202, %s15, 1
      %s204 = smul.addr %s203, 8
      %s205 = scalar_lea.vmem %s3, %s204
      %p206 = scmp.lt.s32.totalorder %s15, 1
      %s207 = scalar_select %p206, %s15, 1
      %s208 = smul.addr %s207, 8
      %s209 = scalar_lea.vmem %s4, %s208
      %v210 = vld [vmem:[%s201] sm:$0xff]
      %v211 = vld [vmem:[%s1] sm:$0x1]
      %v212 = vld [vmem:[%s2] sm:$0x1]
      %vm213 = vcmask 261120
      %v214 = vsel %vm213, %v210, 0.0
      %215 = vadd.xlane.f32.xlu0 %v214
      %v216 = vpop.xlane.xlu0 %215
      %v217 = vrcp.pop 32.0
      %v218 = vmul.f32 32.0, %v217
      %v219 = vsub.f32 1.0, %v218
      %v220 = vmul.f32 %v217, %v219
      %v221 = vadd.f32 %v217, %v220
      %vm222 = vweird.f32 %v217
      %v223 = vsel %vm222, %v217, %v221
      %v224 = vmul.f32 %v216, %v223
      %v225 = vsub.f32 %v210, %v224
      %v226 = vmul.f32 %v225, %v225
      %v227 = vsel %vm213, %v226, 0.0
      %228 = vadd.xlane.f32.xlu0 %v227
      %v229 = vpop.xlane.xlu0 %228
      %v230 = vmul.f32 %v229, %v223
      %v231 = vadd.f32 %v230, 1e-05
      %v232 = vrsqrt.pop %v231
      %v233 = vmul.f32 %v232, %v231
      %v234 = vmul.f32 %v233, %v232
      %v235 = vmul.f32 0.5, %v234
      %v236 = vsub.f32 1.5, %v235
      %v237 = vmul.f32 %v232, %v236
      %vm238 = vweird.f32 %v231
      %vm239 = vweird.f32 %v232
      %vm240 = vmor %vm238, %vm239
      %v241 = vsel %vm240, %v232, %v237
      %v242 = vmul.f32 %v225, %v241
      %v244 = vperm.slane %v211, 0
      %v246 = vmul.f32 %v242, %v244
      %v248 = vperm.slane %v212, 0
      %v250 = vadd.f32 %v246, %v248
      %v251 = vld [vmem:[%s205] sm:$0xff]
      %253 = vset.pattern.permute.xlu0 0
      %254 = vperm.xlu0 %253, %v251
      %v255 = vpop.permute.xlu0 %254
      %v257 = vmul.f32 %v250, %v255
      %258 = vst.msk [vmem:[%s209] sm:$0xff] %vm213, %v257
      %p259 = scmp.lt.s32.totalorder %s15, 1
      %s260 = scalar_select %p259, %s15, 1
      %s261 = smul.addr %s260, 8
      %s262 = scalar_lea.vmem %s4, %s261
      // Predicated region
      $region37: #{unimol_encoder_forward.6} parent=35 // pred_check
        %p263 = pneg %p127
      $region38: #{unimol_encoder_forward.6} parent=35 // pred_check_branch
        %265 = sbr.rel (%p263) target = $region40
      $region39: #{unimol_encoder_forward.6} parent=35 // pred_region
        _
      $region40: #{unimol_encoder_forward.6} parent=35 // pred_fallthru
        _
    $region36: #{unimol_encoder_forward.6} parent=5 // pred_fallthru
      _
    %p266 = scmp.le.s32.totalorder 2, %s10
    // Predicated region
    $region41: #{unimol_encoder_forward.6} parent=5 // pred_check
      %p267 = pneg %p266
    $region42: #{unimol_encoder_forward.6} parent=5 // pred_check_branch
      %269 = sbr.rel (%p267) target = $region44
    $region43: #{unimol_encoder_forward.6} parent=5 // pred_region
      %s270 = ssub.s32 %s10, 2
      // Predicated region
      $region45: #{unimol_encoder_forward.6} parent=43 // pred_check
        %p271 = pneg %p133
      $region46: #{unimol_encoder_forward.6} parent=43 // pred_check_branch
        %273 = sbr.rel (%p271) target = $region48
      $region47: #{unimol_encoder_forward.6} parent=43 // pred_region
        %p274 = scmp.lt.s32.totalorder %s16, 1
        %s275 = scalar_select %p274, %s16, 1
        %s276 = smul.addr %s275, 8
        %s277 = scalar_lea.vmem %s4, %s276
      $region48: #{unimol_encoder_forward.6} parent=43 // pred_fallthru
        _
    $region44: #{unimol_encoder_forward.6} parent=5 // pred_fallthru
      _
  $region6: #{unimol_encoder_forward.6} parent=0 // loop_footer
    %s14 = sadd.s32 1, %s10
  $region7: #{unimol_encoder_forward.6} parent=0 // loop_footer_branch
    %9 = sbr.rel target = $region3
  $region8: #{unimol_encoder_forward.6} parent=0 // loop_exit
    _

// kernel: unimol_encoder_forward.5
$region0: #{unimol_encoder_forward.5}
  #allocation0 [shape = 'u32[]', space=smem, size = 0x4, offset = 0x4, fixed_abs, tag = 'smem constant byte address 0x4 - core index']
  #allocation1 [shape = 'u32[72,128]{1,0:T(1,128)}', space=vmem, size = 0x9000, scoped, tag = 'internal scratch']
  %s0 = inlined_call_operand.vmem [shape: f32[2,64,1], index: 0, kind: input, shape index: {}]
  %s1 = inlined_call_operand.vmem [shape: f32[2,64,1], index: 1, kind: input, shape index: {}]
  %s2 = inlined_call_operand.vmem [shape: f32[2,64,1], index: 2, kind: input, shape index: {}]
  %s3 = inlined_call_operand.vmem [shape: f32[2,1,64], index: 3, kind: input, shape index: {}]
  %s4 = inlined_call_operand.vmem [shape: f32[1,128], index: 4, kind: input, shape index: {}]
  %s5 = inlined_call_operand.vmem [shape: f32[1,128], index: 5, kind: input, shape index: {}]
  %s6 = inlined_call_operand.vmem [shape: f32[128,128], index: 6, kind: input, shape index: {}]
  %s7 = inlined_call_operand.vmem [shape: f32[1,128], index: 7, kind: input, shape index: {}]
  %s8 = inlined_call_operand.vmem [shape: f32[4,128], index: 8, kind: input, shape index: {}]
  %s9 = inlined_call_operand.vmem [shape: f32[4,1], index: 9, kind: input, shape index: {}]
  %s10 = inlined_call_operand.vmem [shape: f32[2,4,64], index: 10, kind: output, shape index: {}]
  %s11 = sld [smem:[#allocation0]]
  $region73: #{unimol_encoder_forward.5} parent=0
    _
  %s13 = ssub.s32 1, %s11
  %s14 = scalar_select 0, %s13, %s11
  loop: start=0, step=1, limit=4
  $region2: #{unimol_encoder_forward.5} parent=0 // loop_pre_header
    _
  $region3: #{unimol_encoder_forward.5} parent=0 // loop_header
    %s16 = sphi 0, %s20
    %p17 = scmp.ge.s32.totalorder %s16, 4
    %s23 = sphi 0, %s35
    %s24 = sphi 0, %s31
    %s25 = sphi 0, %s23
    %s26 = sphi 0, %s24
    %s27 = sphi 0, %s25
    %s28 = sphi 0, %s26
    %s40 = sphi 0, %s42
    %s43 = sphi 0, %s40
    %s44 = sphi 0, %s43
    %s60 = sphi 0, %s44
    %s68 = sphi 0, %s70
    %s71 = sphi 0, %s68
    %s72 = sphi 0, %s71
    %s88 = sphi 0, %s72
    %s96 = sphi 0, %s98
    %s99 = sphi 0, %s96
    %s100 = sphi 0, %s99
    %s116 = sphi 0, %s100
    %s124 = sphi 0, %s126
    %s127 = sphi 0, %s124
    %s128 = sphi 0, %s127
    %s144 = sphi 0, %s128
    %s148 = sphi 0, %s148
    %s150 = sphi 0, %s148
    %s151 = sphi 0, %s150
    %s165 = sphi 0, %s151
    %s169 = sphi 0, %s169
    %s171 = sphi 0, %s169
    %s172 = sphi 0, %s171
    %s186 = sphi 0, %s172
    %s190 = sphi 0, %s190
    %s192 = sphi 0, %s190
    %s193 = sphi 0, %s192
    %s207 = sphi 0, %s193
    %s211 = sphi 0, %s211
    %s213 = sphi 0, %s211
    %s214 = sphi 0, %s213
    %s228 = sphi 0, %s214
    %s232 = sphi 0, %s232
    %s234 = sphi 0, %s232
    %s235 = sphi 0, %s234
    %s249 = sphi 0, %s235
    %s253 = sphi 0, %s253
    %s255 = sphi 0, %s253
    %s256 = sphi 0, %s255
    %s270 = sphi 0, %s256
    %s278 = sphi 0, %s280
    %s281 = sphi 0, %s278
    %s282 = sphi 0, %s281
    %s298 = sphi 0, %s282
  $region4: #{unimol_encoder_forward.5} parent=0 // loop_header_branch
    %19 = sbr.rel (%p17) target = $region8
  $region5: #{unimol_encoder_forward.5} parent=0 // loop_body
    %s21 = ssub.s32 %s16, 1
    %s22 = ssub.s32 %s16, 2
    %s29 = sadd.s32 1, %s24
    %p30 = scmp.ge.s32.totalorder %s29, 1
    %s31 = scalar_select %p30, 0, %s29
    %s32 = sadd.s32 1, %s23
    %s33 = scalar_select %p30, %s32, %s23
    %p34 = scmp.ge.s32.totalorder %s33, 2
    %s35 = scalar_select %p34, 0, %s33
    %s36 = ssub.s32 %s23, %s35
    %s37 = ssub.s32 %s24, %s31
    %s38 = sor.u32 %s36, %s37
    %p39 = scmp.eq.s32.totalorder %s38, 0
    %s41 = sadd.s32 %s40, 1
    %s42 = scalar_select %p39, %s40, %s41
    %p45 = pneg %p39
    %p46 = scmp.eq.s32.totalorder %s16, 1
    %p47 = por %p45, %p46
    %p48 = scmp.ne.s32.totalorder %s40, %s43
    %p49 = scmp.eq.s32.totalorder %s16, 0
    %p50 = por %p48, %p49
    %p51 = scmp.ne.s32.totalorder %s40, %s43
    %p52 = scmp.eq.s32.totalorder %s21, 1
    %p53 = por %p51, %p52
    %p54 = scmp.ne.s32.totalorder %s43, %s44
    %p55 = scmp.eq.s32.totalorder %s21, 0
    %p56 = por %p54, %p55
    %p57 = scmp.ne.s32.totalorder %s43, %s44
    %p58 = scmp.eq.s32.totalorder %s22, 1
    %p59 = por %p57, %p58
    %p61 = scmp.ne.s32.totalorder %s44, %s60
    %p62 = scmp.eq.s32.totalorder %s22, 0
    %p63 = por %p61, %p62
    %s64 = ssub.s32 %s23, %s35
    %s65 = ssub.s32 %s24, %s31
    %s66 = sor.u32 %s64, %s65
    %p67 = scmp.eq.s32.totalorder %s66, 0
    %s69 = sadd.s32 %s68, 1
    %s70 = scalar_select %p67, %s68, %s69
    %p73 = pneg %p67
    %p74 = scmp.eq.s32.totalorder %s16, 1
    %p75 = por %p73, %p74
    %p76 = scmp.ne.s32.totalorder %s68, %s71
    %p77 = scmp.eq.s32.totalorder %s16, 0
    %p78 = por %p76, %p77
    %p79 = scmp.ne.s32.totalorder %s68, %s71
    %p80 = scmp.eq.s32.totalorder %s21, 1
    %p81 = por %p79, %p80
    %p82 = scmp.ne.s32.totalorder %s71, %s72
    %p83 = scmp.eq.s32.totalorder %s21, 0
    %p84 = por %p82, %p83
    %p85 = scmp.ne.s32.totalorder %s71, %s72
    %p86 = scmp.eq.s32.totalorder %s22, 1
    %p87 = por %p85, %p86
    %p89 = scmp.ne.s32.totalorder %s72, %s88
    %p90 = scmp.eq.s32.totalorder %s22, 0
    %p91 = por %p89, %p90
    %s92 = ssub.s32 %s23, %s35
    %s93 = ssub.s32 %s24, %s31
    %s94 = sor.u32 %s92, %s93
    %p95 = scmp.eq.s32.totalorder %s94, 0
    %s97 = sadd.s32 %s96, 1
    %s98 = scalar_select %p95, %s96, %s97
    %p101 = pneg %p95
    %p102 = scmp.eq.s32.totalorder %s16, 1
    %p103 = por %p101, %p102
    %p104 = scmp.ne.s32.totalorder %s96, %s99
    %p105 = scmp.eq.s32.totalorder %s16, 0
    %p106 = por %p104, %p105
    %p107 = scmp.ne.s32.totalorder %s96, %s99
    %p108 = scmp.eq.s32.totalorder %s21, 1
    %p109 = por %p107, %p108
    %p110 = scmp.ne.s32.totalorder %s99, %s100
    %p111 = scmp.eq.s32.totalorder %s21, 0
    %p112 = por %p110, %p111
    %p113 = scmp.ne.s32.totalorder %s99, %s100
    %p114 = scmp.eq.s32.totalorder %s22, 1
    %p115 = por %p113, %p114
    %p117 = scmp.ne.s32.totalorder %s100, %s116
    %p118 = scmp.eq.s32.totalorder %s22, 0
    %p119 = por %p117, %p118
    %s120 = ssub.s32 %s23, %s35
    %s121 = ssub.s32 %s24, %s31
    %s122 = sor.u32 %s120, %s121
    %p123 = scmp.eq.s32.totalorder %s122, 0
    %s125 = sadd.s32 %s124, 1
    %s126 = scalar_select %p123, %s124, %s125
    %p129 = pneg %p123
    %p130 = scmp.eq.s32.totalorder %s16, 1
    %p131 = por %p129, %p130
    %p132 = scmp.ne.s32.totalorder %s124, %s127
    %p133 = scmp.eq.s32.totalorder %s16, 0
    %p134 = por %p132, %p133
    %p135 = scmp.ne.s32.totalorder %s124, %s127
    %p136 = scmp.eq.s32.totalorder %s21, 1
    %p137 = por %p135, %p136
    %p138 = scmp.ne.s32.totalorder %s127, %s128
    %p139 = scmp.eq.s32.totalorder %s21, 0
    %p140 = por %p138, %p139
    %p141 = scmp.ne.s32.totalorder %s127, %s128
    %p142 = scmp.eq.s32.totalorder %s22, 1
    %p143 = por %p141, %p142
    %p145 = scmp.ne.s32.totalorder %s128, %s144
    %p146 = scmp.eq.s32.totalorder %s22, 0
    %p147 = por %p145, %p146
    %s149 = sadd.s32 %s148, 1
    %p152 = scmp.eq.s32.totalorder %s16, 1
    %p153 = scmp.ne.s32.totalorder %s148, %s150
    %p154 = scmp.eq.s32.totalorder %s16, 0
    %p155 = por %p153, %p154
    %p156 = scmp.ne.s32.totalorder %s148, %s150
    %p157 = scmp.eq.s32.totalorder %s21, 1
    %p158 = por %p156, %p157
    %p159 = scmp.ne.s32.totalorder %s150, %s151
    %p160 = scmp.eq.s32.totalorder %s21, 0
    %p161 = por %p159, %p160
    %p162 = scmp.ne.s32.totalorder %s150, %s151
    %p163 = scmp.eq.s32.totalorder %s22, 1
    %p164 = por %p162, %p163
    %p166 = scmp.ne.s32.totalorder %s151, %s165
    %p167 = scmp.eq.s32.totalorder %s22, 0
    %p168 = por %p166, %p167
    %s170 = sadd.s32 %s169, 1
    %p173 = scmp.eq.s32.totalorder %s16, 1
    %p174 = scmp.ne.s32.totalorder %s169, %s171
    %p175 = scmp.eq.s32.totalorder %s16, 0
    %p176 = por %p174, %p175
    %p177 = scmp.ne.s32.totalorder %s169, %s171
    %p178 = scmp.eq.s32.totalorder %s21, 1
    %p179 = por %p177, %p178
    %p180 = scmp.ne.s32.totalorder %s171, %s172
    %p181 = scmp.eq.s32.totalorder %s21, 0
    %p182 = por %p180, %p181
    %p183 = scmp.ne.s32.totalorder %s171, %s172
    %p184 = scmp.eq.s32.totalorder %s22, 1
    %p185 = por %p183, %p184
    %p187 = scmp.ne.s32.totalorder %s172, %s186
    %p188 = scmp.eq.s32.totalorder %s22, 0
    %p189 = por %p187, %p188
    %s191 = sadd.s32 %s190, 1
    %p194 = scmp.eq.s32.totalorder %s16, 1
    %p195 = scmp.ne.s32.totalorder %s190, %s192
    %p196 = scmp.eq.s32.totalorder %s16, 0
    %p197 = por %p195, %p196
    %p198 = scmp.ne.s32.totalorder %s190, %s192
    %p199 = scmp.eq.s32.totalorder %s21, 1
    %p200 = por %p198, %p199
    %p201 = scmp.ne.s32.totalorder %s192, %s193
    %p202 = scmp.eq.s32.totalorder %s21, 0
    %p203 = por %p201, %p202
    %p204 = scmp.ne.s32.totalorder %s192, %s193
    %p205 = scmp.eq.s32.totalorder %s22, 1
    %p206 = por %p204, %p205
    %p208 = scmp.ne.s32.totalorder %s193, %s207
    %p209 = scmp.eq.s32.totalorder %s22, 0
    %p210 = por %p208, %p209
    %s212 = sadd.s32 %s211, 1
    %p215 = scmp.eq.s32.totalorder %s16, 1
    %p216 = scmp.ne.s32.totalorder %s211, %s213
    %p217 = scmp.eq.s32.totalorder %s16, 0
    %p218 = por %p216, %p217
    %p219 = scmp.ne.s32.totalorder %s211, %s213
    %p220 = scmp.eq.s32.totalorder %s21, 1
    %p221 = por %p219, %p220
    %p222 = scmp.ne.s32.totalorder %s213, %s214
    %p223 = scmp.eq.s32.totalorder %s21, 0
    %p224 = por %p222, %p223
    %p225 = scmp.ne.s32.totalorder %s213, %s214
    %p226 = scmp.eq.s32.totalorder %s22, 1
    %p227 = por %p225, %p226
    %p229 = scmp.ne.s32.totalorder %s214, %s228
    %p230 = scmp.eq.s32.totalorder %s22, 0
    %p231 = por %p229, %p230
    %s233 = sadd.s32 %s232, 1
    %p236 = scmp.eq.s32.totalorder %s16, 1
    %p237 = scmp.ne.s32.totalorder %s232, %s234
    %p238 = scmp.eq.s32.totalorder %s16, 0
    %p239 = por %p237, %p238
    %p240 = scmp.ne.s32.totalorder %s232, %s234
    %p241 = scmp.eq.s32.totalorder %s21, 1
    %p242 = por %p240, %p241
    %p243 = scmp.ne.s32.totalorder %s234, %s235
    %p244 = scmp.eq.s32.totalorder %s21, 0
    %p245 = por %p243, %p244
    %p246 = scmp.ne.s32.totalorder %s234, %s235
    %p247 = scmp.eq.s32.totalorder %s22, 1
    %p248 = por %p246, %p247
    %p250 = scmp.ne.s32.totalorder %s235, %s249
    %p251 = scmp.eq.s32.totalorder %s22, 0
    %p252 = por %p250, %p251
    %s254 = sadd.s32 %s253, 1
    %p257 = scmp.eq.s32.totalorder %s16, 1
    %p258 = scmp.ne.s32.totalorder %s253, %s255
    %p259 = scmp.eq.s32.totalorder %s16, 0
    %p260 = por %p258, %p259
    %p261 = scmp.ne.s32.totalorder %s253, %s255
    %p262 = scmp.eq.s32.totalorder %s21, 1
    %p263 = por %p261, %p262
    %p264 = scmp.ne.s32.totalorder %s255, %s256
    %p265 = scmp.eq.s32.totalorder %s21, 0
    %p266 = por %p264, %p265
    %p267 = scmp.ne.s32.totalorder %s255, %s256
    %p268 = scmp.eq.s32.totalorder %s22, 1
    %p269 = por %p267, %p268
    %p271 = scmp.ne.s32.totalorder %s256, %s270
    %p272 = scmp.eq.s32.totalorder %s22, 0
    %p273 = por %p271, %p272
    %s274 = ssub.s32 %s23, %s35
    %s275 = ssub.s32 %s24, %s31
    %s276 = sor.u32 %s274, %s275
    %p277 = scmp.eq.s32.totalorder %s276, 0
    %s279 = sadd.s32 %s278, 1
    %s280 = scalar_select %p277, %s278, %s279
    %p283 = pneg %p277
    %p284 = scmp.eq.s32.totalorder %s16, 1
    %p285 = por %p283, %p284
    %p286 = scmp.ne.s32.totalorder %s278, %s281
    %p287 = scmp.eq.s32.totalorder %s16, 0
    %p288 = por %p286, %p287
    %p289 = scmp.ne.s32.totalorder %s278, %s281
    %p290 = scmp.eq.s32.totalorder %s21, 1
    %p291 = por %p289, %p290
    %p292 = scmp.ne.s32.totalorder %s281, %s282
    %p293 = scmp.eq.s32.totalorder %s21, 0
    %p294 = por %p292, %p293
    %p295 = scmp.ne.s32.totalorder %s281, %s282
    %p296 = scmp.eq.s32.totalorder %s22, 1
    %p297 = por %p295, %p296
    %p299 = scmp.ne.s32.totalorder %s282, %s298
    %p300 = scmp.eq.s32.totalorder %s22, 0
    %p301 = por %p299, %p300
    %p302 = scmp.le.s32.totalorder 1, %s16
    %p303 = scmp.lt.s32.totalorder %s16, 3
    %p304 = pnand %p302, %p303
    %p305 = pneg %p304
    // Predicated region
    $region9: #{unimol_encoder_forward.5} parent=5 // pred_check
      _
    $region10: #{unimol_encoder_forward.5} parent=5 // pred_check_branch
      %307 = sbr.rel (%p304) target = $region12
    $region11: #{unimol_encoder_forward.5} parent=5 // pred_region
      %s308 = ssub.s32 %s16, 1
      // Predicated region
      $region13: #{unimol_encoder_forward.5} parent=11 // pred_check
        %p309 = pneg %p161
      $region14: #{unimol_encoder_forward.5} parent=11 // pred_check_branch
        %311 = sbr.rel (%p309) target = $region16
      $region15: #{unimol_encoder_forward.5} parent=11 // pred_region
        _
      $region16: #{unimol_encoder_forward.5} parent=11 // pred_fallthru
        _
      // Predicated region
      $region17: #{unimol_encoder_forward.5} parent=11 // pred_check
        %p312 = pneg %p182
      $region18: #{unimol_encoder_forward.5} parent=11 // pred_check_branch
        %314 = sbr.rel (%p312) target = $region20
      $region19: #{unimol_encoder_forward.5} parent=11 // pred_region
        _
      $region20: #{unimol_encoder_forward.5} parent=11 // pred_fallthru
        _
      // Predicated region
      $region21: #{unimol_encoder_forward.5} parent=11 // pred_check
        %p315 = pneg %p203
      $region22: #{unimol_encoder_forward.5} parent=11 // pred_check_branch
        %317 = sbr.rel (%p315) target = $region24
      $region23: #{unimol_encoder_forward.5} parent=11 // pred_region
        _
      $region24: #{unimol_encoder_forward.5} parent=11 // pred_fallthru
        _
      // Predicated region
      $region25: #{unimol_encoder_forward.5} parent=11 // pred_check
        %p318 = pneg %p224
      $region26: #{unimol_encoder_forward.5} parent=11 // pred_check_branch
        %320 = sbr.rel (%p318) target = $region28
      $region27: #{unimol_encoder_forward.5} parent=11 // pred_region
        _
      $region28: #{unimol_encoder_forward.5} parent=11 // pred_fallthru
        _
      // Predicated region
      $region29: #{unimol_encoder_forward.5} parent=11 // pred_check
        %p321 = pneg %p245
      $region30: #{unimol_encoder_forward.5} parent=11 // pred_check_branch
        %323 = sbr.rel (%p321) target = $region32
      $region31: #{unimol_encoder_forward.5} parent=11 // pred_region
        _
      $region32: #{unimol_encoder_forward.5} parent=11 // pred_fallthru
        _
      // Predicated region
      $region33: #{unimol_encoder_forward.5} parent=11 // pred_check
        %p324 = pneg %p266
      $region34: #{unimol_encoder_forward.5} parent=11 // pred_check_branch
        %326 = sbr.rel (%p324) target = $region36
      $region35: #{unimol_encoder_forward.5} parent=11 // pred_region
        _
      $region36: #{unimol_encoder_forward.5} parent=11 // pred_fallthru
        _
    $region12: #{unimol_encoder_forward.5} parent=5 // pred_fallthru
      _
    %p327 = scmp.lt.s32.totalorder %s16, 2
    // Predicated region
    $region37: #{unimol_encoder_forward.5} parent=5 // pred_check
      %p328 = pneg %p327
    $region38: #{unimol_encoder_forward.5} parent=5 // pred_check_branch
      %330 = sbr.rel (%p328) target = $region40
    $region39: #{unimol_encoder_forward.5} parent=5 // pred_region
      // Predicated region
      $region41: #{unimol_encoder_forward.5} parent=39 // pred_check
        %p331 = pneg %p50
      $region42: #{unimol_encoder_forward.5} parent=39 // pred_check_branch
        %333 = sbr.rel (%p331) target = $region44
      $region43: #{unimol_encoder_forward.5} parent=39 // pred_region
        %s334 = smul.u32 8, %s24
        %p335 = scmp.lt.s32.totalorder %s23, 1
        %s336 = scalar_select %p335, %s23, 1
        %p337 = scmp.lt.s32.totalorder %s334, 7
        %s338 = scalar_select %p337, %s334, 7
        %s339 = smul.addr %s336, 8
        %s340 = sadd.s32 %s338, %s339
        %s341 = smul.addr %s340, 8
        %s342 = scalar_lea.vmem %s0, %s341
        %s343 = smul.u32 8, %s24
      $region44: #{unimol_encoder_forward.5} parent=39 // pred_fallthru
        _
      // Predicated region
      $region45: #{unimol_encoder_forward.5} parent=39 // pred_check
        %p344 = pneg %p78
      $region46: #{unimol_encoder_forward.5} parent=39 // pred_check_branch
        %346 = sbr.rel (%p344) target = $region48
      $region47: #{unimol_encoder_forward.5} parent=39 // pred_region
        %s347 = smul.u32 8, %s24
        %p348 = scmp.lt.s32.totalorder %s23, 1
        %s349 = scalar_select %p348, %s23, 1
        %p350 = scmp.lt.s32.totalorder %s347, 7
        %s351 = scalar_select %p350, %s347, 7
        %s352 = smul.addr %s349, 8
        %s353 = sadd.s32 %s351, %s352
        %s354 = smul.addr %s353, 8
        %s355 = scalar_lea.vmem %s1, %s354
        %s356 = smul.u32 8, %s24
      $region48: #{unimol_encoder_forward.5} parent=39 // pred_fallthru
        _
      // Predicated region
      $region49: #{unimol_encoder_forward.5} parent=39 // pred_check
        %p357 = pneg %p106
      $region50: #{unimol_encoder_forward.5} parent=39 // pred_check_branch
        %359 = sbr.rel (%p357) target = $region52
      $region51: #{unimol_encoder_forward.5} parent=39 // pred_region
        %s360 = smul.u32 8, %s24
        %p361 = scmp.lt.s32.totalorder %s23, 1
        %s362 = scalar_select %p361, %s23, 1
        %p363 = scmp.lt.s32.totalorder %s360, 7
        %s364 = scalar_select %p363, %s360, 7
        %s365 = smul.addr %s362, 8
        %s366 = sadd.s32 %s364, %s365
        %s367 = smul.addr %s366, 8
        %s368 = scalar_lea.vmem %s2, %s367
        %s369 = smul.u32 8, %s24
      $region52: #{unimol_encoder_forward.5} parent=39 // pred_fallthru
        _
      // Predicated region
      $region53: #{unimol_encoder_forward.5} parent=39 // pred_check
        %p370 = pneg %p134
      $region54: #{unimol_encoder_forward.5} parent=39 // pred_check_branch
        %372 = sbr.rel (%p370) target = $region56
      $region55: #{unimol_encoder_forward.5} parent=39 // pred_region
        %p373 = scmp.lt.s32.totalorder %s23, 1
        %s374 = scalar_select %p373, %s23, 1
        %p375 = scmp.lt.s32.totalorder %s24, 0
        %s376 = scalar_select %p375, %s24, 0
        %s377 = sadd.s32 %s376, %s374
        %s378 = scalar_lea.vmem %s3, %s377
      $region56: #{unimol_encoder_forward.5} parent=39 // pred_fallthru
        _
    $region40: #{unimol_encoder_forward.5} parent=5 // pred_fallthru
      _
    %p379 = scmp.le.s32.totalorder 1, %s16
    %p380 = scmp.lt.s32.totalorder %s16, 3
    %p381 = pnand %p379, %p380
    %p382 = pneg %p381
    // Predicated region
    $region57: #{unimol_encoder_forward.5} parent=5 // pred_check
      _
    $region58: #{unimol_encoder_forward.5} parent=5 // pred_check_branch
      %384 = sbr.rel (%p381) target = $region60
    $region59: #{unimol_encoder_forward.5} parent=5 // pred_region
      %s385 = ssub.s32 %s16, 1
      %s386 = smul.u32 8, %s26
      %p387 = scmp.lt.s32.totalorder %s25, 1
      %s388 = scalar_select %p387, %s25, 1
      %p389 = scmp.lt.s32.totalorder %s386, 7
      %s390 = scalar_select %p389, %s386, 7
      %s391 = smul.addr %s388, 8
      %s392 = sadd.s32 %s390, %s391
      %s393 = smul.addr %s392, 8
      %s394 = scalar_lea.vmem %s0, %s393
      %p395 = pneg %p56
      %p396 = pneg %p53
      %s397 = smul.u32 8, %s26
      %p398 = scmp.lt.s32.totalorder %s25, 1
      %s399 = scalar_select %p398, %s25, 1
      %p400 = scmp.lt.s32.totalorder %s397, 7
      %s401 = scalar_select %p400, %s397, 7
      %s402 = smul.addr %s399, 8
      %s403 = sadd.s32 %s401, %s402
      %s404 = smul.addr %s403, 8
      %s405 = scalar_lea.vmem %s1, %s404
      %p406 = pneg %p84
      %p407 = pneg %p81
      %s408 = smul.u32 8, %s26
      %p409 = scmp.lt.s32.totalorder %s25, 1
      %s410 = scalar_select %p409, %s25, 1
      %p411 = scmp.lt.s32.totalorder %s408, 7
      %s412 = scalar_select %p411, %s408, 7
      %s413 = smul.addr %s410, 8
      %s414 = sadd.s32 %s412, %s413
      %s415 = smul.addr %s414, 8
      %s416 = scalar_lea.vmem %s2, %s415
      %p417 = pneg %p112
      %p418 = pneg %p109
      %p419 = scmp.lt.s32.totalorder %s25, 1
      %s420 = scalar_select %p419, %s25, 1
      %p421 = scmp.lt.s32.totalorder %s26, 0
      %s422 = scalar_select %p421, %s26, 0
      %s423 = sadd.s32 %s422, %s420
      %s424 = scalar_lea.vmem %s3, %s423
      %p425 = pneg %p140
      %p426 = pneg %p137
      %p427 = pneg %p161
      %p428 = pneg %p158
      %p429 = pneg %p182
      %p430 = pneg %p179
      %p431 = pneg %p203
      %p432 = pneg %p200
      %p433 = pneg %p224
      %p434 = pneg %p221
      %p435 = pneg %p245
      %p436 = pneg %p242
      %p437 = pneg %p266
      %p438 = pneg %p263
      %p439 = pneg %p294
      %p440 = pneg %p291
      %p441 = scmp.lt.s32.totalorder %s25, 1
      %s442 = scalar_select %p441, %s25, 1
      %p443 = scmp.lt.s32.totalorder %s26, 0
      %s444 = scalar_select %p443, %s26, 0
      %s445 = sadd.s32 %s444, %s442
      %s446 = smul.addr %s445, 4
      %s447 = scalar_lea.vmem %s10, %s446
      %s448 = smul.u32 8, %s26
      %p449 = scmp.lt.s32.totalorder %s25, 1
      %s450 = scalar_select %p449, %s25, 1
      %p451 = scmp.lt.s32.totalorder %s448, 7
      %s452 = scalar_select %p451, %s448, 7
      %s453 = smul.addr %s450, 8
      %s454 = sadd.s32 %s452, %s453
      %s455 = smul.addr %s454, 8
      %s456 = scalar_lea.vmem %s0, %s455
      %s457 = smul.u32 8, %s26
      %s458 = smul.u32 8, %s26
      %p459 = scmp.lt.s32.totalorder %s25, 1
      %s460 = scalar_select %p459, %s25, 1
      %p461 = scmp.lt.s32.totalorder %s458, 7
      %s462 = scalar_select %p461, %s458, 7
      %s463 = smul.addr %s460, 8
      %s464 = sadd.s32 %s462, %s463
      %s465 = smul.addr %s464, 8
      %s466 = scalar_lea.vmem %s1, %s465
      %s467 = smul.u32 8, %s26
      %s468 = smul.u32 8, %s26
      %p469 = scmp.lt.s32.totalorder %s25, 1
      %s470 = scalar_select %p469, %s25, 1
      %p471 = scmp.lt.s32.totalorder %s468, 7
      %s472 = scalar_select %p471, %s468, 7
      %s473 = smul.addr %s470, 8
      %s474 = sadd.s32 %s472, %s473
      %s475 = smul.addr %s474, 8
      %s476 = scalar_lea.vmem %s2, %s475
      %s477 = smul.u32 8, %s26
      %p478 = scmp.lt.s32.totalorder %s25, 1
      %s479 = scalar_select %p478, %s25, 1
      %p480 = scmp.lt.s32.totalorder %s26, 0
      %s481 = scalar_select %p480, %s26, 0
      %s482 = sadd.s32 %s481, %s479
      %s483 = scalar_lea.vmem %s3, %s482
      %p484 = scmp.lt.s32.totalorder %s25, 1
      %s485 = scalar_select %p484, %s25, 1
      %p486 = scmp.lt.s32.totalorder %s26, 0
      %s487 = scalar_select %p486, %s26, 0
      %s488 = sadd.s32 %s487, %s485
      %s489 = smul.addr %s488, 4
      %s490 = scalar_lea.vmem %s10, %s489
      %v492 = vld [vmem:[%s456] sm:$0xff]
      %v493 = vld [vmem:[%s456 + $0x8] sm:$0xff]
      %v494 = vld [vmem:[%s456 + $0x10] sm:$0xff]
      %v495 = vld [vmem:[%s456 + $0x18] sm:$0xff]
      %v496 = vld [vmem:[%s456 + $0x20] sm:$0xff]
      %v497 = vld [vmem:[%s456 + $0x28] sm:$0xff]
      %v498 = vld [vmem:[%s456 + $0x30] sm:$0xff]
      %v499 = vld [vmem:[%s456 + $0x38] sm:$0xff]
      %v500 = vld [vmem:[%s466] sm:$0xff]
      %v501 = vld [vmem:[%s466 + $0x8] sm:$0xff]
      %v502 = vld [vmem:[%s466 + $0x10] sm:$0xff]
      %v503 = vld [vmem:[%s466 + $0x18] sm:$0xff]
      %v504 = vld [vmem:[%s466 + $0x20] sm:$0xff]
      %v505 = vld [vmem:[%s466 + $0x28] sm:$0xff]
      %v506 = vld [vmem:[%s466 + $0x30] sm:$0xff]
      %v507 = vld [vmem:[%s466 + $0x38] sm:$0xff]
      %v508 = vmul.f32 %v500, %v492
      %v509 = vmul.f32 %v501, %v493
      %v510 = vmul.f32 %v502, %v494
      %v511 = vmul.f32 %v503, %v495
      %v512 = vmul.f32 %v504, %v496
      %v513 = vmul.f32 %v505, %v497
      %v514 = vmul.f32 %v506, %v498
      %v515 = vmul.f32 %v507, %v499
      %v516 = vld [vmem:[%s476] sm:$0xff]
      %v517 = vld [vmem:[%s476 + $0x8] sm:$0xff]
      %v518 = vld [vmem:[%s476 + $0x10] sm:$0xff]
      %v519 = vld [vmem:[%s476 + $0x18] sm:$0xff]
      %v520 = vld [vmem:[%s476 + $0x20] sm:$0xff]
      %v521 = vld [vmem:[%s476 + $0x28] sm:$0xff]
      %v522 = vld [vmem:[%s476 + $0x30] sm:$0xff]
      %v523 = vld [vmem:[%s476 + $0x38] sm:$0xff]
      %v524 = vadd.f32 %v508, %v516
      %v525 = vadd.f32 %v509, %v517
      %v526 = vadd.f32 %v510, %v518
      %v527 = vadd.f32 %v511, %v519
      %v528 = vadd.f32 %v512, %v520
      %v529 = vadd.f32 %v513, %v521
      %v530 = vadd.f32 %v514, %v522
      %v531 = vadd.f32 %v515, %v523
      %v532 = vld [vmem:[%s4] sm:$0x1]
      %v533 = vld [vmem:[%s5] sm:$0x1]
      %v534 = vand.u32 2147483647, %v533
      %v535 = vadd.f32 %v534, 1e-05
      %v536 = vrcp.pop %v535
      %v537 = vmul.f32 %v535, %v536
      %v538 = vsub.f32 1.0, %v537
      %v539 = vmul.f32 %v536, %v538
      %v540 = vadd.f32 %v536, %v539
      %vm541 = vweird.f32 %v535
      %vm542 = vweird.f32 %v536
      %vm543 = vmor %vm541, %vm542
      %v544 = vsel %vm543, %v536, %v540
      %v545 = vand.u32 2147483647, %v535
      %vm546 = vcmp.eq.f32.partialorder %v545, 8.507059e+37
      %v547 = vand.u32 %v535, 2147483648
      %v548 = vor.u32 1.1754944e-38, %v547
      %v549 = vsel %vm546, %v548, %v544
      %v550 = vmul.f32 1.0, %v549
      %552 = vset.pattern.permute.xlu0 0
      %553 = vperm.xlu0 %552, %v524
      %v554 = vpop.permute.xlu0 %553
      %557 = vset.pattern.permute.xlu0 0
      %558 = vperm.xlu0 %557, %v525
      %v559 = vpop.permute.xlu0 %558
      %562 = vset.pattern.permute.xlu0 0
      %563 = vperm.xlu0 %562, %v526
      %v564 = vpop.permute.xlu0 %563
      %567 = vset.pattern.permute.xlu0 0
      %568 = vperm.xlu0 %567, %v527
      %v569 = vpop.permute.xlu0 %568
      %572 = vset.pattern.permute.xlu0 0
      %573 = vperm.xlu0 %572, %v528
      %v574 = vpop.permute.xlu0 %573
      %577 = vset.pattern.permute.xlu0 0
      %578 = vperm.xlu0 %577, %v529
      %v579 = vpop.permute.xlu0 %578
      %582 = vset.pattern.permute.xlu0 0
      %583 = vperm.xlu0 %582, %v530
      %v584 = vpop.permute.xlu0 %583
      %587 = vset.pattern.permute.xlu0 0
      %588 = vperm.xlu0 %587, %v531
      %v589 = vpop.permute.xlu0 %588
      %v592 = vperm.slane %v532, 0
      %v594 = vsub.f32 %v554, %v592
      %v595 = vsub.f32 %v559, %v592
      %v596 = vsub.f32 %v564, %v592
      %v597 = vsub.f32 %v569, %v592
      %v598 = vsub.f32 %v574, %v592
      %v599 = vsub.f32 %v579, %v592
      %v600 = vsub.f32 %v584, %v592
      %v601 = vsub.f32 %v589, %v592
      %v603 = vperm.slane %v550, 0
      %v605 = vmul.f32 %v594, %v603
      %v606 = vmul.f32 %v595, %v603
      %v607 = vmul.f32 %v596, %v603
      %v608 = vmul.f32 %v597, %v603
      %v609 = vmul.f32 %v598, %v603
      %v610 = vmul.f32 %v599, %v603
      %v611 = vmul.f32 %v600, %v603
      %v612 = vmul.f32 %v601, %v603
      %v613 = vmul.f32 %v605, -0.5
      %v614 = vmul.f32 %v606, -0.5
      %v615 = vmul.f32 %v607, -0.5
      %v616 = vmul.f32 %v608, -0.5
      %v617 = vmul.f32 %v609, -0.5
      %v618 = vmul.f32 %v610, -0.5
      %v619 = vmul.f32 %v611, -0.5
      %v620 = vmul.f32 %v612, -0.5
      %v621 = vmul.f32 %v613, %v605
      %v622 = vmul.f32 %v614, %v606
      %v623 = vmul.f32 %v615, %v607
      %v624 = vmul.f32 %v616, %v608
      %v625 = vmul.f32 %v617, %v609
      %v626 = vmul.f32 %v618, %v610
      %v627 = vmul.f32 %v619, %v611
      %v628 = vmul.f32 %v620, %v612
      %v629 = vmul.f32 %v621, 1.442695
      %v630 = vpow.pop %v629
      %v631 = vmul.f32 %v622, 1.442695
      %v632 = vpow.pop %v631
      %v633 = vmul.f32 %v623, 1.442695
      %v634 = vpow.pop %v633
      %v635 = vmul.f32 %v624, 1.442695
      %v636 = vpow.pop %v635
      %v637 = vmul.f32 %v625, 1.442695
      %v638 = vpow.pop %v637
      %v639 = vmul.f32 %v626, 1.442695
      %v640 = vpow.pop %v639
      %v641 = vmul.f32 %v627, 1.442695
      %v642 = vpow.pop %v641
      %v643 = vmul.f32 %v628, 1.442695
      %v644 = vpow.pop %v643
      %v645 = vrcp.pop 2.5066273
      %v646 = vmul.f32 2.5066273, %v645
      %v647 = vsub.f32 1.0, %v646
      %v648 = vmul.f32 %v645, %v647
      %v649 = vadd.f32 %v645, %v648
      %vm650 = vweird.f32 %v645
      %v651 = vsel %vm650, %v645, %v649
      %v652 = vmul.f32 %v550, %v651
      %v654 = vperm.slane %v652, 0
      %v656 = vmul.f32 %v630, %v654
      %v657 = vmul.f32 %v632, %v654
      %v658 = vmul.f32 %v634, %v654
      %v659 = vmul.f32 %v636, %v654
      %v660 = vmul.f32 %v638, %v654
      %v661 = vmul.f32 %v640, %v654
      %v662 = vmul.f32 %v642, %v654
      %v663 = vmul.f32 %v644, %v654
      %v664 = vpack.c.bf16 %v657, %v656
      %v665 = vpack.c.bf16 %v659, %v658
      %v666 = vpack.c.bf16 %v661, %v660
      %v667 = vpack.c.bf16 %v663, %v662
      %v668 = vld [vmem:[%s6] sm:$0xff]
      %v669 = vld [vmem:[%s6 + $0x8] sm:$0xff]
      %v670 = vld [vmem:[%s6 + $0x10] sm:$0xff]
      %v671 = vld [vmem:[%s6 + $0x18] sm:$0xff]
      %v672 = vld [vmem:[%s6 + $0x20] sm:$0xff]
      %v673 = vld [vmem:[%s6 + $0x28] sm:$0xff]
      %v674 = vld [vmem:[%s6 + $0x30] sm:$0xff]
      %v675 = vld [vmem:[%s6 + $0x38] sm:$0xff]
      %v676 = vld [vmem:[%s6 + $0x40] sm:$0xff]
      %v677 = vld [vmem:[%s6 + $0x48] sm:$0xff]
      %v678 = vld [vmem:[%s6 + $0x50] sm:$0xff]
      %v679 = vld [vmem:[%s6 + $0x58] sm:$0xff]
      %v680 = vld [vmem:[%s6 + $0x60] sm:$0xff]
      %v681 = vld [vmem:[%s6 + $0x68] sm:$0xff]
      %v682 = vld [vmem:[%s6 + $0x70] sm:$0xff]
      %v683 = vld [vmem:[%s6 + $0x78] sm:$0xff]
      %v684 = vpack.c.bf16 %v669, %v668
      %v685 = vpack.c.bf16 %v671, %v670
      %v686 = vpack.c.bf16 %v673, %v672
      %v687 = vpack.c.bf16 %v675, %v674
      %v688 = vpack.c.bf16 %v677, %v676
      %v689 = vpack.c.bf16 %v679, %v678
      %v690 = vpack.c.bf16 %v681, %v680
      %v691 = vpack.c.bf16 %v683, %v682
      %v692 = vld [vmem:[%s7] sm:$0x1]
      %v694 = vperm.slane %v692, 0
      %696 = vmatpush.bf16.msra.mxu0 %v691
      %697 = vmatpush.bf16.msra.mxu0 %v690
      %698 = vmatpush.bf16.msra.mxu0 %v689
      %699 = vmatpush.bf16.msra.mxu0 %v688
      %700 = vmatpush.bf16.msra.mxu0 %v687
      %701 = vmatpush.bf16.msra.mxu0 %v686
      %702 = vmatpush.bf16.msra.mxu0 %v685
      %703 = vmatpush.bf16.msra.mxu0 %v684
      %704 = vmatmul.bf16.gmra.mxu0 %v664
      %v705 = vpop.f32.mrf.mxu0
      %v706 = vadd.f32 %v694, %v705
      %v707 = vpop.f32.mrf.mxu0
      %v708 = vadd.f32 %v694, %v707
      %709 = vmatmul.bf16.gmra.mxu0 %v665
      %v710 = vpop.f32.mrf.mxu0
      %v711 = vadd.f32 %v694, %v710
      %v712 = vpop.f32.mrf.mxu0
      %v713 = vadd.f32 %v694, %v712
      %714 = vmatmul.bf16.gmra.mxu0 %v666
      %v715 = vpop.f32.mrf.mxu0
      %v716 = vadd.f32 %v694, %v715
      %v717 = vpop.f32.mrf.mxu0
      %v718 = vadd.f32 %v694, %v717
      %719 = vmatmul.bf16.gmra.mxu0 %v667
      %v720 = vpop.f32.mrf.mxu0
      %v721 = vadd.f32 %v694, %v720
      %v722 = vpop.f32.mrf.mxu0
      %v723 = vadd.f32 %v694, %v722
      %724 = vdwg.mxu0
      %v725 = vmul.f32 %v706, 0.5
      %v726 = vmul.f32 %v708, 0.5
      %v727 = vmul.f32 %v711, 0.5
      %v728 = vmul.f32 %v713, 0.5
      %v729 = vmul.f32 %v716, 0.5
      %v730 = vmul.f32 %v718, 0.5
      %v731 = vmul.f32 %v721, 0.5
      %v732 = vmul.f32 %v723, 0.5
      %v733 = vmul.f32 %v706, 0.70710677
      %v734 = vmul.f32 %v708, 0.70710677
      %v735 = vmul.f32 %v711, 0.70710677
      %v736 = vmul.f32 %v713, 0.70710677
      %v737 = vmul.f32 %v716, 0.70710677
      %v738 = vmul.f32 %v718, 0.70710677
      %v739 = vmul.f32 %v721, 0.70710677
      %v740 = vmul.f32 %v723, 0.70710677
      %v741 = vand.u32 2147483647, %v733
      %v742 = vand.u32 2147483647, %v734
      %v743 = vand.u32 2147483647, %v735
      %v744 = vand.u32 2147483647, %v736
      %v745 = vand.u32 2147483647, %v737
      %v746 = vand.u32 2147483647, %v738
      %v747 = vand.u32 2147483647, %v739
      %v748 = vand.u32 2147483647, %v740
      %v749 = vmul.f32 %v741, 0.3275911
      %v750 = vmul.f32 %v742, 0.3275911
      %v751 = vmul.f32 %v743, 0.3275911
      %v752 = vmul.f32 %v744, 0.3275911
      %v753 = vmul.f32 %v745, 0.3275911
      %v754 = vmul.f32 %v746, 0.3275911
      %v755 = vmul.f32 %v747, 0.3275911
      %v756 = vmul.f32 %v748, 0.3275911
      %v757 = vadd.f32 %v749, 1.0
      %v758 = vadd.f32 %v750, 1.0
      %v759 = vadd.f32 %v751, 1.0
      %v760 = vadd.f32 %v752, 1.0
      %v761 = vadd.f32 %v753, 1.0
      %v762 = vadd.f32 %v754, 1.0
      %v763 = vadd.f32 %v755, 1.0
      %v764 = vadd.f32 %v756, 1.0
      %v765 = vrcp.pop %v757
      %v766 = vrcp.pop %v758
      %v767 = vrcp.pop %v759
      %v768 = vrcp.pop %v760
      %v769 = vrcp.pop %v761
      %v770 = vrcp.pop %v762
      %v771 = vrcp.pop %v763
      %v772 = vrcp.pop %v764
      %v773 = vmul.f32 %v765, 1.0614054
      %v774 = vmul.f32 %v766, 1.0614054
      %v775 = vmul.f32 %v767, 1.0614054
      %v776 = vmul.f32 %v768, 1.0614054
      %v777 = vmul.f32 %v769, 1.0614054
      %v778 = vmul.f32 %v770, 1.0614054
      %v779 = vmul.f32 %v771, 1.0614054
      %v780 = vmul.f32 %v772, 1.0614054
      %v781 = vadd.f32 %v773, -1.4531521
      %v782 = vadd.f32 %v774, -1.4531521
      %v783 = vadd.f32 %v775, -1.4531521
      %v784 = vadd.f32 %v776, -1.4531521
      %v785 = vadd.f32 %v777, -1.4531521
      %v786 = vadd.f32 %v778, -1.4531521
      %v787 = vadd.f32 %v779, -1.4531521
      %v788 = vadd.f32 %v780, -1.4531521
      %v789 = vmul.f32 %v781, %v765
      %v790 = vmul.f32 %v782, %v766
      %v791 = vmul.f32 %v783, %v767
      %v792 = vmul.f32 %v784, %v768
      %v793 = vmul.f32 %v785, %v769
      %v794 = vmul.f32 %v786, %v770
      %v795 = vmul.f32 %v787, %v771
      %v796 = vmul.f32 %v788, %v772
      %v797 = vadd.f32 %v789, 1.4214138
      %v798 = vadd.f32 %v790, 1.4214138
      %v799 = vadd.f32 %v791, 1.4214138
      %v800 = vadd.f32 %v792, 1.4214138
      %v801 = vadd.f32 %v793, 1.4214138
      %v802 = vadd.f32 %v794, 1.4214138
      %v803 = vadd.f32 %v795, 1.4214138
      %v804 = vadd.f32 %v796, 1.4214138
      %v805 = vmul.f32 %v797, %v765
      %v806 = vmul.f32 %v798, %v766
      %v807 = vmul.f32 %v799, %v767
      %v808 = vmul.f32 %v800, %v768
      %v809 = vmul.f32 %v801, %v769
      %v810 = vmul.f32 %v802, %v770
      %v811 = vmul.f32 %v803, %v771
      %v812 = vmul.f32 %v804, %v772
      %v813 = vadd.f32 %v805, -0.28449672
      %v814 = vadd.f32 %v806, -0.28449672
      %v815 = vadd.f32 %v807, -0.28449672
      %v816 = vadd.f32 %v808, -0.28449672
      %v817 = vadd.f32 %v809, -0.28449672
      %v818 = vadd.f32 %v810, -0.28449672
      %v819 = vadd.f32 %v811, -0.28449672
      %v820 = vadd.f32 %v812, -0.28449672
      %v821 = vmul.f32 %v813, %v765
      %v822 = vmul.f32 %v814, %v766
      %v823 = vmul.f32 %v815, %v767
      %v824 = vmul.f32 %v816, %v768
      %v825 = vmul.f32 %v817, %v769
      %v826 = vmul.f32 %v818, %v770
      %v827 = vmul.f32 %v819, %v771
      %v828 = vmul.f32 %v820, %v772
      %v829 = vadd.f32 %v821, 0.2548296
      %v830 = vadd.f32 %v822, 0.2548296
      %v831 = vadd.f32 %v823, 0.2548296
      %v832 = vadd.f32 %v824, 0.2548296
      %v833 = vadd.f32 %v825, 0.2548296
      %v834 = vadd.f32 %v826, 0.2548296
      %v835 = vadd.f32 %v827, 0.2548296
      %v836 = vadd.f32 %v828, 0.2548296
      %v837 = vmul.f32 %v829, %v765
      %v838 = vmul.f32 %v830, %v766
      %v839 = vmul.f32 %v831, %v767
      %v840 = vmul.f32 %v832, %v768
      %v841 = vmul.f32 %v833, %v769
      %v842 = vmul.f32 %v834, %v770
      %v843 = vmul.f32 %v835, %v771
      %v844 = vmul.f32 %v836, %v772
      %v845 = vsub.f32 0.0, %v741
      %v846 = vsub.f32 0.0, %v742
      %v847 = vsub.f32 0.0, %v743
      %v848 = vsub.f32 0.0, %v744
      %v849 = vsub.f32 0.0, %v745
      %v850 = vsub.f32 0.0, %v746
      %v851 = vsub.f32 0.0, %v747
      %v852 = vsub.f32 0.0, %v748
      %v853 = vmul.f32 %v845, %v741
      %v854 = vmul.f32 %v846, %v742
      %v855 = vmul.f32 %v847, %v743
      %v856 = vmul.f32 %v848, %v744
      %v857 = vmul.f32 %v849, %v745
      %v858 = vmul.f32 %v850, %v746
      %v859 = vmul.f32 %v851, %v747
      %v860 = vmul.f32 %v852, %v748
      %v861 = vmul.f32 %v853, 1.442695
      %v862 = vpow.pop %v861
      %v863 = vmul.f32 %v854, 1.442695
      %v864 = vpow.pop %v863
      %v865 = vmul.f32 %v855, 1.442695
      %v866 = vpow.pop %v865
      %v867 = vmul.f32 %v856, 1.442695
      %v868 = vpow.pop %v867
      %v869 = vmul.f32 %v857, 1.442695
      %v870 = vpow.pop %v869
      %v871 = vmul.f32 %v858, 1.442695
      %v872 = vpow.pop %v871
      %v873 = vmul.f32 %v859, 1.442695
      %v874 = vpow.pop %v873
      %v875 = vmul.f32 %v860, 1.442695
      %v876 = vpow.pop %v875
      %v877 = vmul.f32 %v837, %v862
      %v878 = vmul.f32 %v838, %v864
      %v879 = vmul.f32 %v839, %v866
      %v880 = vmul.f32 %v840, %v868
      %v881 = vmul.f32 %v841, %v870
      %v882 = vmul.f32 %v842, %v872
      %v883 = vmul.f32 %v843, %v874
      %v884 = vmul.f32 %v844, %v876
      %v885 = vsub.f32 1.0, %v877
      %v886 = vsub.f32 1.0, %v878
      %v887 = vsub.f32 1.0, %v879
      %v888 = vsub.f32 1.0, %v880
      %v889 = vsub.f32 1.0, %v881
      %v890 = vsub.f32 1.0, %v882
      %v891 = vsub.f32 1.0, %v883
      %v892 = vsub.f32 1.0, %v884
      %vm893 = vcmp.lt.f32.partialorder %v733, 0.0
      %vm894 = vcmp.lt.f32.partialorder %v734, 0.0
      %vm895 = vcmp.lt.f32.partialorder %v735, 0.0
      %vm896 = vcmp.lt.f32.partialorder %v736, 0.0
      %vm897 = vcmp.lt.f32.partialorder %v737, 0.0
      %vm898 = vcmp.lt.f32.partialorder %v738, 0.0
      %vm899 = vcmp.lt.f32.partialorder %v739, 0.0
      %vm900 = vcmp.lt.f32.partialorder %v740, 0.0
      %v901 = vsub.f32 0.0, %v885
      %v902 = vsub.f32 0.0, %v886
      %v903 = vsub.f32 0.0, %v887
      %v904 = vsub.f32 0.0, %v888
      %v905 = vsub.f32 0.0, %v889
      %v906 = vsub.f32 0.0, %v890
      %v907 = vsub.f32 0.0, %v891
      %v908 = vsub.f32 0.0, %v892
      %v909 = vsel %vm893, %v901, %v885
      %v910 = vsel %vm894, %v902, %v886
      %v911 = vsel %vm895, %v903, %v887
      %v912 = vsel %vm896, %v904, %v888
      %v913 = vsel %vm897, %v905, %v889
      %v914 = vsel %vm898, %v906, %v890
      %v915 = vsel %vm899, %v907, %v891
      %v916 = vsel %vm900, %v908, %v892
      %v917 = vadd.f32 %v909, 1.0
      %v918 = vadd.f32 %v910, 1.0
      %v919 = vadd.f32 %v911, 1.0
      %v920 = vadd.f32 %v912, 1.0
      %v921 = vadd.f32 %v913, 1.0
      %v922 = vadd.f32 %v914, 1.0
      %v923 = vadd.f32 %v915, 1.0
      %v924 = vadd.f32 %v916, 1.0
      %v925 = vmul.f32 %v725, %v917
      %v926 = vmul.f32 %v726, %v918
      %v927 = vmul.f32 %v727, %v919
      %v928 = vmul.f32 %v728, %v920
      %v929 = vmul.f32 %v729, %v921
      %v930 = vmul.f32 %v730, %v922
      %v931 = vmul.f32 %v731, %v923
      %v932 = vmul.f32 %v732, %v924
      %v933 = vld [vmem:[%s8] sm:$0xf]
      %v934 = vpack.c.bf16 %v933, %v933
      %v935 = vpack.c.bf16 %v926, %v925
      %v936 = vpack.c.bf16 %v928, %v927
      %v937 = vpack.c.bf16 %v930, %v929
      %v938 = vpack.c.bf16 %v932, %v931
      %v939 = vld [vmem:[%s9] sm:$0xf]
      %941 = vset.pattern.permute.xlu0 0
      %942 = vperm.xlu0 %941, %v939
      %v943 = vpop.permute.xlu0 %942
      %945 = vmatpush.bf16.xpose.msra.mxu0 0
      %946 = vmatpush.bf16.xpose.msra.mxu0 0
      %947 = vmatpush.bf16.xpose.msra.mxu0 0
      %948 = vmatpush.bf16.xpose.msra.mxu0 0
      %949 = vmatpush.bf16.xpose.msra.mxu0 %v938
      %950 = vmatpush.bf16.xpose.msra.mxu0 %v937
      %951 = vmatpush.bf16.xpose.msra.mxu0 %v936
      %952 = vmatpush.bf16.xpose.msra.mxu0 %v935
      %953 = vmatmul.bf16.gmra.mxu0 %v934
      %v954 = vpop.f32.mrf.mxu0
      %v955 = vadd.f32 %v943, %v954
      %v956 = vpop.f32.mrf.mxu0
      %957 = vdwg.mxu0
      %v958 = vld [vmem:[%s483] sm:$0x1]
      %vm959 = vcmp.gt.f32.partialorder %v958, 0.5
      %v960 = vsel %vm959, 1, 0
      %v961 = vperm.slane %v960, 0
      %vm962 = vcmp.eq.s32.totalorder %v961, 1
      %v963 = vsel %vm962, -inf, %v955
      %vm964 = vcmask 519168
      %965 = vst.msk [vmem:[%s490] sm:$0xf] %vm964, %v963
      %p966 = scmp.lt.s32.totalorder %s25, 1
      %s967 = scalar_select %p966, %s25, 1
      %p968 = scmp.lt.s32.totalorder %s26, 0
      %s969 = scalar_select %p968, %s26, 0
      %s970 = sadd.s32 %s969, %s967
      %s971 = smul.addr %s970, 4
      %s972 = scalar_lea.vmem %s10, %s971
      // Predicated region
      $region61: #{unimol_encoder_forward.5} parent=59 // pred_check
        %p973 = pneg %p291
      $region62: #{unimol_encoder_forward.5} parent=59 // pred_check_branch
        %975 = sbr.rel (%p973) target = $region64
      $region63: #{unimol_encoder_forward.5} parent=59 // pred_region
        _
      $region64: #{unimol_encoder_forward.5} parent=59 // pred_fallthru
        _
    $region60: #{unimol_encoder_forward.5} parent=5 // pred_fallthru
      _
    %p976 = scmp.le.s32.totalorder 2, %s16
    // Predicated region
    $region65: #{unimol_encoder_forward.5} parent=5 // pred_check
      %p977 = pneg %p976
    $region66: #{unimol_encoder_forward.5} parent=5 // pred_check_branch
      %979 = sbr.rel (%p977) target = $region68
    $region67: #{unimol_encoder_forward.5} parent=5 // pred_region
      %s980 = ssub.s32 %s16, 2
      // Predicated region
      $region69: #{unimol_encoder_forward.5} parent=67 // pred_check
        %p981 = pneg %p297
      $region70: #{unimol_encoder_forward.5} parent=67 // pred_check_branch
        %983 = sbr.rel (%p981) target = $region72
      $region71: #{unimol_encoder_forward.5} parent=67 // pred_region
        %p984 = scmp.lt.s32.totalorder %s27, 1
        %s985 = scalar_select %p984, %s27, 1
        %p986 = scmp.lt.s32.totalorder %s28, 0
        %s987 = scalar_select %p986, %s28, 0
        %s988 = sadd.s32 %s987, %s985
        %s989 = smul.addr %s988, 4
        %s990 = scalar_lea.vmem %s10, %s989
      $region72: #{unimol_encoder_forward.5} parent=67 // pred_fallthru
        _
    $region68: #{unimol_encoder_forward.5} parent=5 // pred_fallthru
      _
  $region6: #{unimol_encoder_forward.5} parent=0 // loop_footer
    %s20 = sadd.s32 1, %s16
  $region7: #{unimol_encoder_forward.5} parent=0 // loop_footer_branch
    %15 = sbr.rel target = $region3
  $region8: #{unimol_encoder_forward.5} parent=0 // loop_exit
    _

// kernel: unimol_encoder_forward.9
$region0: #{unimol_encoder_forward.9}
  #allocation0 [shape = 'u32[]', space=smem, size = 0x4, offset = 0x4, fixed_abs, tag = 'smem constant byte address 0x4 - core index']
  #allocation1 [shape = 'u32[72,128]{1,0:T(1,128)}', space=vmem, size = 0x9000, scoped, tag = 'internal scratch']
  %s0 = inlined_call_operand.vmem [shape: f32[2,8,32], index: 0, kind: input, shape index: {}]
  %s1 = inlined_call_operand.vmem [shape: f32[1,32], index: 1, kind: input, shape index: {}]
  %s2 = inlined_call_operand.vmem [shape: f32[1,32], index: 2, kind: input, shape index: {}]
  %s3 = inlined_call_operand.vmem [shape: f32[2,8,1], index: 3, kind: input, shape index: {}]
  %s4 = inlined_call_operand.hbm [shape: f32[2,8,32], index: 4, kind: output, shape index: {}]
  %s5 = sld [smem:[#allocation0]]
  $region49: #{unimol_encoder_forward.9} parent=0
    _
  %s7 = ssub.s32 1, %s5
  %s8 = scalar_select 0, %s7, %s5
  $region1: #{unimol_encoder_forward.9} parent=0
    #allocation2 [shape = 'u8[8192]{0}', space=vmem, size = 0x2000, scoped, tag = 'output window, operand 0']
    #allocation3 [shape = 's32[2]{0}', space=sflag, size = 0x8, scoped, tag = 'scoped memory for unimol_encoder_forward.9']
    %9 = vsyncpa [#allocation3], 0
    %s10 = scalar_lea.sflag [#allocation3], 1
    %11 = vsyncpa %s10, 0
    loop: start=0, step=1, limit=4
    $region2: #{unimol_encoder_forward.9} parent=1 // loop_pre_header
      _
    $region3: #{unimol_encoder_forward.9} parent=1 // loop_header
      %s13 = sphi 0, %s17
      %p14 = scmp.ge.s32.totalorder %s13, 4
      %s23 = sphi 0, %s25
      %s26 = sphi 0, %s23
      %s27 = sphi 0, %s26
      %s43 = sphi 0, %s27
      %s47 = sphi 0, %s47
      %s49 = sphi 0, %s47
      %s50 = sphi 0, %s49
      %s64 = sphi 0, %s50
      %s68 = sphi 0, %s68
      %s70 = sphi 0, %s68
      %s71 = sphi 0, %s70
      %s85 = sphi 0, %s71
      %s91 = sphi 0, %s93
      %s94 = sphi 0, %s91
      %s95 = sphi 0, %s94
      %s111 = sphi 0, %s95
      %s117 = sphi 0, %s119
      %s120 = sphi 0, %s117
      %s121 = sphi 0, %s120
      %s137 = sphi 0, %s121
    $region4: #{unimol_encoder_forward.9} parent=1 // loop_header_branch
      %16 = sbr.rel (%p14) target = $region8
    $region5: #{unimol_encoder_forward.9} parent=1 // loop_body
      %s18 = ssub.s32 %s13, 1
      %s19 = ssub.s32 %s13, 2
      %s20 = sadd.s32 %s13, 1
      %s21 = ssub.s32 %s13, %s20
      %p22 = scmp.eq.s32.totalorder %s21, 0
      %s24 = sadd.s32 %s23, 1
      %s25 = scalar_select %p22, %s23, %s24
      %p28 = pneg %p22
      %p29 = scmp.eq.s32.totalorder %s13, 1
      %p30 = por %p28, %p29
      %p31 = scmp.ne.s32.totalorder %s23, %s26
      %p32 = scmp.eq.s32.totalorder %s13, 0
      %p33 = por %p31, %p32
      %p34 = scmp.ne.s32.totalorder %s23, %s26
      %p35 = scmp.eq.s32.totalorder %s18, 1
      %p36 = por %p34, %p35
      %p37 = scmp.ne.s32.totalorder %s26, %s27
      %p38 = scmp.eq.s32.totalorder %s18, 0
      %p39 = por %p37, %p38
      %p40 = scmp.ne.s32.totalorder %s26, %s27
      %p41 = scmp.eq.s32.totalorder %s19, 1
      %p42 = por %p40, %p41
      %p44 = scmp.ne.s32.totalorder %s27, %s43
      %p45 = scmp.eq.s32.totalorder %s19, 0
      %p46 = por %p44, %p45
      %s48 = sadd.s32 %s47, 1
      %p51 = scmp.eq.s32.totalorder %s13, 1
      %p52 = scmp.ne.s32.totalorder %s47, %s49
      %p53 = scmp.eq.s32.totalorder %s13, 0
      %p54 = por %p52, %p53
      %p55 = scmp.ne.s32.totalorder %s47, %s49
      %p56 = scmp.eq.s32.totalorder %s18, 1
      %p57 = por %p55, %p56
      %p58 = scmp.ne.s32.totalorder %s49, %s50
      %p59 = scmp.eq.s32.totalorder %s18, 0
      %p60 = por %p58, %p59
      %p61 = scmp.ne.s32.totalorder %s49, %s50
      %p62 = scmp.eq.s32.totalorder %s19, 1
      %p63 = por %p61, %p62
      %p65 = scmp.ne.s32.totalorder %s50, %s64
      %p66 = scmp.eq.s32.totalorder %s19, 0
      %p67 = por %p65, %p66
      %s69 = sadd.s32 %s68, 1
      %p72 = scmp.eq.s32.totalorder %s13, 1
      %p73 = scmp.ne.s32.totalorder %s68, %s70
      %p74 = scmp.eq.s32.totalorder %s13, 0
      %p75 = por %p73, %p74
      %p76 = scmp.ne.s32.totalorder %s68, %s70
      %p77 = scmp.eq.s32.totalorder %s18, 1
      %p78 = por %p76, %p77
      %p79 = scmp.ne.s32.totalorder %s70, %s71
      %p80 = scmp.eq.s32.totalorder %s18, 0
      %p81 = por %p79, %p80
      %p82 = scmp.ne.s32.totalorder %s70, %s71
      %p83 = scmp.eq.s32.totalorder %s19, 1
      %p84 = por %p82, %p83
      %p86 = scmp.ne.s32.totalorder %s71, %s85
      %p87 = scmp.eq.s32.totalorder %s19, 0
      %p88 = por %p86, %p87
      %s89 = ssub.s32 %s13, %s20
      %p90 = scmp.eq.s32.totalorder %s89, 0
      %s92 = sadd.s32 %s91, 1
      %s93 = scalar_select %p90, %s91, %s92
      %p96 = pneg %p90
      %p97 = scmp.eq.s32.totalorder %s13, 1
      %p98 = por %p96, %p97
      %p99 = scmp.ne.s32.totalorder %s91, %s94
      %p100 = scmp.eq.s32.totalorder %s13, 0
      %p101 = por %p99, %p100
      %p102 = scmp.ne.s32.totalorder %s91, %s94
      %p103 = scmp.eq.s32.totalorder %s18, 1
      %p104 = por %p102, %p103
      %p105 = scmp.ne.s32.totalorder %s94, %s95
      %p106 = scmp.eq.s32.totalorder %s18, 0
      %p107 = por %p105, %p106
      %p108 = scmp.ne.s32.totalorder %s94, %s95
      %p109 = scmp.eq.s32.totalorder %s19, 1
      %p110 = por %p108, %p109
      %p112 = scmp.ne.s32.totalorder %s95, %s111
      %p113 = scmp.eq.s32.totalorder %s19, 0
      %p114 = por %p112, %p113
      %s115 = ssub.s32 %s13, %s20
      %p116 = scmp.eq.s32.totalorder %s115, 0
      %s118 = sadd.s32 %s117, 1
      %s119 = scalar_select %p116, %s117, %s118
      %p122 = pneg %p116
      %p123 = scmp.eq.s32.totalorder %s13, 1
      %p124 = por %p122, %p123
      %p125 = scmp.ne.s32.totalorder %s117, %s120
      %p126 = scmp.eq.s32.totalorder %s13, 0
      %p127 = por %p125, %p126
      %p128 = scmp.ne.s32.totalorder %s117, %s120
      %p129 = scmp.eq.s32.totalorder %s18, 1
      %p130 = por %p128, %p129
      %p131 = scmp.ne.s32.totalorder %s120, %s121
      %p132 = scmp.eq.s32.totalorder %s18, 0
      %p133 = por %p131, %p132
      %p134 = scmp.ne.s32.totalorder %s120, %s121
      %p135 = scmp.eq.s32.totalorder %s19, 1
      %p136 = por %p134, %p135
      %p138 = scmp.ne.s32.totalorder %s121, %s137
      %p139 = scmp.eq.s32.totalorder %s19, 0
      %p140 = por %p138, %p139
      %p141 = scmp.le.s32.totalorder 1, %s13
      %p142 = scmp.lt.s32.totalorder %s13, 3
      %p143 = pnand %p141, %p142
      %p144 = pneg %p143
      // Predicated region
      $region9: #{unimol_encoder_forward.9} parent=5 // pred_check
        _
      $region10: #{unimol_encoder_forward.9} parent=5 // pred_check_branch
        %146 = sbr.rel (%p143) target = $region12
      $region11: #{unimol_encoder_forward.9} parent=5 // pred_region
        %s147 = ssub.s32 %s13, 1
        // Predicated region
        $region13: #{unimol_encoder_forward.9} parent=11 // pred_check
          %p148 = pneg %p60
        $region14: #{unimol_encoder_forward.9} parent=11 // pred_check_branch
          %150 = sbr.rel (%p148) target = $region16
        $region15: #{unimol_encoder_forward.9} parent=11 // pred_region
          _
        $region16: #{unimol_encoder_forward.9} parent=11 // pred_fallthru
          _
        // Predicated region
        $region17: #{unimol_encoder_forward.9} parent=11 // pred_check
          %p151 = pneg %p81
        $region18: #{unimol_encoder_forward.9} parent=11 // pred_check_branch
          %153 = sbr.rel (%p151) target = $region20
        $region19: #{unimol_encoder_forward.9} parent=11 // pred_region
          _
        $region20: #{unimol_encoder_forward.9} parent=11 // pred_fallthru
          _
      $region12: #{unimol_encoder_forward.9} parent=5 // pred_fallthru
        _
      %p154 = scmp.lt.s32.totalorder %s13, 2
      // Predicated region
      $region21: #{unimol_encoder_forward.9} parent=5 // pred_check
        %p155 = pneg %p154
      $region22: #{unimol_encoder_forward.9} parent=5 // pred_check_branch
        %157 = sbr.rel (%p155) target = $region24
      $region23: #{unimol_encoder_forward.9} parent=5 // pred_region
        // Predicated region
        $region25: #{unimol_encoder_forward.9} parent=23 // pred_check
          %p158 = pneg %p33
        $region26: #{unimol_encoder_forward.9} parent=23 // pred_check_branch
          %160 = sbr.rel (%p158) target = $region28
        $region27: #{unimol_encoder_forward.9} parent=23 // pred_region
          %p161 = scmp.lt.s32.totalorder %s13, 1
          %s162 = scalar_select %p161, %s13, 1
          %s163 = smul.addr %s162, 8
          %s164 = scalar_lea.vmem %s0, %s163
        $region28: #{unimol_encoder_forward.9} parent=23 // pred_fallthru
          _
        // Predicated region
        $region29: #{unimol_encoder_forward.9} parent=23 // pred_check
          %p165 = pneg %p101
        $region30: #{unimol_encoder_forward.9} parent=23 // pred_check_branch
          %167 = sbr.rel (%p165) target = $region32
        $region31: #{unimol_encoder_forward.9} parent=23 // pred_region
          %p168 = scmp.lt.s32.totalorder %s13, 1
          %s169 = scalar_select %p168, %s13, 1
          %s170 = smul.addr %s169, 8
          %s171 = scalar_lea.vmem %s3, %s170
        $region32: #{unimol_encoder_forward.9} parent=23 // pred_fallthru
          _
      $region24: #{unimol_encoder_forward.9} parent=5 // pred_fallthru
        _
      %p172 = scmp.le.s32.totalorder 1, %s13
      %p173 = scmp.lt.s32.totalorder %s13, 3
      %p174 = pnand %p172, %p173
      %p175 = pneg %p174
      // Predicated region
      $region33: #{unimol_encoder_forward.9} parent=5 // pred_check
        _
      $region34: #{unimol_encoder_forward.9} parent=5 // pred_check_branch
        %177 = sbr.rel (%p174) target = $region36
      $region35: #{unimol_encoder_forward.9} parent=5 // pred_region
        %s178 = ssub.s32 %s13, 1
        %p179 = scmp.lt.s32.totalorder %s18, 1
        %s180 = scalar_select %p179, %s18, 1
        %s181 = smul.addr %s180, 8
        %s182 = scalar_lea.vmem %s0, %s181
        %p183 = pneg %p39
        %p184 = pneg %p36
        %p185 = pneg %p60
        %p186 = pneg %p57
        %p187 = pneg %p81
        %p188 = pneg %p78
        %p189 = scmp.lt.s32.totalorder %s18, 1
        %s190 = scalar_select %p189, %s18, 1
        %s191 = smul.addr %s190, 8
        %s192 = scalar_lea.vmem %s3, %s191
        %p193 = pneg %p107
        %p194 = pneg %p104
        %p195 = pneg %p133
        %p196 = pneg %p130
        %s197 = sand.u32 %s120, 1
        %s198 = scalar_lea.sflag [#allocation3], %s197
        %s199 = sand.u32 %s120, 1
        %s200 = smul.addr %s199, 8
        %s201 = scalar_lea.vmem [#allocation2], %s200
        %p202 = scmp.lt.s32.totalorder %s18, 1
        %s203 = scalar_select %p202, %s18, 1
        %s204 = smul.addr %s203, 8
        %s205 = scalar_lea.vmem %s0, %s204
        %p206 = scmp.lt.s32.totalorder %s18, 1
        %s207 = scalar_select %p206, %s18, 1
        %s208 = smul.addr %s207, 8
        %s209 = scalar_lea.vmem %s3, %s208
        %v210 = vld [vmem:[%s205] sm:$0xff]
        %v211 = vld [vmem:[%s1] sm:$0x1]
        %v212 = vld [vmem:[%s2] sm:$0x1]
        %vm213 = vcmask 261120
        %v214 = vsel %vm213, %v210, 0.0
        %215 = vadd.xlane.f32.xlu0 %v214
        %v216 = vpop.xlane.xlu0 %215
        %v217 = vrcp.pop 32.0
        %v218 = vmul.f32 32.0, %v217
        %v219 = vsub.f32 1.0, %v218
        %v220 = vmul.f32 %v217, %v219
        %v221 = vadd.f32 %v217, %v220
        %vm222 = vweird.f32 %v217
        %v223 = vsel %vm222, %v217, %v221
        %v224 = vmul.f32 %v216, %v223
        %v225 = vsub.f32 %v210, %v224
        %v226 = vmul.f32 %v225, %v225
        %v227 = vsel %vm213, %v226, 0.0
        %228 = vadd.xlane.f32.xlu0 %v227
        %v229 = vpop.xlane.xlu0 %228
        %v230 = vmul.f32 %v229, %v223
        %v231 = vadd.f32 %v230, 1e-05
        %v232 = vrsqrt.pop %v231
        %v233 = vmul.f32 %v232, %v231
        %v234 = vmul.f32 %v233, %v232
        %v235 = vmul.f32 0.5, %v234
        %v236 = vsub.f32 1.5, %v235
        %v237 = vmul.f32 %v232, %v236
        %vm238 = vweird.f32 %v231
        %vm239 = vweird.f32 %v232
        %vm240 = vmor %vm238, %vm239
        %v241 = vsel %vm240, %v232, %v237
        %v242 = vmul.f32 %v225, %v241
        %v244 = vperm.slane %v211, 0
        %v246 = vmul.f32 %v242, %v244
        %v248 = vperm.slane %v212, 0
        %v250 = vadd.f32 %v246, %v248
        %v251 = vld [vmem:[%s209] sm:$0xff]
        %253 = vset.pattern.permute.xlu0 0
        %254 = vperm.xlu0 %253, %v251
        %v255 = vpop.permute.xlu0 %254
        %v257 = vmul.f32 %v250, %v255
        %258 = vst.msk [vmem:[%s201] sm:$0xff] %vm213, %v257
        %s259 = sand.u32 %s120, 1
        %s260 = scalar_lea.sflag [#allocation3], %s259
        %s261 = sand.u32 %s120, 1
        %s262 = smul.addr %s261, 8
        %s263 = scalar_lea.vmem [#allocation2], %s262
        // Predicated region
        $region37: #{unimol_encoder_forward.9} parent=35 // pred_check
          %p264 = pneg %p130
        $region38: #{unimol_encoder_forward.9} parent=35 // pred_check_branch
          %266 = sbr.rel (%p264) target = $region40
        $region39: #{unimol_encoder_forward.9} parent=35 // pred_region
          %268 = vsyncadd %s260, 0
          %s269 = smul.addr %s18, 8
          %s270 = scalar_lea.hbm %s4, %s269
          %s272 = sshll.u32 %s263, 4
          %s273 = int_to_ptr.vmem [resolvable:$true] %s272
          %s274 = sshll.u32 %s270, 4
          %s275 = int_to_ptr.hbm [resolvable:$true] %s274
          %277 = dma.vmem_to_hbm [thread:$0]  %s273, 128, %s275, %s260
        $region40: #{unimol_encoder_forward.9} parent=35 // pred_fallthru
          _
      $region36: #{unimol_encoder_forward.9} parent=5 // pred_fallthru
        _
      %p278 = scmp.le.s32.totalorder 2, %s13
      // Predicated region
      $region41: #{unimol_encoder_forward.9} parent=5 // pred_check
        %p279 = pneg %p278
      $region42: #{unimol_encoder_forward.9} parent=5 // pred_check_branch
        %281 = sbr.rel (%p279) target = $region44
      $region43: #{unimol_encoder_forward.9} parent=5 // pred_region
        %s282 = ssub.s32 %s13, 2
        // Predicated region
        $region45: #{unimol_encoder_forward.9} parent=43 // pred_check
          %p283 = pneg %p136
        $region46: #{unimol_encoder_forward.9} parent=43 // pred_check_branch
          %285 = sbr.rel (%p283) target = $region48
        $region47: #{unimol_encoder_forward.9} parent=43 // pred_region
          %s286 = sand.u32 %s121, 1
          %s287 = scalar_lea.sflag [#allocation3], %s286
          %s288 = sand.u32 %s121, 1
          %s289 = smul.addr %s288, 8
          %s290 = scalar_lea.vmem [#allocation2], %s289
          %292 = dma.done %s287, 128
        $region48: #{unimol_encoder_forward.9} parent=43 // pred_fallthru
          _
      $region44: #{unimol_encoder_forward.9} parent=5 // pred_fallthru
        _
    $region6: #{unimol_encoder_forward.9} parent=1 // loop_footer
      %s17 = sadd.s32 1, %s13
    $region7: #{unimol_encoder_forward.9} parent=1 // loop_footer_branch
      %12 = sbr.rel target = $region3
    $region8: #{unimol_encoder_forward.9} parent=1 // loop_exit
      _
    %293 = vsyncpa [#allocation3], 1
    %s294 = scalar_lea.sflag [#allocation3], 1
    %295 = vsyncpa %s294, 1

// kernel: unimol_encoder_forward.7
$region0: #{unimol_encoder_forward.7}
  #allocation0 [shape = 'u32[]', space=smem, size = 0x4, offset = 0x4, fixed_abs, tag = 'smem constant byte address 0x4 - core index']
  #allocation1 [shape = 'u32[72,128]{1,0:T(1,128)}', space=vmem, size = 0x9000, scoped, tag = 'internal scratch']
  #allocation2 [shape = 'f32[8,32]{1,0:T(8,128)}', space=vmem, size = 0x1000, scoped, tag = 'scratch operand']
  #allocation3 [shape = 'f32[8,32]{1,0:T(8,128)}', space=vmem, size = 0x1000, scoped, tag = 'scratch operand']
  %s0 = inlined_call_operand.vmem [shape: f32[2,8,32], index: 0, kind: input, shape index: {}]
  %s1 = inlined_call_operand.vmem [shape: f32[2,4,8,8], index: 1, kind: input, shape index: {}]
  %s2 = inlined_call_operand.vmem [shape: f32[1,32], index: 2, kind: input, shape index: {}]
  %s3 = inlined_call_operand.vmem [shape: f32[1,32], index: 3, kind: input, shape index: {}]
  %s4 = inlined_call_operand.vmem [shape: f32[4,32,8], index: 4, kind: input, shape index: {}]
  %s5 = inlined_call_operand.vmem [shape: f32[4,1,8], index: 5, kind: input, shape index: {}]
  %s6 = inlined_call_operand.vmem [shape: f32[4,32,8], index: 6, kind: input, shape index: {}]
  %s7 = inlined_call_operand.vmem [shape: f32[4,1,8], index: 7, kind: input, shape index: {}]
  %s8 = inlined_call_operand.vmem [shape: f32[4,32,8], index: 8, kind: input, shape index: {}]
  %s9 = inlined_call_operand.vmem [shape: f32[4,1,8], index: 9, kind: input, shape index: {}]
  %s10 = inlined_call_operand.vmem [shape: f32[4,8,32], index: 10, kind: input, shape index: {}]
  %s11 = inlined_call_operand.vmem [shape: f32[1,32], index: 11, kind: input, shape index: {}]
  %s12 = inlined_call_operand.vmem [shape: f32[1,32], index: 12, kind: input, shape index: {}]
  %s13 = inlined_call_operand.vmem [shape: f32[1,32], index: 13, kind: input, shape index: {}]
  %s14 = inlined_call_operand.vmem [shape: f32[32,64], index: 14, kind: input, shape index: {}]
  %s15 = inlined_call_operand.vmem [shape: f32[1,64], index: 15, kind: input, shape index: {}]
  %s16 = inlined_call_operand.vmem [shape: f32[64,32], index: 16, kind: input, shape index: {}]
  %s17 = inlined_call_operand.vmem [shape: f32[1,32], index: 17, kind: input, shape index: {}]
  %s18 = inlined_call_operand.vmem [shape: f32[2,8,32], index: 18, kind: output, shape index: {0}]
  %s19 = inlined_call_operand.vmem [shape: f32[2,4,8,8], index: 19, kind: output, shape index: {1}]
  %20 = xla_tuple %s18, %s19
  %s21 = sld [smem:[#allocation0]]
  $region121: #{unimol_encoder_forward.7} parent=0
    _
  %s23 = ssub.s32 1, %s21
  %s24 = scalar_select 0, %s23, %s21
  loop: start=0, step=1, limit=6
  $region2: #{unimol_encoder_forward.7} parent=0 // loop_pre_header
    _
  $region3: #{unimol_encoder_forward.7} parent=0 // loop_header
    %s26 = sphi 0, %s30
    %p27 = scmp.ge.s32.totalorder %s26, 6
    %s33 = sphi 0, %s45
    %s34 = sphi 0, %s41
    %s35 = sphi 0, %s33
    %s36 = sphi 0, %s34
    %s37 = sphi 0, %s35
    %s38 = sphi 0, %s36
    %s48 = sphi 0, %s50
    %s51 = sphi 0, %s48
    %s52 = sphi 0, %s51
    %s68 = sphi 0, %s52
    %s76 = sphi 0, %s78
    %s79 = sphi 0, %s76
    %s80 = sphi 0, %s79
    %s96 = sphi 0, %s80
    %s100 = sphi 0, %s100
    %s102 = sphi 0, %s100
    %s103 = sphi 0, %s102
    %s117 = sphi 0, %s103
    %s121 = sphi 0, %s121
    %s123 = sphi 0, %s121
    %s124 = sphi 0, %s123
    %s138 = sphi 0, %s124
    %s144 = sphi 0, %s146
    %s147 = sphi 0, %s144
    %s148 = sphi 0, %s147
    %s164 = sphi 0, %s148
    %s170 = sphi 0, %s172
    %s173 = sphi 0, %s170
    %s174 = sphi 0, %s173
    %s190 = sphi 0, %s174
    %s196 = sphi 0, %s198
    %s199 = sphi 0, %s196
    %s200 = sphi 0, %s199
    %s216 = sphi 0, %s200
    %s222 = sphi 0, %s224
    %s225 = sphi 0, %s222
    %s226 = sphi 0, %s225
    %s242 = sphi 0, %s226
    %s248 = sphi 0, %s250
    %s251 = sphi 0, %s248
    %s252 = sphi 0, %s251
    %s268 = sphi 0, %s252
    %s274 = sphi 0, %s276
    %s277 = sphi 0, %s274
    %s278 = sphi 0, %s277
    %s294 = sphi 0, %s278
    %s300 = sphi 0, %s302
    %s303 = sphi 0, %s300
    %s304 = sphi 0, %s303
    %s320 = sphi 0, %s304
    %s324 = sphi 0, %s324
    %s326 = sphi 0, %s324
    %s327 = sphi 0, %s326
    %s341 = sphi 0, %s327
    %s345 = sphi 0, %s345
    %s347 = sphi 0, %s345
    %s348 = sphi 0, %s347
    %s362 = sphi 0, %s348
    %s366 = sphi 0, %s366
    %s368 = sphi 0, %s366
    %s369 = sphi 0, %s368
    %s383 = sphi 0, %s369
    %s387 = sphi 0, %s387
    %s389 = sphi 0, %s387
    %s390 = sphi 0, %s389
    %s404 = sphi 0, %s390
    %s408 = sphi 0, %s408
    %s410 = sphi 0, %s408
    %s411 = sphi 0, %s410
    %s425 = sphi 0, %s411
    %s429 = sphi 0, %s429
    %s431 = sphi 0, %s429
    %s432 = sphi 0, %s431
    %s446 = sphi 0, %s432
    %s450 = sphi 0, %s450
    %s452 = sphi 0, %s450
    %s453 = sphi 0, %s452
    %s467 = sphi 0, %s453
    %s473 = sphi 0, %s475
    %s476 = sphi 0, %s473
    %s477 = sphi 0, %s476
    %s493 = sphi 0, %s477
    %s501 = sphi 0, %s503
    %s504 = sphi 0, %s501
    %s505 = sphi 0, %s504
    %s521 = sphi 0, %s505
  $region4: #{unimol_encoder_forward.7} parent=0 // loop_header_branch
    %29 = sbr.rel (%p27) target = $region8
  $region5: #{unimol_encoder_forward.7} parent=0 // loop_body
    %s31 = ssub.s32 %s26, 1
    %s32 = ssub.s32 %s26, 2
    %s39 = sadd.s32 1, %s34
    %p40 = scmp.ge.s32.totalorder %s39, 2
    %s41 = scalar_select %p40, 0, %s39
    %s42 = sadd.s32 1, %s33
    %s43 = scalar_select %p40, %s42, %s33
    %p44 = scmp.ge.s32.totalorder %s43, 2
    %s45 = scalar_select %p44, 0, %s43
    %s46 = ssub.s32 %s33, %s45
    %p47 = scmp.eq.s32.totalorder %s46, 0
    %s49 = sadd.s32 %s48, 1
    %s50 = scalar_select %p47, %s48, %s49
    %p53 = pneg %p47
    %p54 = scmp.eq.s32.totalorder %s26, 3
    %p55 = por %p53, %p54
    %p56 = scmp.ne.s32.totalorder %s48, %s51
    %p57 = scmp.eq.s32.totalorder %s26, 0
    %p58 = por %p56, %p57
    %p59 = scmp.ne.s32.totalorder %s48, %s51
    %p60 = scmp.eq.s32.totalorder %s31, 3
    %p61 = por %p59, %p60
    %p62 = scmp.ne.s32.totalorder %s51, %s52
    %p63 = scmp.eq.s32.totalorder %s31, 0
    %p64 = por %p62, %p63
    %p65 = scmp.ne.s32.totalorder %s51, %s52
    %p66 = scmp.eq.s32.totalorder %s32, 3
    %p67 = por %p65, %p66
    %p69 = scmp.ne.s32.totalorder %s52, %s68
    %p70 = scmp.eq.s32.totalorder %s32, 0
    %p71 = por %p69, %p70
    %s72 = ssub.s32 %s33, %s45
    %s73 = ssub.s32 %s34, %s41
    %s74 = sor.u32 %s72, %s73
    %p75 = scmp.eq.s32.totalorder %s74, 0
    %s77 = sadd.s32 %s76, 1
    %s78 = scalar_select %p75, %s76, %s77
    %p81 = pneg %p75
    %p82 = scmp.eq.s32.totalorder %s26, 3
    %p83 = por %p81, %p82
    %p84 = scmp.ne.s32.totalorder %s76, %s79
    %p85 = scmp.eq.s32.totalorder %s26, 0
    %p86 = por %p84, %p85
    %p87 = scmp.ne.s32.totalorder %s76, %s79
    %p88 = scmp.eq.s32.totalorder %s31, 3
    %p89 = por %p87, %p88
    %p90 = scmp.ne.s32.totalorder %s79, %s80
    %p91 = scmp.eq.s32.totalorder %s31, 0
    %p92 = por %p90, %p91
    %p93 = scmp.ne.s32.totalorder %s79, %s80
    %p94 = scmp.eq.s32.totalorder %s32, 3
    %p95 = por %p93, %p94
    %p97 = scmp.ne.s32.totalorder %s80, %s96
    %p98 = scmp.eq.s32.totalorder %s32, 0
    %p99 = por %p97, %p98
    %s101 = sadd.s32 %s100, 1
    %p104 = scmp.eq.s32.totalorder %s26, 3
    %p105 = scmp.ne.s32.totalorder %s100, %s102
    %p106 = scmp.eq.s32.totalorder %s26, 0
    %p107 = por %p105, %p106
    %p108 = scmp.ne.s32.totalorder %s100, %s102
    %p109 = scmp.eq.s32.totalorder %s31, 3
    %p110 = por %p108, %p109
    %p111 = scmp.ne.s32.totalorder %s102, %s103
    %p112 = scmp.eq.s32.totalorder %s31, 0
    %p113 = por %p111, %p112
    %p114 = scmp.ne.s32.totalorder %s102, %s103
    %p115 = scmp.eq.s32.totalorder %s32, 3
    %p116 = por %p114, %p115
    %p118 = scmp.ne.s32.totalorder %s103, %s117
    %p119 = scmp.eq.s32.totalorder %s32, 0
    %p120 = por %p118, %p119
    %s122 = sadd.s32 %s121, 1
    %p125 = scmp.eq.s32.totalorder %s26, 3
    %p126 = scmp.ne.s32.totalorder %s121, %s123
    %p127 = scmp.eq.s32.totalorder %s26, 0
    %p128 = por %p126, %p127
    %p129 = scmp.ne.s32.totalorder %s121, %s123
    %p130 = scmp.eq.s32.totalorder %s31, 3
    %p131 = por %p129, %p130
    %p132 = scmp.ne.s32.totalorder %s123, %s124
    %p133 = scmp.eq.s32.totalorder %s31, 0
    %p134 = por %p132, %p133
    %p135 = scmp.ne.s32.totalorder %s123, %s124
    %p136 = scmp.eq.s32.totalorder %s32, 3
    %p137 = por %p135, %p136
    %p139 = scmp.ne.s32.totalorder %s124, %s138
    %p140 = scmp.eq.s32.totalorder %s32, 0
    %p141 = por %p139, %p140
    %s142 = ssub.s32 %s34, %s41
    %p143 = scmp.eq.s32.totalorder %s142, 0
    %s145 = sadd.s32 %s144, 1
    %s146 = scalar_select %p143, %s144, %s145
    %p149 = pneg %p143
    %p150 = scmp.eq.s32.totalorder %s26, 3
    %p151 = por %p149, %p150
    %p152 = scmp.ne.s32.totalorder %s144, %s147
    %p153 = scmp.eq.s32.totalorder %s26, 0
    %p154 = por %p152, %p153
    %p155 = scmp.ne.s32.totalorder %s144, %s147
    %p156 = scmp.eq.s32.totalorder %s31, 3
    %p157 = por %p155, %p156
    %p158 = scmp.ne.s32.totalorder %s147, %s148
    %p159 = scmp.eq.s32.totalorder %s31, 0
    %p160 = por %p158, %p159
    %p161 = scmp.ne.s32.totalorder %s147, %s148
    %p162 = scmp.eq.s32.totalorder %s32, 3
    %p163 = por %p161, %p162
    %p165 = scmp.ne.s32.totalorder %s148, %s164
    %p166 = scmp.eq.s32.totalorder %s32, 0
    %p167 = por %p165, %p166
    %s168 = ssub.s32 %s34, %s41
    %p169 = scmp.eq.s32.totalorder %s168, 0
    %s171 = sadd.s32 %s170, 1
    %s172 = scalar_select %p169, %s170, %s171
    %p175 = pneg %p169
    %p176 = scmp.eq.s32.totalorder %s26, 3
    %p177 = por %p175, %p176
    %p178 = scmp.ne.s32.totalorder %s170, %s173
    %p179 = scmp.eq.s32.totalorder %s26, 0
    %p180 = por %p178, %p179
    %p181 = scmp.ne.s32.totalorder %s170, %s173
    %p182 = scmp.eq.s32.totalorder %s31, 3
    %p183 = por %p181, %p182
    %p184 = scmp.ne.s32.totalorder %s173, %s174
    %p185 = scmp.eq.s32.totalorder %s31, 0
    %p186 = por %p184, %p185
    %p187 = scmp.ne.s32.totalorder %s173, %s174
    %p188 = scmp.eq.s32.totalorder %s32, 3
    %p189 = por %p187, %p188
    %p191 = scmp.ne.s32.totalorder %s174, %s190
    %p192 = scmp.eq.s32.totalorder %s32, 0
    %p193 = por %p191, %p192
    %s194 = ssub.s32 %s34, %s41
    %p195 = scmp.eq.s32.totalorder %s194, 0
    %s197 = sadd.s32 %s196, 1
    %s198 = scalar_select %p195, %s196, %s197
    %p201 = pneg %p195
    %p202 = scmp.eq.s32.totalorder %s26, 3
    %p203 = por %p201, %p202
    %p204 = scmp.ne.s32.totalorder %s196, %s199
    %p205 = scmp.eq.s32.totalorder %s26, 0
    %p206 = por %p204, %p205
    %p207 = scmp.ne.s32.totalorder %s196, %s199
    %p208 = scmp.eq.s32.totalorder %s31, 3
    %p209 = por %p207, %p208
    %p210 = scmp.ne.s32.totalorder %s199, %s200
    %p211 = scmp.eq.s32.totalorder %s31, 0
    %p212 = por %p210, %p211
    %p213 = scmp.ne.s32.totalorder %s199, %s200
    %p214 = scmp.eq.s32.totalorder %s32, 3
    %p215 = por %p213, %p214
    %p217 = scmp.ne.s32.totalorder %s200, %s216
    %p218 = scmp.eq.s32.totalorder %s32, 0
    %p219 = por %p217, %p218
    %s220 = ssub.s32 %s34, %s41
    %p221 = scmp.eq.s32.totalorder %s220, 0
    %s223 = sadd.s32 %s222, 1
    %s224 = scalar_select %p221, %s222, %s223
    %p227 = pneg %p221
    %p228 = scmp.eq.s32.totalorder %s26, 3
    %p229 = por %p227, %p228
    %p230 = scmp.ne.s32.totalorder %s222, %s225
    %p231 = scmp.eq.s32.totalorder %s26, 0
    %p232 = por %p230, %p231
    %p233 = scmp.ne.s32.totalorder %s222, %s225
    %p234 = scmp.eq.s32.totalorder %s31, 3
    %p235 = por %p233, %p234
    %p236 = scmp.ne.s32.totalorder %s225, %s226
    %p237 = scmp.eq.s32.totalorder %s31, 0
    %p238 = por %p236, %p237
    %p239 = scmp.ne.s32.totalorder %s225, %s226
    %p240 = scmp.eq.s32.totalorder %s32, 3
    %p241 = por %p239, %p240
    %p243 = scmp.ne.s32.totalorder %s226, %s242
    %p244 = scmp.eq.s32.totalorder %s32, 0
    %p245 = por %p243, %p244
    %s246 = ssub.s32 %s34, %s41
    %p247 = scmp.eq.s32.totalorder %s246, 0
    %s249 = sadd.s32 %s248, 1
    %s250 = scalar_select %p247, %s248, %s249
    %p253 = pneg %p247
    %p254 = scmp.eq.s32.totalorder %s26, 3
    %p255 = por %p253, %p254
    %p256 = scmp.ne.s32.totalorder %s248, %s251
    %p257 = scmp.eq.s32.totalorder %s26, 0
    %p258 = por %p256, %p257
    %p259 = scmp.ne.s32.totalorder %s248, %s251
    %p260 = scmp.eq.s32.totalorder %s31, 3
    %p261 = por %p259, %p260
    %p262 = scmp.ne.s32.totalorder %s251, %s252
    %p263 = scmp.eq.s32.totalorder %s31, 0
    %p264 = por %p262, %p263
    %p265 = scmp.ne.s32.totalorder %s251, %s252
    %p266 = scmp.eq.s32.totalorder %s32, 3
    %p267 = por %p265, %p266
    %p269 = scmp.ne.s32.totalorder %s252, %s268
    %p270 = scmp.eq.s32.totalorder %s32, 0
    %p271 = por %p269, %p270
    %s272 = ssub.s32 %s34, %s41
    %p273 = scmp.eq.s32.totalorder %s272, 0
    %s275 = sadd.s32 %s274, 1
    %s276 = scalar_select %p273, %s274, %s275
    %p279 = pneg %p273
    %p280 = scmp.eq.s32.totalorder %s26, 3
    %p281 = por %p279, %p280
    %p282 = scmp.ne.s32.totalorder %s274, %s277
    %p283 = scmp.eq.s32.totalorder %s26, 0
    %p284 = por %p282, %p283
    %p285 = scmp.ne.s32.totalorder %s274, %s277
    %p286 = scmp.eq.s32.totalorder %s31, 3
    %p287 = por %p285, %p286
    %p288 = scmp.ne.s32.totalorder %s277, %s278
    %p289 = scmp.eq.s32.totalorder %s31, 0
    %p290 = por %p288, %p289
    %p291 = scmp.ne.s32.totalorder %s277, %s278
    %p292 = scmp.eq.s32.totalorder %s32, 3
    %p293 = por %p291, %p292
    %p295 = scmp.ne.s32.totalorder %s278, %s294
    %p296 = scmp.eq.s32.totalorder %s32, 0
    %p297 = por %p295, %p296
    %s298 = ssub.s32 %s34, %s41
    %p299 = scmp.eq.s32.totalorder %s298, 0
    %s301 = sadd.s32 %s300, 1
    %s302 = scalar_select %p299, %s300, %s301
    %p305 = pneg %p299
    %p306 = scmp.eq.s32.totalorder %s26, 3
    %p307 = por %p305, %p306
    %p308 = scmp.ne.s32.totalorder %s300, %s303
    %p309 = scmp.eq.s32.totalorder %s26, 0
    %p310 = por %p308, %p309
    %p311 = scmp.ne.s32.totalorder %s300, %s303
    %p312 = scmp.eq.s32.totalorder %s31, 3
    %p313 = por %p311, %p312
    %p314 = scmp.ne.s32.totalorder %s303, %s304
    %p315 = scmp.eq.s32.totalorder %s31, 0
    %p316 = por %p314, %p315
    %p317 = scmp.ne.s32.totalorder %s303, %s304
    %p318 = scmp.eq.s32.totalorder %s32, 3
    %p319 = por %p317, %p318
    %p321 = scmp.ne.s32.totalorder %s304, %s320
    %p322 = scmp.eq.s32.totalorder %s32, 0
    %p323 = por %p321, %p322
    %s325 = sadd.s32 %s324, 1
    %p328 = scmp.eq.s32.totalorder %s26, 3
    %p329 = scmp.ne.s32.totalorder %s324, %s326
    %p330 = scmp.eq.s32.totalorder %s26, 0
    %p331 = por %p329, %p330
    %p332 = scmp.ne.s32.totalorder %s324, %s326
    %p333 = scmp.eq.s32.totalorder %s31, 3
    %p334 = por %p332, %p333
    %p335 = scmp.ne.s32.totalorder %s326, %s327
    %p336 = scmp.eq.s32.totalorder %s31, 0
    %p337 = por %p335, %p336
    %p338 = scmp.ne.s32.totalorder %s326, %s327
    %p339 = scmp.eq.s32.totalorder %s32, 3
    %p340 = por %p338, %p339
    %p342 = scmp.ne.s32.totalorder %s327, %s341
    %p343 = scmp.eq.s32.totalorder %s32, 0
    %p344 = por %p342, %p343
    %s346 = sadd.s32 %s345, 1
    %p349 = scmp.eq.s32.totalorder %s26, 3
    %p350 = scmp.ne.s32.totalorder %s345, %s347
    %p351 = scmp.eq.s32.totalorder %s26, 0
    %p352 = por %p350, %p351
    %p353 = scmp.ne.s32.totalorder %s345, %s347
    %p354 = scmp.eq.s32.totalorder %s31, 3
    %p355 = por %p353, %p354
    %p356 = scmp.ne.s32.totalorder %s347, %s348
    %p357 = scmp.eq.s32.totalorder %s31, 0
    %p358 = por %p356, %p357
    %p359 = scmp.ne.s32.totalorder %s347, %s348
    %p360 = scmp.eq.s32.totalorder %s32, 3
    %p361 = por %p359, %p360
    %p363 = scmp.ne.s32.totalorder %s348, %s362
    %p364 = scmp.eq.s32.totalorder %s32, 0
    %p365 = por %p363, %p364
    %s367 = sadd.s32 %s366, 1
    %p370 = scmp.eq.s32.totalorder %s26, 3
    %p371 = scmp.ne.s32.totalorder %s366, %s368
    %p372 = scmp.eq.s32.totalorder %s26, 0
    %p373 = por %p371, %p372
    %p374 = scmp.ne.s32.totalorder %s366, %s368
    %p375 = scmp.eq.s32.totalorder %s31, 3
    %p376 = por %p374, %p375
    %p377 = scmp.ne.s32.totalorder %s368, %s369
    %p378 = scmp.eq.s32.totalorder %s31, 0
    %p379 = por %p377, %p378
    %p380 = scmp.ne.s32.totalorder %s368, %s369
    %p381 = scmp.eq.s32.totalorder %s32, 3
    %p382 = por %p380, %p381
    %p384 = scmp.ne.s32.totalorder %s369, %s383
    %p385 = scmp.eq.s32.totalorder %s32, 0
    %p386 = por %p384, %p385
    %s388 = sadd.s32 %s387, 1
    %p391 = scmp.eq.s32.totalorder %s26, 3
    %p392 = scmp.ne.s32.totalorder %s387, %s389
    %p393 = scmp.eq.s32.totalorder %s26, 0
    %p394 = por %p392, %p393
    %p395 = scmp.ne.s32.totalorder %s387, %s389
    %p396 = scmp.eq.s32.totalorder %s31, 3
    %p397 = por %p395, %p396
    %p398 = scmp.ne.s32.totalorder %s389, %s390
    %p399 = scmp.eq.s32.totalorder %s31, 0
    %p400 = por %p398, %p399
    %p401 = scmp.ne.s32.totalorder %s389, %s390
    %p402 = scmp.eq.s32.totalorder %s32, 3
    %p403 = por %p401, %p402
    %p405 = scmp.ne.s32.totalorder %s390, %s404
    %p406 = scmp.eq.s32.totalorder %s32, 0
    %p407 = por %p405, %p406
    %s409 = sadd.s32 %s408, 1
    %p412 = scmp.eq.s32.totalorder %s26, 3
    %p413 = scmp.ne.s32.totalorder %s408, %s410
    %p414 = scmp.eq.s32.totalorder %s26, 0
    %p415 = por %p413, %p414
    %p416 = scmp.ne.s32.totalorder %s408, %s410
    %p417 = scmp.eq.s32.totalorder %s31, 3
    %p418 = por %p416, %p417
    %p419 = scmp.ne.s32.totalorder %s410, %s411
    %p420 = scmp.eq.s32.totalorder %s31, 0
    %p421 = por %p419, %p420
    %p422 = scmp.ne.s32.totalorder %s410, %s411
    %p423 = scmp.eq.s32.totalorder %s32, 3
    %p424 = por %p422, %p423
    %p426 = scmp.ne.s32.totalorder %s411, %s425
    %p427 = scmp.eq.s32.totalorder %s32, 0
    %p428 = por %p426, %p427
    %s430 = sadd.s32 %s429, 1
    %p433 = scmp.eq.s32.totalorder %s26, 3
    %p434 = scmp.ne.s32.totalorder %s429, %s431
    %p435 = scmp.eq.s32.totalorder %s26, 0
    %p436 = por %p434, %p435
    %p437 = scmp.ne.s32.totalorder %s429, %s431
    %p438 = scmp.eq.s32.totalorder %s31, 3
    %p439 = por %p437, %p438
    %p440 = scmp.ne.s32.totalorder %s431, %s432
    %p441 = scmp.eq.s32.totalorder %s31, 0
    %p442 = por %p440, %p441
    %p443 = scmp.ne.s32.totalorder %s431, %s432
    %p444 = scmp.eq.s32.totalorder %s32, 3
    %p445 = por %p443, %p444
    %p447 = scmp.ne.s32.totalorder %s432, %s446
    %p448 = scmp.eq.s32.totalorder %s32, 0
    %p449 = por %p447, %p448
    %s451 = sadd.s32 %s450, 1
    %p454 = scmp.eq.s32.totalorder %s26, 3
    %p455 = scmp.ne.s32.totalorder %s450, %s452
    %p456 = scmp.eq.s32.totalorder %s26, 0
    %p457 = por %p455, %p456
    %p458 = scmp.ne.s32.totalorder %s450, %s452
    %p459 = scmp.eq.s32.totalorder %s31, 3
    %p460 = por %p458, %p459
    %p461 = scmp.ne.s32.totalorder %s452, %s453
    %p462 = scmp.eq.s32.totalorder %s31, 0
    %p463 = por %p461, %p462
    %p464 = scmp.ne.s32.totalorder %s452, %s453
    %p465 = scmp.eq.s32.totalorder %s32, 3
    %p466 = por %p464, %p465
    %p468 = scmp.ne.s32.totalorder %s453, %s467
    %p469 = scmp.eq.s32.totalorder %s32, 0
    %p470 = por %p468, %p469
    %s471 = ssub.s32 %s33, %s45
    %p472 = scmp.eq.s32.totalorder %s471, 0
    %s474 = sadd.s32 %s473, 1
    %s475 = scalar_select %p472, %s473, %s474
    %p478 = pneg %p472
    %p479 = scmp.eq.s32.totalorder %s26, 3
    %p480 = por %p478, %p479
    %p481 = scmp.ne.s32.totalorder %s473, %s476
    %p482 = scmp.eq.s32.totalorder %s26, 0
    %p483 = por %p481, %p482
    %p484 = scmp.ne.s32.totalorder %s473, %s476
    %p485 = scmp.eq.s32.totalorder %s31, 3
    %p486 = por %p484, %p485
    %p487 = scmp.ne.s32.totalorder %s476, %s477
    %p488 = scmp.eq.s32.totalorder %s31, 0
    %p489 = por %p487, %p488
    %p490 = scmp.ne.s32.totalorder %s476, %s477
    %p491 = scmp.eq.s32.totalorder %s32, 3
    %p492 = por %p490, %p491
    %p494 = scmp.ne.s32.totalorder %s477, %s493
    %p495 = scmp.eq.s32.totalorder %s32, 0
    %p496 = por %p494, %p495
    %s497 = ssub.s32 %s33, %s45
    %s498 = ssub.s32 %s34, %s41
    %s499 = sor.u32 %s497, %s498
    %p500 = scmp.eq.s32.totalorder %s499, 0
    %s502 = sadd.s32 %s501, 1
    %s503 = scalar_select %p500, %s501, %s502
    %p506 = pneg %p500
    %p507 = scmp.eq.s32.totalorder %s26, 3
    %p508 = por %p506, %p507
    %p509 = scmp.ne.s32.totalorder %s501, %s504
    %p510 = scmp.eq.s32.totalorder %s26, 0
    %p511 = por %p509, %p510
    %p512 = scmp.ne.s32.totalorder %s501, %s504
    %p513 = scmp.eq.s32.totalorder %s31, 3
    %p514 = por %p512, %p513
    %p515 = scmp.ne.s32.totalorder %s504, %s505
    %p516 = scmp.eq.s32.totalorder %s31, 0
    %p517 = por %p515, %p516
    %p518 = scmp.ne.s32.totalorder %s504, %s505
    %p519 = scmp.eq.s32.totalorder %s32, 3
    %p520 = por %p518, %p519
    %p522 = scmp.ne.s32.totalorder %s505, %s521
    %p523 = scmp.eq.s32.totalorder %s32, 0
    %p524 = por %p522, %p523
    %p525 = scmp.le.s32.totalorder 1, %s26
    %p526 = scmp.lt.s32.totalorder %s26, 5
    %p527 = pnand %p525, %p526
    %p528 = pneg %p527
    // Predicated region
    $region9: #{unimol_encoder_forward.7} parent=5 // pred_check
      _
    $region10: #{unimol_encoder_forward.7} parent=5 // pred_check_branch
      %530 = sbr.rel (%p527) target = $region12
    $region11: #{unimol_encoder_forward.7} parent=5 // pred_region
      %s531 = ssub.s32 %s26, 1
      // Predicated region
      $region13: #{unimol_encoder_forward.7} parent=11 // pred_check
        %p532 = pneg %p113
      $region14: #{unimol_encoder_forward.7} parent=11 // pred_check_branch
        %534 = sbr.rel (%p532) target = $region16
      $region15: #{unimol_encoder_forward.7} parent=11 // pred_region
        _
      $region16: #{unimol_encoder_forward.7} parent=11 // pred_fallthru
        _
      // Predicated region
      $region17: #{unimol_encoder_forward.7} parent=11 // pred_check
        %p535 = pneg %p134
      $region18: #{unimol_encoder_forward.7} parent=11 // pred_check_branch
        %537 = sbr.rel (%p535) target = $region20
      $region19: #{unimol_encoder_forward.7} parent=11 // pred_region
        _
      $region20: #{unimol_encoder_forward.7} parent=11 // pred_fallthru
        _
      // Predicated region
      $region21: #{unimol_encoder_forward.7} parent=11 // pred_check
        %p538 = pneg %p337
      $region22: #{unimol_encoder_forward.7} parent=11 // pred_check_branch
        %540 = sbr.rel (%p538) target = $region24
      $region23: #{unimol_encoder_forward.7} parent=11 // pred_region
        _
      $region24: #{unimol_encoder_forward.7} parent=11 // pred_fallthru
        _
      // Predicated region
      $region25: #{unimol_encoder_forward.7} parent=11 // pred_check
        %p541 = pneg %p358
      $region26: #{unimol_encoder_forward.7} parent=11 // pred_check_branch
        %543 = sbr.rel (%p541) target = $region28
      $region27: #{unimol_encoder_forward.7} parent=11 // pred_region
        _
      $region28: #{unimol_encoder_forward.7} parent=11 // pred_fallthru
        _
      // Predicated region
      $region29: #{unimol_encoder_forward.7} parent=11 // pred_check
        %p544 = pneg %p379
      $region30: #{unimol_encoder_forward.7} parent=11 // pred_check_branch
        %546 = sbr.rel (%p544) target = $region32
      $region31: #{unimol_encoder_forward.7} parent=11 // pred_region
        _
      $region32: #{unimol_encoder_forward.7} parent=11 // pred_fallthru
        _
      // Predicated region
      $region33: #{unimol_encoder_forward.7} parent=11 // pred_check
        %p547 = pneg %p400
      $region34: #{unimol_encoder_forward.7} parent=11 // pred_check_branch
        %549 = sbr.rel (%p547) target = $region36
      $region35: #{unimol_encoder_forward.7} parent=11 // pred_region
        _
      $region36: #{unimol_encoder_forward.7} parent=11 // pred_fallthru
        _
      // Predicated region
      $region37: #{unimol_encoder_forward.7} parent=11 // pred_check
        %p550 = pneg %p421
      $region38: #{unimol_encoder_forward.7} parent=11 // pred_check_branch
        %552 = sbr.rel (%p550) target = $region40
      $region39: #{unimol_encoder_forward.7} parent=11 // pred_region
        _
      $region40: #{unimol_encoder_forward.7} parent=11 // pred_fallthru
        _
      // Predicated region
      $region41: #{unimol_encoder_forward.7} parent=11 // pred_check
        %p553 = pneg %p442
      $region42: #{unimol_encoder_forward.7} parent=11 // pred_check_branch
        %555 = sbr.rel (%p553) target = $region44
      $region43: #{unimol_encoder_forward.7} parent=11 // pred_region
        _
      $region44: #{unimol_encoder_forward.7} parent=11 // pred_fallthru
        _
      // Predicated region
      $region45: #{unimol_encoder_forward.7} parent=11 // pred_check
        %p556 = pneg %p463
      $region46: #{unimol_encoder_forward.7} parent=11 // pred_check_branch
        %558 = sbr.rel (%p556) target = $region48
      $region47: #{unimol_encoder_forward.7} parent=11 // pred_region
        _
      $region48: #{unimol_encoder_forward.7} parent=11 // pred_fallthru
        _
    $region12: #{unimol_encoder_forward.7} parent=5 // pred_fallthru
      _
    %p559 = scmp.lt.s32.totalorder %s26, 4
    // Predicated region
    $region49: #{unimol_encoder_forward.7} parent=5 // pred_check
      %p560 = pneg %p559
    $region50: #{unimol_encoder_forward.7} parent=5 // pred_check_branch
      %562 = sbr.rel (%p560) target = $region52
    $region51: #{unimol_encoder_forward.7} parent=5 // pred_region
      // Predicated region
      $region53: #{unimol_encoder_forward.7} parent=51 // pred_check
        %p563 = pneg %p58
      $region54: #{unimol_encoder_forward.7} parent=51 // pred_check_branch
        %565 = sbr.rel (%p563) target = $region56
      $region55: #{unimol_encoder_forward.7} parent=51 // pred_region
        %p566 = scmp.lt.s32.totalorder %s33, 1
        %s567 = scalar_select %p566, %s33, 1
        %s568 = smul.addr %s567, 8
        %s569 = scalar_lea.vmem %s0, %s568
      $region56: #{unimol_encoder_forward.7} parent=51 // pred_fallthru
        _
      // Predicated region
      $region57: #{unimol_encoder_forward.7} parent=51 // pred_check
        %p570 = pneg %p86
      $region58: #{unimol_encoder_forward.7} parent=51 // pred_check_branch
        %572 = sbr.rel (%p570) target = $region60
      $region59: #{unimol_encoder_forward.7} parent=51 // pred_region
        %s573 = smul.u32 2, %s34
        %p574 = scmp.lt.s32.totalorder %s33, 1
        %s575 = scalar_select %p574, %s33, 1
        %p576 = scmp.lt.s32.totalorder %s573, 3
        %s577 = scalar_select %p576, %s573, 3
        %s578 = smul.addr %s575, 4
        %s579 = sadd.s32 %s577, %s578
        %s580 = smul.addr %s579, 8
        %s581 = scalar_lea.vmem %s1, %s580
        %s582 = smul.u32 2, %s34
      $region60: #{unimol_encoder_forward.7} parent=51 // pred_fallthru
        _
      // Predicated region
      $region61: #{unimol_encoder_forward.7} parent=51 // pred_check
        %p583 = pneg %p154
      $region62: #{unimol_encoder_forward.7} parent=51 // pred_check_branch
        %585 = sbr.rel (%p583) target = $region64
      $region63: #{unimol_encoder_forward.7} parent=51 // pred_region
        %s586 = smul.u32 2, %s34
        %p587 = scmp.lt.s32.totalorder %s586, 3
        %s588 = scalar_select %p587, %s586, 3
        %s589 = smul.addr %s588, 4
        %s590 = smul.addr %s589, 8
        %s591 = scalar_lea.vmem %s4, %s590
        %s592 = smul.u32 2, %s34
      $region64: #{unimol_encoder_forward.7} parent=51 // pred_fallthru
        _
      // Predicated region
      $region65: #{unimol_encoder_forward.7} parent=51 // pred_check
        %p593 = pneg %p180
      $region66: #{unimol_encoder_forward.7} parent=51 // pred_check_branch
        %595 = sbr.rel (%p593) target = $region68
      $region67: #{unimol_encoder_forward.7} parent=51 // pred_region
        %s596 = smul.u32 2, %s34
        %p597 = scmp.lt.s32.totalorder %s596, 3
        %s598 = scalar_select %p597, %s596, 3
        %s599 = scalar_lea.vmem %s5, %s598
        %s600 = smul.u32 2, %s34
      $region68: #{unimol_encoder_forward.7} parent=51 // pred_fallthru
        _
      // Predicated region
      $region69: #{unimol_encoder_forward.7} parent=51 // pred_check
        %p601 = pneg %p206
      $region70: #{unimol_encoder_forward.7} parent=51 // pred_check_branch
        %603 = sbr.rel (%p601) target = $region72
      $region71: #{unimol_encoder_forward.7} parent=51 // pred_region
        %s604 = smul.u32 2, %s34
        %p605 = scmp.lt.s32.totalorder %s604, 3
        %s606 = scalar_select %p605, %s604, 3
        %s607 = smul.addr %s606, 4
        %s608 = smul.addr %s607, 8
        %s609 = scalar_lea.vmem %s6, %s608
        %s610 = smul.u32 2, %s34
      $region72: #{unimol_encoder_forward.7} parent=51 // pred_fallthru
        _
      // Predicated region
      $region73: #{unimol_encoder_forward.7} parent=51 // pred_check
        %p611 = pneg %p232
      $region74: #{unimol_encoder_forward.7} parent=51 // pred_check_branch
        %613 = sbr.rel (%p611) target = $region76
      $region75: #{unimol_encoder_forward.7} parent=51 // pred_region
        %s614 = smul.u32 2, %s34
        %p615 = scmp.lt.s32.totalorder %s614, 3
        %s616 = scalar_select %p615, %s614, 3
        %s617 = scalar_lea.vmem %s7, %s616
        %s618 = smul.u32 2, %s34
      $region76: #{unimol_encoder_forward.7} parent=51 // pred_fallthru
        _
      // Predicated region
      $region77: #{unimol_encoder_forward.7} parent=51 // pred_check
        %p619 = pneg %p258
      $region78: #{unimol_encoder_forward.7} parent=51 // pred_check_branch
        %621 = sbr.rel (%p619) target = $region80
      $region79: #{unimol_encoder_forward.7} parent=51 // pred_region
        %s622 = smul.u32 2, %s34
        %p623 = scmp.lt.s32.totalorder %s622, 3
        %s624 = scalar_select %p623, %s622, 3
        %s625 = smul.addr %s624, 4
        %s626 = smul.addr %s625, 8
        %s627 = scalar_lea.vmem %s8, %s626
        %s628 = smul.u32 2, %s34
      $region80: #{unimol_encoder_forward.7} parent=51 // pred_fallthru
        _
      // Predicated region
      $region81: #{unimol_encoder_forward.7} parent=51 // pred_check
        %p629 = pneg %p284
      $region82: #{unimol_encoder_forward.7} parent=51 // pred_check_branch
        %631 = sbr.rel (%p629) target = $region84
      $region83: #{unimol_encoder_forward.7} parent=51 // pred_region
        %s632 = smul.u32 2, %s34
        %p633 = scmp.lt.s32.totalorder %s632, 3
        %s634 = scalar_select %p633, %s632, 3
        %s635 = scalar_lea.vmem %s9, %s634
        %s636 = smul.u32 2, %s34
      $region84: #{unimol_encoder_forward.7} parent=51 // pred_fallthru
        _
      // Predicated region
      $region85: #{unimol_encoder_forward.7} parent=51 // pred_check
        %p637 = pneg %p310
      $region86: #{unimol_encoder_forward.7} parent=51 // pred_check_branch
        %639 = sbr.rel (%p637) target = $region88
      $region87: #{unimol_encoder_forward.7} parent=51 // pred_region
        %s640 = smul.u32 2, %s34
        %p641 = scmp.lt.s32.totalorder %s640, 3
        %s642 = scalar_select %p641, %s640, 3
        %s643 = smul.addr %s642, 8
        %s644 = scalar_lea.vmem %s10, %s643
        %s645 = smul.u32 2, %s34
      $region88: #{unimol_encoder_forward.7} parent=51 // pred_fallthru
        _
    $region52: #{unimol_encoder_forward.7} parent=5 // pred_fallthru
      _
    %p646 = scmp.le.s32.totalorder 1, %s26
    %p647 = scmp.lt.s32.totalorder %s26, 5
    %p648 = pnand %p646, %p647
    %p649 = pneg %p648
    // Predicated region
    $region89: #{unimol_encoder_forward.7} parent=5 // pred_check
      _
    $region90: #{unimol_encoder_forward.7} parent=5 // pred_check_branch
      %651 = sbr.rel (%p648) target = $region92
    $region91: #{unimol_encoder_forward.7} parent=5 // pred_region
      %s652 = ssub.s32 %s26, 1
      %p653 = scmp.lt.s32.totalorder %s35, 1
      %s654 = scalar_select %p653, %s35, 1
      %s655 = smul.addr %s654, 8
      %s656 = scalar_lea.vmem %s0, %s655
      %p657 = pneg %p64
      %p658 = pneg %p61
      %s659 = smul.u32 2, %s36
      %p660 = scmp.lt.s32.totalorder %s35, 1
      %s661 = scalar_select %p660, %s35, 1
      %p662 = scmp.lt.s32.totalorder %s659, 3
      %s663 = scalar_select %p662, %s659, 3
      %s664 = smul.addr %s661, 4
      %s665 = sadd.s32 %s663, %s664
      %s666 = smul.addr %s665, 8
      %s667 = scalar_lea.vmem %s1, %s666
      %p668 = pneg %p92
      %p669 = pneg %p89
      %p670 = pneg %p113
      %p671 = pneg %p110
      %p672 = pneg %p134
      %p673 = pneg %p131
      %s674 = smul.u32 2, %s36
      %p675 = scmp.lt.s32.totalorder %s674, 3
      %s676 = scalar_select %p675, %s674, 3
      %s677 = smul.addr %s676, 4
      %s678 = smul.addr %s677, 8
      %s679 = scalar_lea.vmem %s4, %s678
      %p680 = pneg %p160
      %p681 = pneg %p157
      %s682 = smul.u32 2, %s36
      %p683 = scmp.lt.s32.totalorder %s682, 3
      %s684 = scalar_select %p683, %s682, 3
      %s685 = scalar_lea.vmem %s5, %s684
      %p686 = pneg %p186
      %p687 = pneg %p183
      %s688 = smul.u32 2, %s36
      %p689 = scmp.lt.s32.totalorder %s688, 3
      %s690 = scalar_select %p689, %s688, 3
      %s691 = smul.addr %s690, 4
      %s692 = smul.addr %s691, 8
      %s693 = scalar_lea.vmem %s6, %s692
      %p694 = pneg %p212
      %p695 = pneg %p209
      %s696 = smul.u32 2, %s36
      %p697 = scmp.lt.s32.totalorder %s696, 3
      %s698 = scalar_select %p697, %s696, 3
      %s699 = scalar_lea.vmem %s7, %s698
      %p700 = pneg %p238
      %p701 = pneg %p235
      %s702 = smul.u32 2, %s36
      %p703 = scmp.lt.s32.totalorder %s702, 3
      %s704 = scalar_select %p703, %s702, 3
      %s705 = smul.addr %s704, 4
      %s706 = smul.addr %s705, 8
      %s707 = scalar_lea.vmem %s8, %s706
      %p708 = pneg %p264
      %p709 = pneg %p261
      %s710 = smul.u32 2, %s36
      %p711 = scmp.lt.s32.totalorder %s710, 3
      %s712 = scalar_select %p711, %s710, 3
      %s713 = scalar_lea.vmem %s9, %s712
      %p714 = pneg %p290
      %p715 = pneg %p287
      %s716 = smul.u32 2, %s36
      %p717 = scmp.lt.s32.totalorder %s716, 3
      %s718 = scalar_select %p717, %s716, 3
      %s719 = smul.addr %s718, 8
      %s720 = scalar_lea.vmem %s10, %s719
      %p721 = pneg %p316
      %p722 = pneg %p313
      %p723 = pneg %p337
      %p724 = pneg %p334
      %p725 = pneg %p358
      %p726 = pneg %p355
      %p727 = pneg %p379
      %p728 = pneg %p376
      %p729 = pneg %p400
      %p730 = pneg %p397
      %p731 = pneg %p421
      %p732 = pneg %p418
      %p733 = pneg %p442
      %p734 = pneg %p439
      %p735 = pneg %p463
      %p736 = pneg %p460
      %p737 = pneg %p489
      %p738 = pneg %p486
      %p739 = scmp.lt.s32.totalorder %s35, 1
      %s740 = scalar_select %p739, %s35, 1
      %s741 = smul.addr %s740, 8
      %s742 = scalar_lea.vmem %s18, %s741
      %p743 = pneg %p517
      %p744 = pneg %p514
      %s745 = smul.u32 2, %s36
      %p746 = scmp.lt.s32.totalorder %s35, 1
      %s747 = scalar_select %p746, %s35, 1
      %p748 = scmp.lt.s32.totalorder %s745, 3
      %s749 = scalar_select %p748, %s745, 3
      %s750 = smul.addr %s747, 4
      %s751 = sadd.s32 %s749, %s750
      %s752 = smul.addr %s751, 8
      %s753 = scalar_lea.vmem %s19, %s752
      %p754 = scmp.lt.s32.totalorder %s35, 1
      %s755 = scalar_select %p754, %s35, 1
      %s756 = smul.addr %s755, 8
      %s757 = scalar_lea.vmem %s0, %s756
      %s758 = smul.u32 2, %s36
      %p759 = scmp.lt.s32.totalorder %s35, 1
      %s760 = scalar_select %p759, %s35, 1
      %p761 = scmp.lt.s32.totalorder %s758, 3
      %s762 = scalar_select %p761, %s758, 3
      %s763 = smul.addr %s760, 4
      %s764 = sadd.s32 %s762, %s763
      %s765 = smul.addr %s764, 8
      %s766 = scalar_lea.vmem %s1, %s765
      %s767 = smul.u32 2, %s36
      %s768 = smul.u32 2, %s36
      %p769 = scmp.lt.s32.totalorder %s768, 3
      %s770 = scalar_select %p769, %s768, 3
      %s771 = smul.addr %s770, 4
      %s772 = smul.addr %s771, 8
      %s773 = scalar_lea.vmem %s4, %s772
      %s774 = smul.u32 2, %s36
      %s775 = smul.u32 2, %s36
      %p776 = scmp.lt.s32.totalorder %s775, 3
      %s777 = scalar_select %p776, %s775, 3
      %s778 = scalar_lea.vmem %s5, %s777
      %s779 = smul.u32 2, %s36
      %s780 = smul.u32 2, %s36
      %p781 = scmp.lt.s32.totalorder %s780, 3
      %s782 = scalar_select %p781, %s780, 3
      %s783 = smul.addr %s782, 4
      %s784 = smul.addr %s783, 8
      %s785 = scalar_lea.vmem %s6, %s784
      %s786 = smul.u32 2, %s36
      %s787 = smul.u32 2, %s36
      %p788 = scmp.lt.s32.totalorder %s787, 3
      %s789 = scalar_select %p788, %s787, 3
      %s790 = scalar_lea.vmem %s7, %s789
      %s791 = smul.u32 2, %s36
      %s792 = smul.u32 2, %s36
      %p793 = scmp.lt.s32.totalorder %s792, 3
      %s794 = scalar_select %p793, %s792, 3
      %s795 = smul.addr %s794, 4
      %s796 = smul.addr %s795, 8
      %s797 = scalar_lea.vmem %s8, %s796
      %s798 = smul.u32 2, %s36
      %s799 = smul.u32 2, %s36
      %p800 = scmp.lt.s32.totalorder %s799, 3
      %s801 = scalar_select %p800, %s799, 3
      %s802 = scalar_lea.vmem %s9, %s801
      %s803 = smul.u32 2, %s36
      %s804 = smul.u32 2, %s36
      %p805 = scmp.lt.s32.totalorder %s804, 3
      %s806 = scalar_select %p805, %s804, 3
      %s807 = smul.addr %s806, 8
      %s808 = scalar_lea.vmem %s10, %s807
      %s809 = smul.u32 2, %s36
      %p810 = scmp.lt.s32.totalorder %s35, 1
      %s811 = scalar_select %p810, %s35, 1
      %s812 = smul.addr %s811, 8
      %s813 = scalar_lea.vmem %s18, %s812
      %s814 = smul.u32 2, %s36
      %p815 = scmp.lt.s32.totalorder %s35, 1
      %s816 = scalar_select %p815, %s35, 1
      %p817 = scmp.lt.s32.totalorder %s814, 3
      %s818 = scalar_select %p817, %s814, 3
      %s819 = smul.addr %s816, 4
      %s820 = sadd.s32 %s818, %s819
      %s821 = smul.addr %s820, 8
      %s822 = scalar_lea.vmem %s19, %s821
      %s823 = smul.u32 2, %s36
      %p825 = scmp.eq.s32.totalorder %s36, 0
      // Predicated region
      $region93: #{unimol_encoder_forward.7} parent=91 // pred_check
        %p826 = pneg %p825
      $region94: #{unimol_encoder_forward.7} parent=91 // pred_check_branch
        %828 = sbr.rel (%p826) target = $region96
      $region95: #{unimol_encoder_forward.7} parent=91 // pred_region
        %v829 = vld [vmem:[%s757] sm:$0xff]
        %v830 = vld [vmem:[%s2] sm:$0x1]
        %v831 = vld [vmem:[%s3] sm:$0x1]
        %vm832 = vcmask 261120
        %v833 = vsel %vm832, %v829, 0.0
        %834 = vadd.xlane.f32.xlu0 %v833
        %v835 = vpop.xlane.xlu0 %834
        %v836 = vrcp.pop 32.0
        %v837 = vmul.f32 32.0, %v836
        %v838 = vsub.f32 1.0, %v837
        %v839 = vmul.f32 %v836, %v838
        %v840 = vadd.f32 %v836, %v839
        %vm841 = vweird.f32 %v836
        %v842 = vsel %vm841, %v836, %v840
        %v843 = vmul.f32 %v835, %v842
        %v844 = vsub.f32 %v829, %v843
        %v845 = vmul.f32 %v844, %v844
        %v846 = vsel %vm832, %v845, 0.0
        %847 = vadd.xlane.f32.xlu0 %v846
        %v848 = vpop.xlane.xlu0 %847
        %v849 = vmul.f32 %v848, %v842
        %v850 = vadd.f32 %v849, 1e-05
        %v851 = vrsqrt.pop %v850
        %v852 = vmul.f32 %v851, %v850
        %v853 = vmul.f32 %v852, %v851
        %v854 = vmul.f32 0.5, %v853
        %v855 = vsub.f32 1.5, %v854
        %v856 = vmul.f32 %v851, %v855
        %vm857 = vweird.f32 %v850
        %vm858 = vweird.f32 %v851
        %vm859 = vmor %vm857, %vm858
        %v860 = vsel %vm859, %v851, %v856
        %v861 = vmul.f32 %v844, %v860
        %v863 = vperm.slane %v830, 0
        %v865 = vmul.f32 %v861, %v863
        %v867 = vperm.slane %v831, 0
        %v869 = vadd.f32 %v865, %v867
        %870 = vst.msk [vmem:[#allocation2] sm:$0xff] %vm832, %v869
        %v871 = vld [vmem:[%s11] sm:$0x1]
        %v873 = vperm.slane %v871, 0
        %v875 = vadd.f32 %v829, %v873
        %876 = vst.msk [vmem:[#allocation3] sm:$0xff] %vm832, %v875
      $region96: #{unimol_encoder_forward.7} parent=91 // pred_fallthru
        _
      %v877 = vld [vmem:[#allocation2] sm:$0xff]
      %v878 = vpack.c.bf16 %v877, %v877
      %v879 = vld [vmem:[%s773] sm:$0xff]
      %v880 = vld [vmem:[%s773 + $0x8] sm:$0xff]
      %v881 = vld [vmem:[%s773 + $0x10] sm:$0xff]
      %v882 = vld [vmem:[%s773 + $0x18] sm:$0xff]
      %v883 = vld [vmem:[%s773 + $0x20] sm:$0xff]
      %v884 = vld [vmem:[%s773 + $0x28] sm:$0xff]
      %v885 = vld [vmem:[%s773 + $0x30] sm:$0xff]
      %v886 = vld [vmem:[%s773 + $0x38] sm:$0xff]
      %v887 = vpack.c.bf16 %v879, %v879
      %v888 = vpack.c.bf16 %v880, %v880
      %v889 = vpack.c.bf16 %v881, %v881
      %v890 = vpack.c.bf16 %v882, %v882
      %v891 = vpack.c.bf16 %v883, %v883
      %v892 = vpack.c.bf16 %v884, %v884
      %v893 = vpack.c.bf16 %v885, %v885
      %v894 = vpack.c.bf16 %v886, %v886
      %v895 = vld [vmem:[%s785] sm:$0xff]
      %v896 = vld [vmem:[%s785 + $0x8] sm:$0xff]
      %v897 = vld [vmem:[%s785 + $0x10] sm:$0xff]
      %v898 = vld [vmem:[%s785 + $0x18] sm:$0xff]
      %v899 = vld [vmem:[%s785 + $0x20] sm:$0xff]
      %v900 = vld [vmem:[%s785 + $0x28] sm:$0xff]
      %v901 = vld [vmem:[%s785 + $0x30] sm:$0xff]
      %v902 = vld [vmem:[%s785 + $0x38] sm:$0xff]
      %v903 = vpack.c.bf16 %v895, %v895
      %v904 = vpack.c.bf16 %v896, %v896
      %v905 = vpack.c.bf16 %v897, %v897
      %v906 = vpack.c.bf16 %v898, %v898
      %v907 = vpack.c.bf16 %v899, %v899
      %v908 = vpack.c.bf16 %v900, %v900
      %v909 = vpack.c.bf16 %v901, %v901
      %v910 = vpack.c.bf16 %v902, %v902
      %v911 = vld [vmem:[%s797] sm:$0xff]
      %v912 = vld [vmem:[%s797 + $0x8] sm:$0xff]
      %v913 = vld [vmem:[%s797 + $0x10] sm:$0xff]
      %v914 = vld [vmem:[%s797 + $0x18] sm:$0xff]
      %v915 = vld [vmem:[%s797 + $0x20] sm:$0xff]
      %v916 = vld [vmem:[%s797 + $0x28] sm:$0xff]
      %v917 = vld [vmem:[%s797 + $0x30] sm:$0xff]
      %v918 = vld [vmem:[%s797 + $0x38] sm:$0xff]
      %v919 = vpack.c.bf16 %v911, %v911
      %v920 = vpack.c.bf16 %v912, %v912
      %v921 = vpack.c.bf16 %v913, %v913
      %v922 = vpack.c.bf16 %v914, %v914
      %v923 = vpack.c.bf16 %v915, %v915
      %v924 = vpack.c.bf16 %v916, %v916
      %v925 = vpack.c.bf16 %v917, %v917
      %v926 = vpack.c.bf16 %v918, %v918
      %v927 = vld [vmem:[%s778] sm:$0x1]
      %v928 = vld [vmem:[%s778 + $0x1] sm:$0x1]
      %v931 = vperm.slane %v927, 0
      %v932 = vperm.slane %v928, 0
      %v939 = vunpack.c.l.b16 %v887
      %v940 = vunpack.c.l.b16 %v888
      %v941 = vunpack.c.l.b16 %v889
      %v942 = vunpack.c.l.b16 %v890
      %v943 = vpack.c.b16 %v940, %v939
      %v944 = vpack.c.b16 %v942, %v941
      %vm947 = vcmask 261120
      %v949 = vsel %vm947, %v878, 0
      %951 = vmatpush.bf16.msra.mxu0 0
      %952 = vmatpush.bf16.msra.mxu0 0
      %953 = vmatpush.bf16.msra.mxu0 0
      %954 = vmatpush.bf16.msra.mxu0 0
      %955 = vmatpush.bf16.msra.mxu0 0
      %956 = vmatpush.bf16.msra.mxu0 0
      %957 = vmatpush.bf16.msra.mxu0 %v944
      %958 = vmatpush.bf16.msra.mxu0 %v943
      %959 = vmatmul.bf16.gmra.mxu0 %v949
      %v960 = vpop.f32.mrf.mxu0
      %v961 = vadd.f32 %v931, %v960
      %v962 = vpop.f32.mrf.mxu0
      %963 = vdwg.mxu0
      %v968 = vunpack.c.l.b16 %v891
      %v969 = vunpack.c.l.b16 %v892
      %v970 = vunpack.c.l.b16 %v893
      %v971 = vunpack.c.l.b16 %v894
      %v972 = vpack.c.b16 %v969, %v968
      %v973 = vpack.c.b16 %v971, %v970
      %976 = vmatpush.bf16.msra.mxu0 0
      %977 = vmatpush.bf16.msra.mxu0 0
      %978 = vmatpush.bf16.msra.mxu0 0
      %979 = vmatpush.bf16.msra.mxu0 0
      %980 = vmatpush.bf16.msra.mxu0 0
      %981 = vmatpush.bf16.msra.mxu0 0
      %982 = vmatpush.bf16.msra.mxu0 %v973
      %983 = vmatpush.bf16.msra.mxu0 %v972
      %984 = vmatmul.bf16.gmra.mxu0 %v949
      %v985 = vpop.f32.mrf.mxu0
      %v986 = vadd.f32 %v932, %v985
      %v987 = vpop.f32.mrf.mxu0
      %988 = vdwg.mxu0
      %v989 = vld [vmem:[%s790] sm:$0x1]
      %v990 = vld [vmem:[%s790 + $0x1] sm:$0x1]
      %v993 = vperm.slane %v989, 0
      %v994 = vperm.slane %v990, 0
      %v1001 = vunpack.c.l.b16 %v903
      %v1002 = vunpack.c.l.b16 %v904
      %v1003 = vunpack.c.l.b16 %v905
      %v1004 = vunpack.c.l.b16 %v906
      %v1005 = vpack.c.b16 %v1002, %v1001
      %v1006 = vpack.c.b16 %v1004, %v1003
      %1009 = vmatpush.bf16.msra.mxu0 0
      %1010 = vmatpush.bf16.msra.mxu0 0
      %1011 = vmatpush.bf16.msra.mxu0 0
      %1012 = vmatpush.bf16.msra.mxu0 0
      %1013 = vmatpush.bf16.msra.mxu0 0
      %1014 = vmatpush.bf16.msra.mxu0 0
      %1015 = vmatpush.bf16.msra.mxu0 %v1006
      %1016 = vmatpush.bf16.msra.mxu0 %v1005
      %1017 = vmatmul.bf16.gmra.mxu0 %v949
      %v1018 = vpop.f32.mrf.mxu0
      %v1019 = vadd.f32 %v993, %v1018
      %v1020 = vpop.f32.mrf.mxu0
      %1021 = vdwg.mxu0
      %v1026 = vunpack.c.l.b16 %v907
      %v1027 = vunpack.c.l.b16 %v908
      %v1028 = vunpack.c.l.b16 %v909
      %v1029 = vunpack.c.l.b16 %v910
      %v1030 = vpack.c.b16 %v1027, %v1026
      %v1031 = vpack.c.b16 %v1029, %v1028
      %1034 = vmatpush.bf16.msra.mxu0 0
      %1035 = vmatpush.bf16.msra.mxu0 0
      %1036 = vmatpush.bf16.msra.mxu0 0
      %1037 = vmatpush.bf16.msra.mxu0 0
      %1038 = vmatpush.bf16.msra.mxu0 0
      %1039 = vmatpush.bf16.msra.mxu0 0
      %1040 = vmatpush.bf16.msra.mxu0 %v1031
      %1041 = vmatpush.bf16.msra.mxu0 %v1030
      %1042 = vmatmul.bf16.gmra.mxu0 %v949
      %v1043 = vpop.f32.mrf.mxu0
      %v1044 = vadd.f32 %v994, %v1043
      %v1045 = vpop.f32.mrf.mxu0
      %1046 = vdwg.mxu0
      %v1047 = vld [vmem:[%s802] sm:$0x1]
      %v1048 = vld [vmem:[%s802 + $0x1] sm:$0x1]
      %v1051 = vperm.slane %v1047, 0
      %v1052 = vperm.slane %v1048, 0
      %v1059 = vunpack.c.l.b16 %v919
      %v1060 = vunpack.c.l.b16 %v920
      %v1061 = vunpack.c.l.b16 %v921
      %v1062 = vunpack.c.l.b16 %v922
      %v1063 = vpack.c.b16 %v1060, %v1059
      %v1064 = vpack.c.b16 %v1062, %v1061
      %1067 = vmatpush.bf16.msra.mxu0 0
      %1068 = vmatpush.bf16.msra.mxu0 0
      %1069 = vmatpush.bf16.msra.mxu0 0
      %1070 = vmatpush.bf16.msra.mxu0 0
      %1071 = vmatpush.bf16.msra.mxu0 0
      %1072 = vmatpush.bf16.msra.mxu0 0
      %1073 = vmatpush.bf16.msra.mxu0 %v1064
      %1074 = vmatpush.bf16.msra.mxu0 %v1063
      %1075 = vmatmul.bf16.gmra.mxu0 %v949
      %v1076 = vpop.f32.mrf.mxu0
      %v1077 = vadd.f32 %v1051, %v1076
      %v1078 = vpop.f32.mrf.mxu0
      %1079 = vdwg.mxu0
      %v1084 = vunpack.c.l.b16 %v923
      %v1085 = vunpack.c.l.b16 %v924
      %v1086 = vunpack.c.l.b16 %v925
      %v1087 = vunpack.c.l.b16 %v926
      %v1088 = vpack.c.b16 %v1085, %v1084
      %v1089 = vpack.c.b16 %v1087, %v1086
      %1092 = vmatpush.bf16.msra.mxu0 0
      %1093 = vmatpush.bf16.msra.mxu0 0
      %1094 = vmatpush.bf16.msra.mxu0 0
      %1095 = vmatpush.bf16.msra.mxu0 0
      %1096 = vmatpush.bf16.msra.mxu0 0
      %1097 = vmatpush.bf16.msra.mxu0 0
      %1098 = vmatpush.bf16.msra.mxu0 %v1089
      %1099 = vmatpush.bf16.msra.mxu0 %v1088
      %1100 = vmatmul.bf16.gmra.mxu0 %v949
      %v1101 = vpop.f32.mrf.mxu0
      %v1102 = vadd.f32 %v1052, %v1101
      %v1103 = vpop.f32.mrf.mxu0
      %1104 = vdwg.mxu0
      %v1105 = vmul.f32 %v961, 0.35355338
      %v1106 = vmul.f32 %v986, 0.35355338
      %v1107 = vpack.c.bf16 %v1105, %v1105
      %v1108 = vpack.c.bf16 %v1106, %v1106
      %v1109 = vpack.c.bf16 %v1019, %v1019
      %v1110 = vpack.c.bf16 %v1044, %v1044
      %v1111 = vld [vmem:[%s766] sm:$0xff]
      %v1112 = vld [vmem:[%s766 + $0x8] sm:$0xff]
      %vm1113 = vcmask 64512
      %v1115 = vsel %vm1113, %v1107, 0
      %v1118 = vsel %vm1113, %v1109, 0
      %1120 = vmatpush.bf16.xpose.msra.mxu0 0
      %1121 = vmatpush.bf16.xpose.msra.mxu0 0
      %1122 = vmatpush.bf16.xpose.msra.mxu0 0
      %1123 = vmatpush.bf16.xpose.msra.mxu0 0
      %1124 = vmatpush.bf16.xpose.msra.mxu0 0
      %1125 = vmatpush.bf16.xpose.msra.mxu0 0
      %1126 = vmatpush.bf16.xpose.msra.mxu0 0
      %1127 = vmatpush.bf16.xpose.msra.mxu0 %v1118
      %1128 = vmatmul.bf16.gmra.mxu0 %v1115
      %v1129 = vpop.f32.mrf.mxu0
      %v1130 = vadd.f32 %v1111, %v1129
      %v1131 = vpop.f32.mrf.mxu0
      %1132 = vdwg.mxu0
      %v1134 = vsel %vm1113, %v1108, 0
      %v1137 = vsel %vm1113, %v1110, 0
      %1139 = vmatpush.bf16.xpose.msra.mxu0 0
      %1140 = vmatpush.bf16.xpose.msra.mxu0 0
      %1141 = vmatpush.bf16.xpose.msra.mxu0 0
      %1142 = vmatpush.bf16.xpose.msra.mxu0 0
      %1143 = vmatpush.bf16.xpose.msra.mxu0 0
      %1144 = vmatpush.bf16.xpose.msra.mxu0 0
      %1145 = vmatpush.bf16.xpose.msra.mxu0 0
      %1146 = vmatpush.bf16.xpose.msra.mxu0 %v1137
      %1147 = vmatmul.bf16.gmra.mxu0 %v1134
      %v1148 = vpop.f32.mrf.mxu0
      %v1149 = vadd.f32 %v1112, %v1148
      %v1150 = vpop.f32.mrf.mxu0
      %1151 = vdwg.mxu0
      %1152 = vst.msk [vmem:[%s822] sm:$0xff] %vm1113, %v1130
      %1153 = vst.msk [vmem:[%s822 + $0x8] sm:$0xff] %vm1113, %v1149
      %v1154 = vsel %vm1113, %v1130, -inf
      %1155 = vmax.xlane.f32.xlu0 %v1154
      %v1156 = vpop.xlane.xlu0 %1155
      %v1157 = vsel %vm1113, %v1149, -inf
      %1158 = vmax.xlane.f32.xlu0 %v1157
      %v1159 = vpop.xlane.xlu0 %1158
      %v1160 = vmax.f32 %v1156, -1e+30
      %v1161 = vmax.f32 %v1159, -1e+30
      %v1162 = vsub.f32 %v1130, %v1160
      %v1163 = vsub.f32 %v1149, %v1161
      %v1164 = vmul.f32 %v1162, 1.442695
      %v1165 = vpow.pop %v1164
      %v1166 = vmul.f32 %v1163, 1.442695
      %v1167 = vpow.pop %v1166
      %v1168 = vsel %vm1113, %v1165, 0.0
      %1169 = vadd.xlane.f32.xlu0 %v1168
      %v1170 = vpop.xlane.xlu0 %1169
      %v1171 = vsel %vm1113, %v1167, 0.0
      %1172 = vadd.xlane.f32.xlu0 %v1171
      %v1173 = vpop.xlane.xlu0 %1172
      %v1174 = vmax.f32 %v1170, 1e-20
      %v1175 = vmax.f32 %v1173, 1e-20
      %v1176 = vrcp.pop %v1174
      %v1177 = vrcp.pop %v1175
      %v1178 = vmul.f32 %v1165, %v1176
      %v1179 = vmul.f32 %v1167, %v1177
      %v1180 = vpack.c.bf16 %v1178, %v1178
      %v1181 = vpack.c.bf16 %v1179, %v1179
      %v1182 = vpack.c.bf16 %v1077, %v1077
      %v1183 = vpack.c.bf16 %v1102, %v1102
      %v1185 = vsel %vm1113, %v1180, 0
      %vm1187 = vcmask 1043456
      %v1189 = vsel %vm1187, %v1182, 0
      %1191 = vmatpush.bf16.msra.mxu0 0
      %1192 = vmatpush.bf16.msra.mxu0 0
      %1193 = vmatpush.bf16.msra.mxu0 0
      %1194 = vmatpush.bf16.msra.mxu0 0
      %1195 = vmatpush.bf16.msra.mxu0 0
      %1196 = vmatpush.bf16.msra.mxu0 0
      %1197 = vmatpush.bf16.msra.mxu0 0
      %1198 = vmatpush.bf16.msra.mxu0 %v1189
      %1199 = vmatmul.bf16.gmra.mxu0 %v1185
      %v1200 = vpop.f32.mrf.mxu0
      %v1201 = vadd.f32 0.0, %v1200
      %v1202 = vpop.f32.mrf.mxu0
      %1203 = vdwg.mxu0
      %v1205 = vsel %vm1113, %v1181, 0
      %v1208 = vsel %vm1187, %v1183, 0
      %1210 = vmatpush.bf16.msra.mxu0 0
      %1211 = vmatpush.bf16.msra.mxu0 0
      %1212 = vmatpush.bf16.msra.mxu0 0
      %1213 = vmatpush.bf16.msra.mxu0 0
      %1214 = vmatpush.bf16.msra.mxu0 0
      %1215 = vmatpush.bf16.msra.mxu0 0
      %1216 = vmatpush.bf16.msra.mxu0 0
      %1217 = vmatpush.bf16.msra.mxu0 %v1208
      %1218 = vmatmul.bf16.gmra.mxu0 %v1205
      %v1219 = vpop.f32.mrf.mxu0
      %v1220 = vadd.f32 0.0, %v1219
      %v1221 = vpop.f32.mrf.mxu0
      %1222 = vdwg.mxu0
      %v1223 = vpack.c.bf16 %v1201, %v1201
      %v1224 = vpack.c.bf16 %v1220, %v1220
      %v1225 = vld [vmem:[%s808] sm:$0xff]
      %v1226 = vld [vmem:[%s808 + $0x8] sm:$0xff]
      %v1227 = vpack.c.bf16 %v1225, %v1225
      %v1228 = vpack.c.bf16 %v1226, %v1226
      %v1230 = vsel %vm1113, %v1223, 0
      %v1233 = vsel %vm1187, %v1227, 0
      %1235 = vmatpush.bf16.msra.mxu0 0
      %1236 = vmatpush.bf16.msra.mxu0 0
      %1237 = vmatpush.bf16.msra.mxu0 0
      %1238 = vmatpush.bf16.msra.mxu0 0
      %1239 = vmatpush.bf16.msra.mxu0 0
      %1240 = vmatpush.bf16.msra.mxu0 0
      %1241 = vmatpush.bf16.msra.mxu0 0
      %1242 = vmatpush.bf16.msra.mxu0 %v1233
      %1243 = vmatmul.bf16.gmra.mxu0 %v1230
      %v1244 = vpop.f32.mrf.mxu0
      %v1245 = vadd.f32 0.0, %v1244
      %v1246 = vpop.f32.mrf.mxu0
      %1247 = vdwg.mxu0
      %v1249 = vsel %vm1113, %v1224, 0
      %v1252 = vsel %vm1187, %v1228, 0
      %1254 = vmatpush.bf16.msra.mxu0 0
      %1255 = vmatpush.bf16.msra.mxu0 0
      %1256 = vmatpush.bf16.msra.mxu0 0
      %1257 = vmatpush.bf16.msra.mxu0 0
      %1258 = vmatpush.bf16.msra.mxu0 0
      %1259 = vmatpush.bf16.msra.mxu0 0
      %1260 = vmatpush.bf16.msra.mxu0 0
      %1261 = vmatpush.bf16.msra.mxu0 %v1252
      %1262 = vmatmul.bf16.gmra.mxu0 %v1249
      %v1263 = vpop.f32.mrf.mxu0
      %v1264 = vadd.f32 0.0, %v1263
      %v1265 = vpop.f32.mrf.mxu0
      %1266 = vdwg.mxu0
      %v1267 = vld [vmem:[#allocation3] sm:$0xff]
      %v1268 = vsel %vm947, %v1245, 0.0
      %v1269 = vsel %vm947, %v1264, 0.0
      %v1270 = vadd.f32 %v1268, %v1269
      %v1271 = vadd.f32 %v1267, %v1270
      %1272 = vst.msk [vmem:[#allocation3] sm:$0xff] %vm947, %v1271
      %v1273 = vld [vmem:[#allocation3] sm:$0xff]
      %1274 = vst.msk [vmem:[%s813] sm:$0xff] %vm947, %v1273
      %p1275 = scmp.eq.s32.totalorder %s36, 1
      // Predicated region
      $region97: #{unimol_encoder_forward.7} parent=91 // pred_check
        %p1276 = pneg %p1275
      $region98: #{unimol_encoder_forward.7} parent=91 // pred_check_branch
        %1278 = sbr.rel (%p1276) target = $region100
      $region99: #{unimol_encoder_forward.7} parent=91 // pred_region
        %v1279 = vld [vmem:[#allocation3] sm:$0xff]
        %v1280 = vld [vmem:[%s12] sm:$0x1]
        %v1281 = vld [vmem:[%s13] sm:$0x1]
        %v1282 = vsel %vm947, %v1279, 0.0
        %1283 = vadd.xlane.f32.xlu0 %v1282
        %v1284 = vpop.xlane.xlu0 %1283
        %v1285 = vrcp.pop 32.0
        %v1286 = vmul.f32 32.0, %v1285
        %v1287 = vsub.f32 1.0, %v1286
        %v1288 = vmul.f32 %v1285, %v1287
        %v1289 = vadd.f32 %v1285, %v1288
        %vm1290 = vweird.f32 %v1285
        %v1291 = vsel %vm1290, %v1285, %v1289
        %v1292 = vmul.f32 %v1284, %v1291
        %v1293 = vsub.f32 %v1279, %v1292
        %v1294 = vmul.f32 %v1293, %v1293
        %v1295 = vsel %vm947, %v1294, 0.0
        %1296 = vadd.xlane.f32.xlu0 %v1295
        %v1297 = vpop.xlane.xlu0 %1296
        %v1298 = vmul.f32 %v1297, %v1291
        %v1299 = vadd.f32 %v1298, 1e-05
        %v1300 = vrsqrt.pop %v1299
        %v1301 = vmul.f32 %v1300, %v1299
        %v1302 = vmul.f32 %v1301, %v1300
        %v1303 = vmul.f32 0.5, %v1302
        %v1304 = vsub.f32 1.5, %v1303
        %v1305 = vmul.f32 %v1300, %v1304
        %vm1306 = vweird.f32 %v1299
        %vm1307 = vweird.f32 %v1300
        %vm1308 = vmor %vm1306, %vm1307
        %v1309 = vsel %vm1308, %v1300, %v1305
        %v1310 = vmul.f32 %v1293, %v1309
        %v1312 = vperm.slane %v1280, 0
        %v1314 = vmul.f32 %v1310, %v1312
        %v1316 = vperm.slane %v1281, 0
        %v1318 = vadd.f32 %v1314, %v1316
        %v1319 = vpack.c.bf16 %v1318, %v1318
        %v1320 = vld [vmem:[%s14] sm:$0xff]
        %v1321 = vld [vmem:[%s14 + $0x8] sm:$0xff]
        %v1322 = vld [vmem:[%s14 + $0x10] sm:$0xff]
        %v1323 = vld [vmem:[%s14 + $0x18] sm:$0xff]
        %v1324 = vpack.c.bf16 %v1321, %v1320
        %v1325 = vpack.c.bf16 %v1323, %v1322
        %v1326 = vld [vmem:[%s15] sm:$0x1]
        %v1328 = vperm.slane %v1326, 0
        %v1331 = vsel %vm947, %v1319, 0
        %1333 = vmatpush.bf16.msra.mxu0 0
        %1334 = vmatpush.bf16.msra.mxu0 0
        %1335 = vmatpush.bf16.msra.mxu0 0
        %1336 = vmatpush.bf16.msra.mxu0 0
        %1337 = vmatpush.bf16.msra.mxu0 0
        %1338 = vmatpush.bf16.msra.mxu0 0
        %1339 = vmatpush.bf16.msra.mxu0 %v1325
        %1340 = vmatpush.bf16.msra.mxu0 %v1324
        %1341 = vmatmul.bf16.gmra.mxu0 %v1331
        %v1342 = vpop.f32.mrf.mxu0
        %v1343 = vadd.f32 %v1328, %v1342
        %v1344 = vpop.f32.mrf.mxu0
        %1345 = vdwg.mxu0
        %v1346 = vmul.f32 %v1343, 0.5
        %v1347 = vmul.f32 %v1343, 0.70710677
        %v1348 = vand.u32 2147483647, %v1347
        %v1349 = vmul.f32 %v1348, 0.3275911
        %v1350 = vadd.f32 %v1349, 1.0
        %v1351 = vrcp.pop %v1350
        %v1352 = vmul.f32 %v1351, 1.0614054
        %v1353 = vadd.f32 %v1352, -1.4531521
        %v1354 = vmul.f32 %v1353, %v1351
        %v1355 = vadd.f32 %v1354, 1.4214138
        %v1356 = vmul.f32 %v1355, %v1351
        %v1357 = vadd.f32 %v1356, -0.28449672
        %v1358 = vmul.f32 %v1357, %v1351
        %v1359 = vadd.f32 %v1358, 0.2548296
        %v1360 = vmul.f32 %v1359, %v1351
        %v1361 = vsub.f32 0.0, %v1348
        %v1362 = vmul.f32 %v1361, %v1348
        %v1363 = vmul.f32 %v1362, 1.442695
        %v1364 = vpow.pop %v1363
        %v1365 = vmul.f32 %v1360, %v1364
        %v1366 = vsub.f32 1.0, %v1365
        %vm1367 = vcmp.lt.f32.partialorder %v1347, 0.0
        %v1368 = vsub.f32 0.0, %v1366
        %v1369 = vsel %vm1367, %v1368, %v1366
        %v1370 = vadd.f32 %v1369, 1.0
        %v1371 = vmul.f32 %v1346, %v1370
        %v1372 = vpack.c.bf16 %v1371, %v1371
        %v1373 = vld [vmem:[%s16] sm:$0xff]
        %v1374 = vld [vmem:[%s16 + $0x8] sm:$0xff]
        %v1375 = vld [vmem:[%s16 + $0x10] sm:$0xff]
        %v1376 = vld [vmem:[%s16 + $0x18] sm:$0xff]
        %v1377 = vld [vmem:[%s16 + $0x20] sm:$0xff]
        %v1378 = vld [vmem:[%s16 + $0x28] sm:$0xff]
        %v1379 = vld [vmem:[%s16 + $0x30] sm:$0xff]
        %v1380 = vld [vmem:[%s16 + $0x38] sm:$0xff]
        %v1381 = vpack.c.bf16 %v1374, %v1373
        %v1382 = vpack.c.bf16 %v1376, %v1375
        %v1383 = vpack.c.bf16 %v1378, %v1377
        %v1384 = vpack.c.bf16 %v1380, %v1379
        %vm1385 = vcmask 523264
        %v1387 = vsel %vm1385, %v1372, 0
        %1389 = vmatpush.bf16.msra.mxu0 0
        %1390 = vmatpush.bf16.msra.mxu0 0
        %1391 = vmatpush.bf16.msra.mxu0 0
        %1392 = vmatpush.bf16.msra.mxu0 0
        %1393 = vmatpush.bf16.msra.mxu0 %v1384
        %1394 = vmatpush.bf16.msra.mxu0 %v1383
        %1395 = vmatpush.bf16.msra.mxu0 %v1382
        %1396 = vmatpush.bf16.msra.mxu0 %v1381
        %1397 = vmatmul.bf16.gmra.mxu0 %v1387
        %v1398 = vpop.f32.mrf.mxu0
        %v1399 = vadd.f32 0.0, %v1398
        %v1400 = vpop.f32.mrf.mxu0
        %1401 = vdwg.mxu0
        %v1402 = vadd.f32 %v1279, %v1399
        %v1403 = vld [vmem:[%s17] sm:$0x1]
        %v1405 = vperm.slane %v1403, 0
        %v1407 = vadd.f32 %v1402, %v1405
        %1408 = vst.msk [vmem:[%s813] sm:$0xff] %vm947, %v1407
      $region100: #{unimol_encoder_forward.7} parent=91 // pred_fallthru
        _
      %p1409 = scmp.lt.s32.totalorder %s35, 1
      %s1410 = scalar_select %p1409, %s35, 1
      %s1411 = smul.addr %s1410, 8
      %s1412 = scalar_lea.vmem %s18, %s1411
      %s1413 = smul.u32 2, %s36
      %p1414 = scmp.lt.s32.totalorder %s35, 1
      %s1415 = scalar_select %p1414, %s35, 1
      %p1416 = scmp.lt.s32.totalorder %s1413, 3
      %s1417 = scalar_select %p1416, %s1413, 3
      %s1418 = smul.addr %s1415, 4
      %s1419 = sadd.s32 %s1417, %s1418
      %s1420 = smul.addr %s1419, 8
      %s1421 = scalar_lea.vmem %s19, %s1420
      // Predicated region
      $region101: #{unimol_encoder_forward.7} parent=91 // pred_check
        %p1422 = pneg %p486
      $region102: #{unimol_encoder_forward.7} parent=91 // pred_check_branch
        %1424 = sbr.rel (%p1422) target = $region104
      $region103: #{unimol_encoder_forward.7} parent=91 // pred_region
        _
      $region104: #{unimol_encoder_forward.7} parent=91 // pred_fallthru
        _
      // Predicated region
      $region105: #{unimol_encoder_forward.7} parent=91 // pred_check
        %p1425 = pneg %p514
      $region106: #{unimol_encoder_forward.7} parent=91 // pred_check_branch
        %1427 = sbr.rel (%p1425) target = $region108
      $region107: #{unimol_encoder_forward.7} parent=91 // pred_region
        %s1428 = smul.u32 2, %s36
      $region108: #{unimol_encoder_forward.7} parent=91 // pred_fallthru
        _
    $region92: #{unimol_encoder_forward.7} parent=5 // pred_fallthru
      _
    %p1429 = scmp.le.s32.totalorder 2, %s26
    // Predicated region
    $region109: #{unimol_encoder_forward.7} parent=5 // pred_check
      %p1430 = pneg %p1429
    $region110: #{unimol_encoder_forward.7} parent=5 // pred_check_branch
      %1432 = sbr.rel (%p1430) target = $region112
    $region111: #{unimol_encoder_forward.7} parent=5 // pred_region
      %s1433 = ssub.s32 %s26, 2
      // Predicated region
      $region113: #{unimol_encoder_forward.7} parent=111 // pred_check
        %p1434 = pneg %p492
      $region114: #{unimol_encoder_forward.7} parent=111 // pred_check_branch
        %1436 = sbr.rel (%p1434) target = $region116
      $region115: #{unimol_encoder_forward.7} parent=111 // pred_region
        %p1437 = scmp.lt.s32.totalorder %s37, 1
        %s1438 = scalar_select %p1437, %s37, 1
        %s1439 = smul.addr %s1438, 8
        %s1440 = scalar_lea.vmem %s18, %s1439
      $region116: #{unimol_encoder_forward.7} parent=111 // pred_fallthru
        _
      // Predicated region
      $region117: #{unimol_encoder_forward.7} parent=111 // pred_check
        %p1441 = pneg %p520
      $region118: #{unimol_encoder_forward.7} parent=111 // pred_check_branch
        %1443 = sbr.rel (%p1441) target = $region120
      $region119: #{unimol_encoder_forward.7} parent=111 // pred_region
        %s1444 = smul.u32 2, %s38
        %p1445 = scmp.lt.s32.totalorder %s37, 1
        %s1446 = scalar_select %p1445, %s37, 1
        %p1447 = scmp.lt.s32.totalorder %s1444, 3
        %s1448 = scalar_select %p1447, %s1444, 3
        %s1449 = smul.addr %s1446, 4
        %s1450 = sadd.s32 %s1448, %s1449
        %s1451 = smul.addr %s1450, 8
        %s1452 = scalar_lea.vmem %s19, %s1451
      $region120: #{unimol_encoder_forward.7} parent=111 // pred_fallthru
        _
    $region112: #{unimol_encoder_forward.7} parent=5 // pred_fallthru
      _
  $region6: #{unimol_encoder_forward.7} parent=0 // loop_footer
    %s30 = sadd.s32 1, %s26
  $region7: #{unimol_encoder_forward.7} parent=0 // loop_footer_branch
    %25 = sbr.rel target = $region3
  $region8: #{unimol_encoder_forward.7} parent=0 // loop_exit
    _

</llo_original>
